<compile_context>
chip_gen: v5e
topology: v5e:2x2
jax: 0.10.0
libtpu: 0.0.40
codegen_flags: <defaults>
</compile_context>

<pallas_src>
import functools
import math

import jax
import jax.numpy as jnp
from jax.experimental import pallas as pl
from jax.experimental.pallas import tpu as pltpu


MXU_DTYPE = jnp.bfloat16            # MXU operand / activation storage dtype


def _round_up(x, m):
    return ((x + m - 1) // m) * m


def _pick_tile(dim, target, align):
    """Largest tile <= target that divides `dim` and is `align`-aligned.

    Falls back to the full dimension (always legal) if no aligned divisor
    exists (small / odd dims such as num_classes or C*p*p).
    """
    if dim <= target:
        return dim
    t = (target // align) * align
    while t >= align:
        if dim % t == 0:
            return t
        t -= align
    return dim


def _tpu_config():
    """Per-generation tile sizes and scoped-VMEM budget."""
    try:
        vmem_cap = int(pltpu.get_tpu_info().vmem_capacity_bytes)
    except Exception:
        vmem_cap = 64 * 1024 * 1024          # assume v7x-like if query fails
    if vmem_cap >= 100 * 1024 * 1024:        # v5e / v6e: 128 MiB physical VMEM
        return {"vmem_limit": 96 * 1024 * 1024, "tm": 512, "tn": 1024, "tk": 1024}
    # v7x: 64 MiB physical VMEM -> conservative budget / tiles
    return {"vmem_limit": 40 * 1024 * 1024, "tm": 256, "tn": 512, "tk": 512}


_CFG = _tpu_config()


def _pad_rows(a, m_pad):
    m = a.shape[0]
    if m_pad == m:
        return a
    return jnp.pad(a, ((0, m_pad - m), (0, 0)))


def _apply_activation(x, activation):
    if activation is None:
        return x
    if activation == "relu":
        return jnp.maximum(x, 0.0)
    if activation == "gelu":
        # TODO(synk): tanh-approx GELU; PyTorch's default F.gelu is exact erf.
        return jax.nn.gelu(x)
    raise ValueError(f"unsupported activation: {activation}")


# -----------------------------------------------------------------------------
# Tiled matmul + bias (+ optional activation, + optional fused residual add)
# Operands arrive in bf16; accumulation is f32 in a VMEM scratch.
# -----------------------------------------------------------------------------
def _matmul_kernel(x_ref, w_ref, b_ref, o_ref, acc_ref, *, activation):
    k = pl.program_id(2)

    @pl.when(k == 0)
    def _():
        acc_ref[...] = jnp.zeros_like(acc_ref)

    acc_ref[...] += jnp.dot(x_ref[...], w_ref[...],
                            preferred_element_type=jnp.float32)

    @pl.when(k == pl.num_programs(2) - 1)
    def _():
        acc = acc_ref[...] + b_ref[...].astype(jnp.float32)
        acc = _apply_activation(acc, activation)
        o_ref[...] = acc.astype(o_ref.dtype)


def _matmul_res_kernel(x_ref, w_ref, b_ref, res_ref, o_ref, acc_ref, *,
                       activation):
    k = pl.program_id(2)

    @pl.when(k == 0)
    def _():
        acc_ref[...] = jnp.zeros_like(acc_ref)

    acc_ref[...] += jnp.dot(x_ref[...], w_ref[...],
                            preferred_element_type=jnp.float32)

    @pl.when(k == pl.num_programs(2) - 1)
    def _():
        acc = acc_ref[...] + b_ref[...].astype(jnp.float32)
        acc = _apply_activation(acc, activation)
        acc = acc + res_ref[...].astype(jnp.float32)   # fused residual add
        o_ref[...] = acc.astype(o_ref.dtype)


def matmul_bias(x, w, b, residual=None, activation=None, out_dtype=None):
    """x: (M, K) bf16, w: (K, N) bf16, b: (N,) -> act(x @ w + b) [+ residual]."""
    M, K = x.shape
    K2, N = w.shape
    assert K == K2
    tn = _pick_tile(N, _CFG["tn"], 128)
    tk = _pick_tile(K, _CFG["tk"], 128)
    tm = min(_CFG["tm"], _round_up(M, 16))       # 16-row alignment for bf16
    m_pad = _round_up(M, tm)
    grid = (m_pad // tm, N // tn, K // tk)

    x_p = _pad_rows(x, m_pad)
    in_specs = [
        pl.BlockSpec((tm, tk), lambda i, j, k: (i, k)),
        pl.BlockSpec((tk, tn), lambda i, j, k: (k, j)),
        pl.BlockSpec((1, tn), lambda i, j, k: (0, j)),
    ]
    args = [x_p, w, b.reshape(1, N)]
    if residual is None:
        kernel = functools.partial(_matmul_kernel, activation=activation)
    else:
        kernel = functools.partial(_matmul_res_kernel, activation=activation)
        in_specs.append(pl.BlockSpec((tm, tn), lambda i, j, k: (i, j)))
        args.append(_pad_rows(residual, m_pad))

    out_dtype = x.dtype if out_dtype is None else out_dtype
    out = pl.pallas_call(
        kernel,
        out_shape=jax.ShapeDtypeStruct((m_pad, N), out_dtype),
        grid=grid,
        in_specs=in_specs,
        out_specs=pl.BlockSpec((tm, tn), lambda i, j, k: (i, j)),
        scratch_shapes=[pltpu.VMEM((tm, tn), jnp.float32)],
        compiler_params=pltpu.CompilerParams(
            dimension_semantics=("parallel", "parallel", "arbitrary"),
            vmem_limit_bytes=_CFG["vmem_limit"]),
    )(*args)
    return out[:M] if m_pad != M else out


# -----------------------------------------------------------------------------
# Fused LayerNorm + matmul + bias (+ optional activation).  K (=E) kept whole
# so LN statistics are exact; normalized bf16 activations are cached in VMEM
# so LN runs once per row tile, not once per N tile.
# -----------------------------------------------------------------------------
def _ln_matmul_kernel(x_ref, g_ref, bet_ref, w_ref, b_ref, o_ref, xn_ref, *,
                      eps, activation):
    @pl.when(pl.program_id(1) == 0)
    def _():
        x = x_ref[...].astype(jnp.float32)
        mean = jnp.mean(x, axis=-1, keepdims=True)
        cen = x - mean
        var = jnp.mean(cen * cen, axis=-1, keepdims=True)
        xn = cen * jax.lax.rsqrt(var + eps)
        xn = xn * g_ref[...].astype(jnp.float32) + bet_ref[...].astype(jnp.float32)
        xn_ref[...] = xn.astype(xn_ref.dtype)

    acc = jnp.dot(xn_ref[...], w_ref[...], preferred_element_type=jnp.float32)
    acc = acc + b_ref[...].astype(jnp.float32)
    acc = _apply_activation(acc, activation)
    o_ref[...] = acc.astype(o_ref.dtype)


def ln_matmul_bias(x, gamma, beta, w, b, activation=None, eps=1e-5,
                   out_dtype=None):
    """(LayerNorm(x) @ w + b) with LN folded into the matmul prologue."""
    M, K = x.shape
    K2, N = w.shape
    assert K == K2
    tn = _pick_tile(N, _CFG["tn"], 128)
    tm = min(_CFG["tm"], _round_up(M, 16))
    m_pad = _round_up(M, tm)
    grid = (m_pad // tm, N // tn)

    kernel = functools.partial(_ln_matmul_kernel, eps=eps, activation=activation)
    out_dtype = x.dtype if out_dtype is None else out_dtype
    out = pl.pallas_call(
        kernel,
        out_shape=jax.ShapeDtypeStruct((m_pad, N), out_dtype),
        grid=grid,
        in_specs=[
            pl.BlockSpec((tm, K), lambda i, j: (i, 0)),
            pl.BlockSpec((1, K), lambda i, j: (0, 0)),
            pl.BlockSpec((1, K), lambda i, j: (0, 0)),
            pl.BlockSpec((K, tn), lambda i, j: (0, j)),
            pl.BlockSpec((1, tn), lambda i, j: (0, j)),
        ],
        out_specs=pl.BlockSpec((tm, tn), lambda i, j: (i, j)),
        scratch_shapes=[pltpu.VMEM((tm, K), MXU_DTYPE)],
        compiler_params=pltpu.CompilerParams(
            dimension_semantics=("parallel", "arbitrary"),
            vmem_limit_bytes=_CFG["vmem_limit"]),
    )(_pad_rows(x, m_pad), gamma.reshape(1, K), beta.reshape(1, K),
      w, b.reshape(1, N))
    return out[:M] if m_pad != M else out


# -----------------------------------------------------------------------------
# Multi-head attention: grid=(B, H) with both axes parallel (megacore / small
# batch friendly); bf16 MXU operands, f32 softmax; scale folded into q.
# -----------------------------------------------------------------------------
def _attention_kernel(q_ref, k_ref, v_ref, o_ref, *, scale):
    q = (q_ref[0, 0].astype(jnp.float32) * scale).astype(MXU_DTYPE)   # (S, Dh)
    k = k_ref[0, 0]                                                   # (S, Dh)
    v = v_ref[0, 0]                                                   # (S, Dh)
    s = jax.lax.dot_general(q, k, dimension_numbers=(((1,), (1,)), ((), ())),
                            preferred_element_type=jnp.float32)       # (S, S)
    s = s - jnp.max(s, axis=-1, keepdims=True)
    p = jnp.exp(s)
    inv = pl.reciprocal(jnp.sum(p, axis=-1, keepdims=True), approx=True)
    o = jnp.dot(p.astype(MXU_DTYPE), v, preferred_element_type=jnp.float32) * inv
    o_ref[0, 0] = o.astype(o_ref.dtype)


def attention(qkv, num_heads):
    """qkv: (B, S, 3E) packed [q|k|v] on the last axis  ->  (B, S, E)."""
    B, S, three_e = qkv.shape
    E = three_e // 3
    Dh = E // num_heads
    scale = 1.0 / math.sqrt(Dh)

    # (B, S, 3, H, Dh) -> (3, B, H, S, Dh): per-head q/k/v, lane-clean blocks.
    t = qkv.reshape(B, S, 3, num_heads, Dh).transpose(2, 0, 3, 1, 4)
    q, k, v = t[0], t[1], t[2]

    kernel = functools.partial(_attention_kernel, scale=scale)
    spec = pl.BlockSpec((1, 1, S, Dh), lambda b, h: (b, h, 0, 0))
    out = pl.pallas_call(
        kernel,
        out_shape=jax.ShapeDtypeStruct((B, num_heads, S, Dh), qkv.dtype),
        grid=(B, num_heads),
        in_specs=[spec, spec, spec],
        out_specs=pl.BlockSpec((1, 1, S, Dh), lambda b, h: (b, h, 0, 0)),
        compiler_params=pltpu.CompilerParams(
            dimension_semantics=("parallel", "parallel"),
            vmem_limit_bytes=_CFG["vmem_limit"]),
    )(q, k, v)
    return out.transpose(0, 2, 1, 3).reshape(B, S, E)


# -----------------------------------------------------------------------------
# Parameter initialization (deterministic, synthetic).  Weights stored bf16;
# biases / LN params / cls / pos-embed stay f32.
# -----------------------------------------------------------------------------
def init_params(key, in_channels, patch_size, embed_dim, num_patches,
                num_heads, num_encoders, num_classes, ffn_dim):
    keys = jax.random.split(key, 4 + num_encoders)

    def nrm(k, shape, scale=0.02):
        return (scale * jax.random.normal(k, shape, dtype=jnp.float32)
                ).astype(MXU_DTYPE)

    params = {
        # conv weight reshaped to (C*p*p, E) for the patch matmul
        "patch_w": nrm(keys[0], (in_channels * patch_size * patch_size, embed_dim)),
        "patch_b": jnp.zeros((embed_dim,), jnp.float32),
        "cls_token": jax.random.normal(keys[1], (1, 1, embed_dim), dtype=jnp.float32),
        "pos_embed": jax.random.normal(keys[2], (1, num_patches + 1, embed_dim),
                                       dtype=jnp.float32),
        "mlp_ln_g": jnp.ones((embed_dim,), jnp.float32),
        "mlp_ln_b": jnp.zeros((embed_dim,), jnp.float32),
        "head_w": nrm(keys[3], (embed_dim, num_classes)),
        "head_b": jnp.zeros((num_classes,), jnp.float32),
        "layers": [],
    }
    for l in range(num_encoders):
        lk = jax.random.split(keys[4 + l], 4)
        params["layers"].append({
            "ln1_g": jnp.ones((embed_dim,), jnp.float32),
            "ln1_b": jnp.zeros((embed_dim,), jnp.float32),
            "in_proj_w": nrm(lk[0], (embed_dim, 3 * embed_dim)),
            "in_proj_b": jnp.zeros((3 * embed_dim,), jnp.float32),
            "out_proj_w": nrm(lk[1], (embed_dim, embed_dim)),
            "out_proj_b": jnp.zeros((embed_dim,), jnp.float32),
            "ln2_g": jnp.ones((embed_dim,), jnp.float32),
            "ln2_b": jnp.zeros((embed_dim,), jnp.float32),
            "ffn_w1": nrm(lk[2], (embed_dim, ffn_dim)),
            "ffn_b1": jnp.zeros((ffn_dim,), jnp.float32),
            "ffn_w2": nrm(lk[3], (ffn_dim, embed_dim)),
            "ffn_b2": jnp.zeros((embed_dim,), jnp.float32),
        })
    return params


# -----------------------------------------------------------------------------
# Forward pass (thin JAX glue, compute in Pallas kernels)
# -----------------------------------------------------------------------------
def vit_forward(params, x, *, patch_size, num_heads, activation="relu"):
    B, C, H, W = x.shape
    p = patch_size
    Hp, Wp = H // p, W // p
    num_patches = Hp * Wp
    E = params["patch_w"].shape[1]

    # ---- PatchEmbedding: Conv2d(k=s=p) as patchify + matmul ----
    patches = x.reshape(B, C, Hp, p, Wp, p)
    patches = patches.transpose(0, 2, 4, 1, 3, 5)           # (B, Hp, Wp, C, p, p)
    patches = patches.reshape(B * num_patches, C * p * p).astype(MXU_DTYPE)
    emb = matmul_bias(patches, params["patch_w"], params["patch_b"])
    emb = emb.reshape(B, num_patches, E)                     # == Flatten(2).permute(0,2,1)

    cls = jnp.broadcast_to(params["cls_token"], (B, 1, E))
    seq = jnp.concatenate([cls, emb.astype(jnp.float32)], axis=1) + params["pos_embed"]
    seq = seq.astype(MXU_DTYPE)                              # bf16 activations
    # TODO(synk): dropout is identity (eval-mode semantics).

    S = num_patches + 1
    x2 = seq.reshape(B * S, E)

    # ---- TransformerEncoder (norm_first=True, no final norm) ----
    for layer in params["layers"]:
        # x = x + out_proj(MHA(norm1(x)))
        #   LN fused into qkv matmul prologue; residual fused into out_proj.
        qkv = ln_matmul_bias(x2, layer["ln1_g"], layer["ln1_b"],
                             layer["in_proj_w"], layer["in_proj_b"])   # (B*S, 3E)
        attn = attention(qkv.reshape(B, S, 3 * E), num_heads)          # (B, S, E)
        x2 = matmul_bias(attn.reshape(B * S, E),
                         layer["out_proj_w"], layer["out_proj_b"],
                         residual=x2)

        # x = x + linear2(act(linear1(norm2(x))))
        h = ln_matmul_bias(x2, layer["ln2_g"], layer["ln2_b"],
                           layer["ffn_w1"], layer["ffn_b1"],
                           activation=activation)
        x2 = matmul_bias(h, layer["ffn_w2"], layer["ffn_b2"], residual=x2)

    seq = x2.reshape(B, S, E)

    # ---- MLP head on CLS token: LayerNorm + Linear fused into one kernel ----
    cls_out = seq[:, 0, :]                                   # (B, E)
    logits = ln_matmul_bias(cls_out, params["mlp_ln_g"], params["mlp_ln_b"],
                            params["head_w"], params["head_b"],
                            out_dtype=jnp.float32)
    return logits                                            # (B, num_classes)


# -----------------------------------------------------------------------------
if __name__ == "__main__":
    # ViT(in_channels=3, patch_size=4, embed_dim=32, num_patches=16,
    #     dropout=0.0, num_heads=4, activation="relu", num_encoders=2,
    #     num_classes=10)  on 16x16 images, batch=2.
    B, C, Himg, Wimg = 2, 3, 16, 16
    patch_size = 4
    embed_dim = 32
    num_patches = (Himg // patch_size) * (Wimg // patch_size)  # 16
    num_heads = 4
    num_encoders = 2
    num_classes = 10
    ffn_dim = 2048  # nn.TransformerEncoderLayer default dim_feedforward

    key = jax.random.PRNGKey(0)
    kx, kp = jax.random.split(key)
    x = jax.random.normal(kx, (B, C, Himg, Wimg), dtype=jnp.float32)
    params = init_params(kp, C, patch_size, embed_dim, num_patches,
                         num_heads, num_encoders, num_classes, ffn_dim)

    fwd = jax.jit(functools.partial(vit_forward, patch_size=patch_size,
                                    num_heads=num_heads, activation="relu"))
    logits = fwd(params, x)
    jax.block_until_ready(logits)
    assert logits.shape == (B, num_classes)
    assert bool(jnp.all(jnp.isfinite(logits)))
    print("KERNEL_OK")
</pallas_src>

<mosaic_0001>
module attributes {stable_mosaic.version = 11 : i64} {
  func.func @_matmul_kernel(%arg0: i32, %arg1: i32, %arg2: i32, %arg3: memref<32x48xbf16, #tpu.memory_space<vmem>>, %arg4: memref<48x32xbf16, #tpu.memory_space<vmem>>, %arg5: memref<1x32xf32, #tpu.memory_space<vmem>>, %arg6: memref<32x32xbf16, #tpu.memory_space<vmem>>, %arg7: memref<32x32xf32, #tpu.memory_space<vmem>>) attributes {dimension_semantics = [#tpu.dimension_semantics<parallel>, #tpu.dimension_semantics<parallel>, #tpu.dimension_semantics<arbitrary>], iteration_bounds = array<i64: 1, 1, 1>, scalar_prefetch = 0 : i64, scratch_operands = 1 : i64, tpu.core_type = #tpu.core_type<tc>, window_params = [{transform_indices = @transform_0, window_bounds = array<i64: 32, 48>}, {transform_indices = @transform_1, window_bounds = array<i64: 48, 32>}, {transform_indices = @transform_2, window_bounds = array<i64: 1, 32>}, {transform_indices = @transform_3, window_bounds = array<i64: 32, 32>}]} {
    %c0_i32 = arith.constant 0 : i32
    %0 = arith.cmpi eq, %arg2, %c0_i32 : i32
    %1 = arith.extui %0 : i1 to i32
    %c0_i32_0 = arith.constant 0 : i32
    %2 = arith.cmpi ne, %1, %c0_i32_0 : i32
    scf.if %2 {
      %cst_10 = arith.constant 0.000000e+00 : f32
      %12 = vector.broadcast %cst_10 : f32 to vector<32x32xf32>
      %c0_11 = arith.constant 0 : index
      %c0_12 = arith.constant 0 : index
      %13 = vector.load %arg7[%c0_11, %c0_12] : memref<32x32xf32, #tpu.memory_space<vmem>>, vector<32x32xf32>
      tpu.vector_store %arg7[%c0_11, %c0_12], %12 {strides = array<i32>} : memref<32x32xf32, #tpu.memory_space<vmem>>, vector<32x32xf32>,
    } else {
    }
    %c0 = arith.constant 0 : index
    %c0_1 = arith.constant 0 : index
    %3 = vector.load %arg7[%c0, %c0_1] : memref<32x32xf32, #tpu.memory_space<vmem>>, vector<32x32xf32>
    %c0_2 = arith.constant 0 : index
    %c0_3 = arith.constant 0 : index
    %4 = vector.load %arg3[%c0_2, %c0_3] : memref<32x48xbf16, #tpu.memory_space<vmem>>, vector<32x48xbf16>
    %c0_4 = arith.constant 0 : index
    %c0_5 = arith.constant 0 : index
    %5 = vector.load %arg4[%c0_4, %c0_5] : memref<48x32xbf16, #tpu.memory_space<vmem>>, vector<48x32xbf16>
    %cst = arith.constant dense<0.000000e+00> : vector<32x32xf32>
    %6 = tpu.matmul %4, %5, %cst {dimension_numbers = #tpu.dot_dimension_numbers<[1], [0], [0], [1], [0, 0, 1, 1], [], []>} : vector<32x48xbf16>, vector<48x32xbf16>, vector<32x32xf32> -> vector<32x32xf32>
    %7 = arith.addf %3, %6 : vector<32x32xf32>
    %c0_6 = arith.constant 0 : index
    %c0_7 = arith.constant 0 : index
    %8 = vector.load %arg7[%c0_6, %c0_7] : memref<32x32xf32, #tpu.memory_space<vmem>>, vector<32x32xf32>
    tpu.vector_store %arg7[%c0_6, %c0_7], %7 {strides = array<i32>} : memref<32x32xf32, #tpu.memory_space<vmem>>, vector<32x32xf32>,
    %c0_i32_8 = arith.constant 0 : i32
    %9 = arith.cmpi eq, %arg2, %c0_i32_8 : i32
    %10 = arith.extui %9 : i1 to i32
    %c0_i32_9 = arith.constant 0 : i32
    %11 = arith.cmpi ne, %10, %c0_i32_9 : i32
    scf.if %11 {
      %c0_10 = arith.constant 0 : index
      %c0_11 = arith.constant 0 : index
      %12 = vector.load %arg7[%c0_10, %c0_11] : memref<32x32xf32, #tpu.memory_space<vmem>>, vector<32x32xf32>
      %c0_12 = arith.constant 0 : index
      %c0_13 = arith.constant 0 : index
      %13 = vector.load %arg5[%c0_12, %c0_13] : memref<1x32xf32, #tpu.memory_space<vmem>>, vector<1x32xf32>
      %14 = vector.broadcast %13 : vector<1x32xf32> to vector<32x32xf32>
      %15 = arith.addf %12, %14 : vector<32x32xf32>
      %16 = arith.truncf %15 : vector<32x32xf32> to vector<32x32xbf16>
      %c0_14 = arith.constant 0 : index
      %c0_15 = arith.constant 0 : index
      %17 = vector.load %arg6[%c0_14, %c0_15] : memref<32x32xbf16, #tpu.memory_space<vmem>>, vector<32x32xbf16>
      tpu.vector_store %arg6[%c0_14, %c0_15], %16 {strides = array<i32>} : memref<32x32xbf16, #tpu.memory_space<vmem>>, vector<32x32xbf16>,
    } else {
    }
    return
  }
  func.func @transform_0(%arg0: i32, %arg1: i32, %arg2: i32) -> (i32, i32) {
    %c0_i32 = arith.constant 0 : i32
    return %arg0, %arg2 : i32, i32
  }
  func.func @transform_1(%arg0: i32, %arg1: i32, %arg2: i32) -> (i32, i32) {
    %c0_i32 = arith.constant 0 : i32
    return %arg2, %arg1 : i32, i32
  }
  func.func @transform_2(%arg0: i32, %arg1: i32, %arg2: i32) -> (i32, i32) {
    %c0_i32 = arith.constant 0 : i32
    %c0_i32_0 = arith.constant 0 : i32
    return %c0_i32, %arg1 : i32, i32
  }
  func.func @transform_3(%arg0: i32, %arg1: i32, %arg2: i32) -> (i32, i32) {
    %c0_i32 = arith.constant 0 : i32
    return %arg0, %arg1 : i32, i32
  }
}

module attributes {stable_mosaic.version = 11 : i64} {
  func.func @_ln_matmul_kernel(%arg0: i32, %arg1: i32, %arg2: memref<48x32xbf16, #tpu.memory_space<vmem>>, %arg3: memref<1x32xf32, #tpu.memory_space<vmem>>, %arg4: memref<1x32xf32, #tpu.memory_space<vmem>>, %arg5: memref<32x96xbf16, #tpu.memory_space<vmem>>, %arg6: memref<1x96xf32, #tpu.memory_space<vmem>>, %arg7: memref<48x96xbf16, #tpu.memory_space<vmem>>, %arg8: memref<48x32xbf16, #tpu.memory_space<vmem>>) attributes {dimension_semantics = [#tpu.dimension_semantics<parallel>, #tpu.dimension_semantics<arbitrary>], iteration_bounds = array<i64: 1, 1>, scalar_prefetch = 0 : i64, scratch_operands = 1 : i64, tpu.core_type = #tpu.core_type<tc>, window_params = [{transform_indices = @transform_0, window_bounds = array<i64: 48, 32>}, {pipeline_mode = #tpu.pipeline_mode<synchronous>, transform_indices = @transform_1, window_bounds = array<i64: 1, 32>}, {pipeline_mode = #tpu.pipeline_mode<synchronous>, transform_indices = @transform_2, window_bounds = array<i64: 1, 32>}, {transform_indices = @transform_3, window_bounds = array<i64: 32, 96>}, {transform_indices = @transform_4, window_bounds = array<i64: 1, 96>}, {transform_indices = @transform_5, window_bounds = array<i64: 48, 96>}]} {
    %c0_i32 = arith.constant 0 : i32
    %0 = arith.cmpi eq, %arg1, %c0_i32 : i32
    %1 = arith.extui %0 : i1 to i32
    %c0_i32_0 = arith.constant 0 : i32
    %2 = arith.cmpi ne, %1, %c0_i32_0 : i32
    scf.if %2 {
      %c0_8 = arith.constant 0 : index
      %c0_9 = arith.constant 0 : index
      %11 = vector.load %arg2[%c0_8, %c0_9] : memref<48x32xbf16, #tpu.memory_space<vmem>>, vector<48x32xbf16>
      %12 = arith.extf %11 : vector<48x32xbf16> to vector<48x32xf32>
      %cst_10 = arith.constant dense<0.000000e+00> : vector<48xf32>
      %13 = vector.multi_reduction <add>, %12, %cst_10 [1] : vector<48x32xf32> to vector<48xf32>
      %14 = vector.shape_cast %13 : vector<48xf32> to vector<48x1xf32>
      %cst_11 = arith.constant 3.200000e+01 : f32
      %15 = vector.broadcast %cst_11 : f32 to vector<48x1xf32>
      %16 = arith.divf %14, %15 : vector<48x1xf32>
      %17 = vector.broadcast %16 : vector<48x1xf32> to vector<48x32xf32>
      %18 = arith.subf %12, %17 : vector<48x32xf32>
      %19 = arith.mulf %18, %18 : vector<48x32xf32>
      %cst_12 = arith.constant dense<0.000000e+00> : vector<48xf32>
      %20 = vector.multi_reduction <add>, %19, %cst_12 [1] : vector<48x32xf32> to vector<48xf32>
      %21 = vector.shape_cast %20 : vector<48xf32> to vector<48x1xf32>
      %cst_13 = arith.constant 3.200000e+01 : f32
      %22 = vector.broadcast %cst_13 : f32 to vector<48x1xf32>
      %23 = arith.divf %21, %22 : vector<48x1xf32>
      %cst_14 = arith.constant 9.99999974E-6 : f32
      %24 = vector.broadcast %cst_14 : f32 to vector<48x1xf32>
      %25 = arith.addf %23, %24 : vector<48x1xf32>
      %26 = math.rsqrt %25 : vector<48x1xf32>
      %27 = vector.broadcast %26 : vector<48x1xf32> to vector<48x32xf32>
      %28 = arith.mulf %18, %27 : vector<48x32xf32>
      %c0_15 = arith.constant 0 : index
      %c0_16 = arith.constant 0 : index
      %29 = vector.load %arg3[%c0_15, %c0_16] : memref<1x32xf32, #tpu.memory_space<vmem>>, vector<1x32xf32>
      %30 = vector.broadcast %29 : vector<1x32xf32> to vector<48x32xf32>
      %31 = arith.mulf %28, %30 : vector<48x32xf32>
      %c0_17 = arith.constant 0 : index
      %c0_18 = arith.constant 0 : index
      %32 = vector.load %arg4[%c0_17, %c0_18] : memref<1x32xf32, #tpu.memory_space<vmem>>, vector<1x32xf32>
      %33 = vector.broadcast %32 : vector<1x32xf32> to vector<48x32xf32>
      %34 = arith.addf %31, %33 : vector<48x32xf32>
      %35 = arith.truncf %34 : vector<48x32xf32> to vector<48x32xbf16>
      %c0_19 = arith.constant 0 : index
      %c0_20 = arith.constant 0 : index
      %36 = vector.load %arg8[%c0_19, %c0_20] : memref<48x32xbf16, #tpu.memory_space<vmem>>, vector<48x32xbf16>
      tpu.vector_store %arg8[%c0_19, %c0_20], %35 {strides = array<i32>} : memref<48x32xbf16, #tpu.memory_space<vmem>>, vector<48x32xbf16>,
    } else {
    }
    %c0 = arith.constant 0 : index
    %c0_1 = arith.constant 0 : index
    %3 = vector.load %arg8[%c0, %c0_1] : memref<48x32xbf16, #tpu.memory_space<vmem>>, vector<48x32xbf16>
    %c0_2 = arith.constant 0 : index
    %c0_3 = arith.constant 0 : index
    %4 = vector.load %arg5[%c0_2, %c0_3] : memref<32x96xbf16, #tpu.memory_space<vmem>>, vector<32x96xbf16>
    %cst = arith.constant dense<0.000000e+00> : vector<48x96xf32>
    %5 = tpu.matmul %3, %4, %cst {dimension_numbers = #tpu.dot_dimension_numbers<[1], [0], [0], [1], [0, 0, 1, 1], [], []>} : vector<48x32xbf16>, vector<32x96xbf16>, vector<48x96xf32> -> vector<48x96xf32>
    %c0_4 = arith.constant 0 : index
    %c0_5 = arith.constant 0 : index
    %6 = vector.load %arg6[%c0_4, %c0_5] : memref<1x96xf32, #tpu.memory_space<vmem>>, vector<1x96xf32>
    %7 = vector.broadcast %6 : vector<1x96xf32> to vector<48x96xf32>
    %8 = arith.addf %5, %7 : vector<48x96xf32>
    %9 = arith.truncf %8 : vector<48x96xf32> to vector<48x96xbf16>
    %c0_6 = arith.constant 0 : index
    %c0_7 = arith.constant 0 : index
    %10 = vector.load %arg7[%c0_6, %c0_7] : memref<48x96xbf16, #tpu.memory_space<vmem>>, vector<48x96xbf16>
    tpu.vector_store %arg7[%c0_6, %c0_7], %9 {strides = array<i32>} : memref<48x96xbf16, #tpu.memory_space<vmem>>, vector<48x96xbf16>,
    return
  }
  func.func @transform_0(%arg0: i32, %arg1: i32) -> (i32, i32) {
    %c0_i32 = arith.constant 0 : i32
    %c0_i32_0 = arith.constant 0 : i32
    return %arg0, %c0_i32 : i32, i32
  }
  func.func @transform_1(%arg0: i32, %arg1: i32) -> (i32, i32) {
    %c0_i32 = arith.constant 0 : i32
    %c0_i32_0 = arith.constant 0 : i32
    %c0_i32_1 = arith.constant 0 : i32
    return %c0_i32, %c0_i32_0 : i32, i32
  }
  func.func @transform_2(%arg0: i32, %arg1: i32) -> (i32, i32) {
    %c0_i32 = arith.constant 0 : i32
    %c0_i32_0 = arith.constant 0 : i32
    %c0_i32_1 = arith.constant 0 : i32
    return %c0_i32, %c0_i32_0 : i32, i32
  }
  func.func @transform_3(%arg0: i32, %arg1: i32) -> (i32, i32) {
    %c0_i32 = arith.constant 0 : i32
    %c0_i32_0 = arith.constant 0 : i32
    return %c0_i32, %arg1 : i32, i32
  }
  func.func @transform_4(%arg0: i32, %arg1: i32) -> (i32, i32) {
    %c0_i32 = arith.constant 0 : i32
    %c0_i32_0 = arith.constant 0 : i32
    return %c0_i32, %arg1 : i32, i32
  }
  func.func @transform_5(%arg0: i32, %arg1: i32) -> (i32, i32) {
    %c0_i32 = arith.constant 0 : i32
    return %arg0, %arg1 : i32, i32
  }
}

module attributes {stable_mosaic.version = 11 : i64} {
  func.func @_attention_kernel(%arg0: i32, %arg1: i32, %arg2: memref<1x1x17x8xbf16, #tpu.memory_space<vmem>>, %arg3: memref<1x1x17x8xbf16, #tpu.memory_space<vmem>>, %arg4: memref<1x1x17x8xbf16, #tpu.memory_space<vmem>>, %arg5: memref<1x1x17x8xbf16, #tpu.memory_space<vmem>>) attributes {dimension_semantics = [#tpu.dimension_semantics<parallel>, #tpu.dimension_semantics<parallel>], iteration_bounds = array<i64: 2, 4>, scalar_prefetch = 0 : i64, scratch_operands = 0 : i64, tpu.core_type = #tpu.core_type<tc>, window_params = [{transform_indices = @transform_0, window_bounds = array<i64: 1, 1, 17, 8>}, {transform_indices = @transform_1, window_bounds = array<i64: 1, 1, 17, 8>}, {transform_indices = @transform_2, window_bounds = array<i64: 1, 1, 17, 8>}, {transform_indices = @transform_3, window_bounds = array<i64: 1, 1, 17, 8>}]} {
    %c0 = arith.constant 0 : index
    %c0_0 = arith.constant 0 : index
    %c0_1 = arith.constant 0 : index
    %c0_2 = arith.constant 0 : index
    %0 = vector.load %arg2[%c0, %c0_0, %c0_1, %c0_2] : memref<1x1x17x8xbf16, #tpu.memory_space<vmem>>, vector<1x1x17x8xbf16>
    %1 = vector.shape_cast %0 : vector<1x1x17x8xbf16> to vector<17x8xbf16>
    %2 = arith.extf %1 : vector<17x8xbf16> to vector<17x8xf32>
    %cst = arith.constant 0.353553385 : f32
    %3 = vector.broadcast %cst : f32 to vector<17x8xf32>
    %4 = arith.mulf %2, %3 : vector<17x8xf32>
    %5 = arith.truncf %4 : vector<17x8xf32> to vector<17x8xbf16>
    %c0_3 = arith.constant 0 : index
    %c0_4 = arith.constant 0 : index
    %c0_5 = arith.constant 0 : index
    %c0_6 = arith.constant 0 : index
    %6 = vector.load %arg3[%c0_3, %c0_4, %c0_5, %c0_6] : memref<1x1x17x8xbf16, #tpu.memory_space<vmem>>, vector<1x1x17x8xbf16>
    %7 = vector.shape_cast %6 : vector<1x1x17x8xbf16> to vector<17x8xbf16>
    %c0_7 = arith.constant 0 : index
    %c0_8 = arith.constant 0 : index
    %c0_9 = arith.constant 0 : index
    %c0_10 = arith.constant 0 : index
    %8 = vector.load %arg4[%c0_7, %c0_8, %c0_9, %c0_10] : memref<1x1x17x8xbf16, #tpu.memory_space<vmem>>, vector<1x1x17x8xbf16>
    %9 = vector.shape_cast %8 : vector<1x1x17x8xbf16> to vector<17x8xbf16>
    %cst_11 = arith.constant dense<0.000000e+00> : vector<17x17xf32>
    %10 = tpu.matmul %5, %7, %cst_11 {dimension_numbers = #tpu.dot_dimension_numbers<[1], [1], [0], [0], [0, 0, 1, 0], [], []>} : vector<17x8xbf16>, vector<17x8xbf16>, vector<17x17xf32> -> vector<17x17xf32>
    %cst_12 = arith.constant dense<0xFF800000> : vector<17xf32>
    %11 = vector.multi_reduction <maximumf>, %10, %cst_12 [1] : vector<17x17xf32> to vector<17xf32>
    %12 = vector.shape_cast %11 : vector<17xf32> to vector<17x1xf32>
    %13 = vector.broadcast %12 : vector<17x1xf32> to vector<17x17xf32>
    %14 = arith.subf %10, %13 : vector<17x17xf32>
    %15 = math.exp %14 : vector<17x17xf32>
    %cst_13 = arith.constant dense<0.000000e+00> : vector<17xf32>
    %16 = vector.multi_reduction <add>, %15, %cst_13 [1] : vector<17x17xf32> to vector<17xf32>
    %17 = vector.shape_cast %16 : vector<17xf32> to vector<17x1xf32>
    %18 = tpu.reciprocal %17 {approx = true} : vector<17x1xf32> -> vector<17x1xf32>
    %19 = arith.truncf %15 : vector<17x17xf32> to vector<17x17xbf16>
    %cst_14 = arith.constant dense<0.000000e+00> : vector<17x8xf32>
    %20 = tpu.matmul %19, %9, %cst_14 {dimension_numbers = #tpu.dot_dimension_numbers<[1], [0], [0], [1], [0, 0, 1, 1], [], []>} : vector<17x17xbf16>, vector<17x8xbf16>, vector<17x8xf32> -> vector<17x8xf32>
    %21 = vector.broadcast %18 : vector<17x1xf32> to vector<17x8xf32>
    %22 = arith.mulf %20, %21 : vector<17x8xf32>
    %23 = arith.truncf %22 : vector<17x8xf32> to vector<17x8xbf16>
    %c0_15 = arith.constant 0 : index
    %c0_16 = arith.constant 0 : index
    %c0_17 = arith.constant 0 : index
    %c0_18 = arith.constant 0 : index
    %24 = vector.load %arg5[%c0_15, %c0_16, %c0_17, %c0_18] : memref<1x1x17x8xbf16, #tpu.memory_space<vmem>>, vector<1x1x17x8xbf16>
    %25 = vector.shape_cast %24 : vector<1x1x17x8xbf16> to vector<17x8xbf16>
    %26 = vector.shape_cast %23 : vector<17x8xbf16> to vector<1x1x17x8xbf16>
    tpu.vector_store %arg5[%c0_15, %c0_16, %c0_17, %c0_18], %26 {strides = array<i32>} : memref<1x1x17x8xbf16, #tpu.memory_space<vmem>>, vector<1x1x17x8xbf16>,
    return
  }
  func.func @transform_0(%arg0: i32, %arg1: i32) -> (i32, i32, i32, i32) {
    %c0_i32 = arith.constant 0 : i32
    %c0_i32_0 = arith.constant 0 : i32
    %c0_i32_1 = arith.constant 0 : i32
    return %arg0, %arg1, %c0_i32, %c0_i32_0 : i32, i32, i32, i32
  }
  func.func @transform_1(%arg0: i32, %arg1: i32) -> (i32, i32, i32, i32) {
    %c0_i32 = arith.constant 0 : i32
    %c0_i32_0 = arith.constant 0 : i32
    %c0_i32_1 = arith.constant 0 : i32
    return %arg0, %arg1, %c0_i32, %c0_i32_0 : i32, i32, i32, i32
  }
  func.func @transform_2(%arg0: i32, %arg1: i32) -> (i32, i32, i32, i32) {
    %c0_i32 = arith.constant 0 : i32
    %c0_i32_0 = arith.constant 0 : i32
    %c0_i32_1 = arith.constant 0 : i32
    return %arg0, %arg1, %c0_i32, %c0_i32_0 : i32, i32, i32, i32
  }
  func.func @transform_3(%arg0: i32, %arg1: i32) -> (i32, i32, i32, i32) {
    %c0_i32 = arith.constant 0 : i32
    %c0_i32_0 = arith.constant 0 : i32
    %c0_i32_1 = arith.constant 0 : i32
    return %arg0, %arg1, %c0_i32, %c0_i32_0 : i32, i32, i32, i32
  }
}

module attributes {stable_mosaic.version = 11 : i64} {
  func.func @_matmul_res_kernel(%arg0: i32, %arg1: i32, %arg2: i32, %arg3: memref<48x32xbf16, #tpu.memory_space<vmem>>, %arg4: memref<32x32xbf16, #tpu.memory_space<vmem>>, %arg5: memref<1x32xf32, #tpu.memory_space<vmem>>, %arg6: memref<48x32xbf16, #tpu.memory_space<vmem>>, %arg7: memref<48x32xbf16, #tpu.memory_space<vmem>>, %arg8: memref<48x32xf32, #tpu.memory_space<vmem>>) attributes {dimension_semantics = [#tpu.dimension_semantics<parallel>, #tpu.dimension_semantics<parallel>, #tpu.dimension_semantics<arbitrary>], iteration_bounds = array<i64: 1, 1, 1>, scalar_prefetch = 0 : i64, scratch_operands = 1 : i64, tpu.core_type = #tpu.core_type<tc>, window_params = [{transform_indices = @transform_0, window_bounds = array<i64: 48, 32>}, {transform_indices = @transform_1, window_bounds = array<i64: 32, 32>}, {transform_indices = @transform_2, window_bounds = array<i64: 1, 32>}, {transform_indices = @transform_3, window_bounds = array<i64: 48, 32>}, {transform_indices = @transform_4, window_bounds = array<i64: 48, 32>}]} {
    %c0_i32 = arith.constant 0 : i32
    %0 = arith.cmpi eq, %arg2, %c0_i32 : i32
    %1 = arith.extui %0 : i1 to i32
    %c0_i32_0 = arith.constant 0 : i32
    %2 = arith.cmpi ne, %1, %c0_i32_0 : i32
    scf.if %2 {
      %cst_10 = arith.constant 0.000000e+00 : f32
      %12 = vector.broadcast %cst_10 : f32 to vector<48x32xf32>
      %c0_11 = arith.constant 0 : index
      %c0_12 = arith.constant 0 : index
      %13 = vector.load %arg8[%c0_11, %c0_12] : memref<48x32xf32, #tpu.memory_space<vmem>>, vector<48x32xf32>
      tpu.vector_store %arg8[%c0_11, %c0_12], %12 {strides = array<i32>} : memref<48x32xf32, #tpu.memory_space<vmem>>, vector<48x32xf32>,
    } else {
    }
    %c0 = arith.constant 0 : index
    %c0_1 = arith.constant 0 : index
    %3 = vector.load %arg8[%c0, %c0_1] : memref<48x32xf32, #tpu.memory_space<vmem>>, vector<48x32xf32>
    %c0_2 = arith.constant 0 : index
    %c0_3 = arith.constant 0 : index
    %4 = vector.load %arg3[%c0_2, %c0_3] : memref<48x32xbf16, #tpu.memory_space<vmem>>, vector<48x32xbf16>
    %c0_4 = arith.constant 0 : index
    %c0_5 = arith.constant 0 : index
    %5 = vector.load %arg4[%c0_4, %c0_5] : memref<32x32xbf16, #tpu.memory_space<vmem>>, vector<32x32xbf16>
    %cst = arith.constant dense<0.000000e+00> : vector<48x32xf32>
    %6 = tpu.matmul %4, %5, %cst {dimension_numbers = #tpu.dot_dimension_numbers<[1], [0], [0], [1], [0, 0, 1, 1], [], []>} : vector<48x32xbf16>, vector<32x32xbf16>, vector<48x32xf32> -> vector<48x32xf32>
    %7 = arith.addf %3, %6 : vector<48x32xf32>
    %c0_6 = arith.constant 0 : index
    %c0_7 = arith.constant 0 : index
    %8 = vector.load %arg8[%c0_6, %c0_7] : memref<48x32xf32, #tpu.memory_space<vmem>>, vector<48x32xf32>
    tpu.vector_store %arg8[%c0_6, %c0_7], %7 {strides = array<i32>} : memref<48x32xf32, #tpu.memory_space<vmem>>, vector<48x32xf32>,
    %c0_i32_8 = arith.constant 0 : i32
    %9 = arith.cmpi eq, %arg2, %c0_i32_8 : i32
    %10 = arith.extui %9 : i1 to i32
    %c0_i32_9 = arith.constant 0 : i32
    %11 = arith.cmpi ne, %10, %c0_i32_9 : i32
    scf.if %11 {
      %c0_10 = arith.constant 0 : index
      %c0_11 = arith.constant 0 : index
      %12 = vector.load %arg8[%c0_10, %c0_11] : memref<48x32xf32, #tpu.memory_space<vmem>>, vector<48x32xf32>
      %c0_12 = arith.constant 0 : index
      %c0_13 = arith.constant 0 : index
      %13 = vector.load %arg5[%c0_12, %c0_13] : memref<1x32xf32, #tpu.memory_space<vmem>>, vector<1x32xf32>
      %14 = vector.broadcast %13 : vector<1x32xf32> to vector<48x32xf32>
      %15 = arith.addf %12, %14 : vector<48x32xf32>
      %c0_14 = arith.constant 0 : index
      %c0_15 = arith.constant 0 : index
      %16 = vector.load %arg6[%c0_14, %c0_15] : memref<48x32xbf16, #tpu.memory_space<vmem>>, vector<48x32xbf16>
      %17 = arith.extf %16 : vector<48x32xbf16> to vector<48x32xf32>
      %18 = arith.addf %15, %17 : vector<48x32xf32>
      %19 = arith.truncf %18 : vector<48x32xf32> to vector<48x32xbf16>
      %c0_16 = arith.constant 0 : index
      %c0_17 = arith.constant 0 : index
      %20 = vector.load %arg7[%c0_16, %c0_17] : memref<48x32xbf16, #tpu.memory_space<vmem>>, vector<48x32xbf16>
      tpu.vector_store %arg7[%c0_16, %c0_17], %19 {strides = array<i32>} : memref<48x32xbf16, #tpu.memory_space<vmem>>, vector<48x32xbf16>,
    } else {
    }
    return
  }
  func.func @transform_0(%arg0: i32, %arg1: i32, %arg2: i32) -> (i32, i32) {
    %c0_i32 = arith.constant 0 : i32
    return %arg0, %arg2 : i32, i32
  }
  func.func @transform_1(%arg0: i32, %arg1: i32, %arg2: i32) -> (i32, i32) {
    %c0_i32 = arith.constant 0 : i32
    return %arg2, %arg1 : i32, i32
  }
  func.func @transform_2(%arg0: i32, %arg1: i32, %arg2: i32) -> (i32, i32) {
    %c0_i32 = arith.constant 0 : i32
    %c0_i32_0 = arith.constant 0 : i32
    return %c0_i32, %arg1 : i32, i32
  }
  func.func @transform_3(%arg0: i32, %arg1: i32, %arg2: i32) -> (i32, i32) {
    %c0_i32 = arith.constant 0 : i32
    return %arg0, %arg1 : i32, i32
  }
  func.func @transform_4(%arg0: i32, %arg1: i32, %arg2: i32) -> (i32, i32) {
    %c0_i32 = arith.constant 0 : i32
    return %arg0, %arg1 : i32, i32
  }
}

module attributes {stable_mosaic.version = 11 : i64} {
  func.func @_ln_matmul_kernel(%arg0: i32, %arg1: i32, %arg2: memref<48x32xbf16, #tpu.memory_space<vmem>>, %arg3: memref<1x32xf32, #tpu.memory_space<vmem>>, %arg4: memref<1x32xf32, #tpu.memory_space<vmem>>, %arg5: memref<32x512xbf16, #tpu.memory_space<vmem>>, %arg6: memref<1x512xf32, #tpu.memory_space<vmem>>, %arg7: memref<48x512xbf16, #tpu.memory_space<vmem>>, %arg8: memref<48x32xbf16, #tpu.memory_space<vmem>>) attributes {dimension_semantics = [#tpu.dimension_semantics<parallel>, #tpu.dimension_semantics<arbitrary>], iteration_bounds = array<i64: 1, 4>, scalar_prefetch = 0 : i64, scratch_operands = 1 : i64, tpu.core_type = #tpu.core_type<tc>, window_params = [{transform_indices = @transform_0, window_bounds = array<i64: 48, 32>}, {pipeline_mode = #tpu.pipeline_mode<synchronous>, transform_indices = @transform_1, window_bounds = array<i64: 1, 32>}, {pipeline_mode = #tpu.pipeline_mode<synchronous>, transform_indices = @transform_2, window_bounds = array<i64: 1, 32>}, {transform_indices = @transform_3, window_bounds = array<i64: 32, 512>}, {transform_indices = @transform_4, window_bounds = array<i64: 1, 512>}, {transform_indices = @transform_5, window_bounds = array<i64: 48, 512>}]} {
    %c0_i32 = arith.constant 0 : i32
    %0 = arith.cmpi eq, %arg1, %c0_i32 : i32
    %1 = arith.extui %0 : i1 to i32
    %c0_i32_0 = arith.constant 0 : i32
    %2 = arith.cmpi ne, %1, %c0_i32_0 : i32
    scf.if %2 {
      %c0_9 = arith.constant 0 : index
      %c0_10 = arith.constant 0 : index
      %13 = vector.load %arg2[%c0_9, %c0_10] : memref<48x32xbf16, #tpu.memory_space<vmem>>, vector<48x32xbf16>
      %14 = arith.extf %13 : vector<48x32xbf16> to vector<48x32xf32>
      %cst_11 = arith.constant dense<0.000000e+00> : vector<48xf32>
      %15 = vector.multi_reduction <add>, %14, %cst_11 [1] : vector<48x32xf32> to vector<48xf32>
      %16 = vector.shape_cast %15 : vector<48xf32> to vector<48x1xf32>
      %cst_12 = arith.constant 3.200000e+01 : f32
      %17 = vector.broadcast %cst_12 : f32 to vector<48x1xf32>
      %18 = arith.divf %16, %17 : vector<48x1xf32>
      %19 = vector.broadcast %18 : vector<48x1xf32> to vector<48x32xf32>
      %20 = arith.subf %14, %19 : vector<48x32xf32>
      %21 = arith.mulf %20, %20 : vector<48x32xf32>
      %cst_13 = arith.constant dense<0.000000e+00> : vector<48xf32>
      %22 = vector.multi_reduction <add>, %21, %cst_13 [1] : vector<48x32xf32> to vector<48xf32>
      %23 = vector.shape_cast %22 : vector<48xf32> to vector<48x1xf32>
      %cst_14 = arith.constant 3.200000e+01 : f32
      %24 = vector.broadcast %cst_14 : f32 to vector<48x1xf32>
      %25 = arith.divf %23, %24 : vector<48x1xf32>
      %cst_15 = arith.constant 9.99999974E-6 : f32
      %26 = vector.broadcast %cst_15 : f32 to vector<48x1xf32>
      %27 = arith.addf %25, %26 : vector<48x1xf32>
      %28 = math.rsqrt %27 : vector<48x1xf32>
      %29 = vector.broadcast %28 : vector<48x1xf32> to vector<48x32xf32>
      %30 = arith.mulf %20, %29 : vector<48x32xf32>
      %c0_16 = arith.constant 0 : index
      %c0_17 = arith.constant 0 : index
      %31 = vector.load %arg3[%c0_16, %c0_17] : memref<1x32xf32, #tpu.memory_space<vmem>>, vector<1x32xf32>
      %32 = vector.broadcast %31 : vector<1x32xf32> to vector<48x32xf32>
      %33 = arith.mulf %30, %32 : vector<48x32xf32>
      %c0_18 = arith.constant 0 : index
      %c0_19 = arith.constant 0 : index
      %34 = vector.load %arg4[%c0_18, %c0_19] : memref<1x32xf32, #tpu.memory_space<vmem>>, vector<1x32xf32>
      %35 = vector.broadcast %34 : vector<1x32xf32> to vector<48x32xf32>
      %36 = arith.addf %33, %35 : vector<48x32xf32>
      %37 = arith.truncf %36 : vector<48x32xf32> to vector<48x32xbf16>
      %c0_20 = arith.constant 0 : index
      %c0_21 = arith.constant 0 : index
      %38 = vector.load %arg8[%c0_20, %c0_21] : memref<48x32xbf16, #tpu.memory_space<vmem>>, vector<48x32xbf16>
      tpu.vector_store %arg8[%c0_20, %c0_21], %37 {strides = array<i32>} : memref<48x32xbf16, #tpu.memory_space<vmem>>, vector<48x32xbf16>,
    } else {
    }
    %c0 = arith.constant 0 : index
    %c0_1 = arith.constant 0 : index
    %3 = vector.load %arg8[%c0, %c0_1] : memref<48x32xbf16, #tpu.memory_space<vmem>>, vector<48x32xbf16>
    %c0_2 = arith.constant 0 : index
    %c0_3 = arith.constant 0 : index
    %4 = vector.load %arg5[%c0_2, %c0_3] : memref<32x512xbf16, #tpu.memory_space<vmem>>, vector<32x512xbf16>
    %cst = arith.constant dense<0.000000e+00> : vector<48x512xf32>
    %5 = tpu.matmul %3, %4, %cst {dimension_numbers = #tpu.dot_dimension_numbers<[1], [0], [0], [1], [0, 0, 1, 1], [], []>} : vector<48x32xbf16>, vector<32x512xbf16>, vector<48x512xf32> -> vector<48x512xf32>
    %c0_4 = arith.constant 0 : index
    %c0_5 = arith.constant 0 : index
    %6 = vector.load %arg6[%c0_4, %c0_5] : memref<1x512xf32, #tpu.memory_space<vmem>>, vector<1x512xf32>
    %7 = vector.broadcast %6 : vector<1x512xf32> to vector<48x512xf32>
    %8 = arith.addf %5, %7 : vector<48x512xf32>
    %cst_6 = arith.constant 0.000000e+00 : f32
    %9 = vector.broadcast %cst_6 : f32 to vector<48x512xf32>
    %10 = arith.maximumf %8, %9 : vector<48x512xf32>
    %11 = arith.truncf %10 : vector<48x512xf32> to vector<48x512xbf16>
    %c0_7 = arith.constant 0 : index
    %c0_8 = arith.constant 0 : index
    %12 = vector.load %arg7[%c0_7, %c0_8] : memref<48x512xbf16, #tpu.memory_space<vmem>>, vector<48x512xbf16>
    tpu.vector_store %arg7[%c0_7, %c0_8], %11 {strides = array<i32>} : memref<48x512xbf16, #tpu.memory_space<vmem>>, vector<48x512xbf16>,
    return
  }
  func.func @transform_0(%arg0: i32, %arg1: i32) -> (i32, i32) {
    %c0_i32 = arith.constant 0 : i32
    %c0_i32_0 = arith.constant 0 : i32
    return %arg0, %c0_i32 : i32, i32
  }
  func.func @transform_1(%arg0: i32, %arg1: i32) -> (i32, i32) {
    %c0_i32 = arith.constant 0 : i32
    %c0_i32_0 = arith.constant 0 : i32
    %c0_i32_1 = arith.constant 0 : i32
    return %c0_i32, %c0_i32_0 : i32, i32
  }
  func.func @transform_2(%arg0: i32, %arg1: i32) -> (i32, i32) {
    %c0_i32 = arith.constant 0 : i32
    %c0_i32_0 = arith.constant 0 : i32
    %c0_i32_1 = arith.constant 0 : i32
    return %c0_i32, %c0_i32_0 : i32, i32
  }
  func.func @transform_3(%arg0: i32, %arg1: i32) -> (i32, i32) {
    %c0_i32 = arith.constant 0 : i32
    %c0_i32_0 = arith.constant 0 : i32
    return %c0_i32, %arg1 : i32, i32
  }
  func.func @transform_4(%arg0: i32, %arg1: i32) -> (i32, i32) {
    %c0_i32 = arith.constant 0 : i32
    %c0_i32_0 = arith.constant 0 : i32
    return %c0_i32, %arg1 : i32, i32
  }
  func.func @transform_5(%arg0: i32, %arg1: i32) -> (i32, i32) {
    %c0_i32 = arith.constant 0 : i32
    return %arg0, %arg1 : i32, i32
  }
}

module attributes {stable_mosaic.version = 11 : i64} {
  func.func @_matmul_res_kernel(%arg0: i32, %arg1: i32, %arg2: i32, %arg3: memref<48x512xbf16, #tpu.memory_space<vmem>>, %arg4: memref<512x32xbf16, #tpu.memory_space<vmem>>, %arg5: memref<1x32xf32, #tpu.memory_space<vmem>>, %arg6: memref<48x32xbf16, #tpu.memory_space<vmem>>, %arg7: memref<48x32xbf16, #tpu.memory_space<vmem>>, %arg8: memref<48x32xf32, #tpu.memory_space<vmem>>) attributes {dimension_semantics = [#tpu.dimension_semantics<parallel>, #tpu.dimension_semantics<parallel>, #tpu.dimension_semantics<arbitrary>], iteration_bounds = array<i64: 1, 1, 4>, scalar_prefetch = 0 : i64, scratch_operands = 1 : i64, tpu.core_type = #tpu.core_type<tc>, window_params = [{transform_indices = @transform_0, window_bounds = array<i64: 48, 512>}, {transform_indices = @transform_1, window_bounds = array<i64: 512, 32>}, {transform_indices = @transform_2, window_bounds = array<i64: 1, 32>}, {transform_indices = @transform_3, window_bounds = array<i64: 48, 32>}, {transform_indices = @transform_4, window_bounds = array<i64: 48, 32>}]} {
    %c0_i32 = arith.constant 0 : i32
    %0 = arith.cmpi eq, %arg2, %c0_i32 : i32
    %1 = arith.extui %0 : i1 to i32
    %c0_i32_0 = arith.constant 0 : i32
    %2 = arith.cmpi ne, %1, %c0_i32_0 : i32
    scf.if %2 {
      %cst_9 = arith.constant 0.000000e+00 : f32
      %12 = vector.broadcast %cst_9 : f32 to vector<48x32xf32>
      %c0_10 = arith.constant 0 : index
      %c0_11 = arith.constant 0 : index
      %13 = vector.load %arg8[%c0_10, %c0_11] : memref<48x32xf32, #tpu.memory_space<vmem>>, vector<48x32xf32>
      tpu.vector_store %arg8[%c0_10, %c0_11], %12 {strides = array<i32>} : memref<48x32xf32, #tpu.memory_space<vmem>>, vector<48x32xf32>,
    } else {
    }
    %c0 = arith.constant 0 : index
    %c0_1 = arith.constant 0 : index
    %3 = vector.load %arg8[%c0, %c0_1] : memref<48x32xf32, #tpu.memory_space<vmem>>, vector<48x32xf32>
    %c0_2 = arith.constant 0 : index
    %c0_3 = arith.constant 0 : index
    %4 = vector.load %arg3[%c0_2, %c0_3] : memref<48x512xbf16, #tpu.memory_space<vmem>>, vector<48x512xbf16>
    %c0_4 = arith.constant 0 : index
    %c0_5 = arith.constant 0 : index
    %5 = vector.load %arg4[%c0_4, %c0_5] : memref<512x32xbf16, #tpu.memory_space<vmem>>, vector<512x32xbf16>
    %cst = arith.constant dense<0.000000e+00> : vector<48x32xf32>
    %6 = tpu.matmul %4, %5, %cst {dimension_numbers = #tpu.dot_dimension_numbers<[1], [0], [0], [1], [0, 0, 1, 1], [], []>} : vector<48x512xbf16>, vector<512x32xbf16>, vector<48x32xf32> -> vector<48x32xf32>
    %7 = arith.addf %3, %6 : vector<48x32xf32>
    %c0_6 = arith.constant 0 : index
    %c0_7 = arith.constant 0 : index
    %8 = vector.load %arg8[%c0_6, %c0_7] : memref<48x32xf32, #tpu.memory_space<vmem>>, vector<48x32xf32>
    tpu.vector_store %arg8[%c0_6, %c0_7], %7 {strides = array<i32>} : memref<48x32xf32, #tpu.memory_space<vmem>>, vector<48x32xf32>,
    %c3_i32 = arith.constant 3 : i32
    %9 = arith.cmpi eq, %arg2, %c3_i32 : i32
    %10 = arith.extui %9 : i1 to i32
    %c0_i32_8 = arith.constant 0 : i32
    %11 = arith.cmpi ne, %10, %c0_i32_8 : i32
    scf.if %11 {
      %c0_9 = arith.constant 0 : index
      %c0_10 = arith.constant 0 : index
      %12 = vector.load %arg8[%c0_9, %c0_10] : memref<48x32xf32, #tpu.memory_space<vmem>>, vector<48x32xf32>
      %c0_11 = arith.constant 0 : index
      %c0_12 = arith.constant 0 : index
      %13 = vector.load %arg5[%c0_11, %c0_12] : memref<1x32xf32, #tpu.memory_space<vmem>>, vector<1x32xf32>
      %14 = vector.broadcast %13 : vector<1x32xf32> to vector<48x32xf32>
      %15 = arith.addf %12, %14 : vector<48x32xf32>
      %c0_13 = arith.constant 0 : index
      %c0_14 = arith.constant 0 : index
      %16 = vector.load %arg6[%c0_13, %c0_14] : memref<48x32xbf16, #tpu.memory_space<vmem>>, vector<48x32xbf16>
      %17 = arith.extf %16 : vector<48x32xbf16> to vector<48x32xf32>
      %18 = arith.addf %15, %17 : vector<48x32xf32>
      %19 = arith.truncf %18 : vector<48x32xf32> to vector<48x32xbf16>
      %c0_15 = arith.constant 0 : index
      %c0_16 = arith.constant 0 : index
      %20 = vector.load %arg7[%c0_15, %c0_16] : memref<48x32xbf16, #tpu.memory_space<vmem>>, vector<48x32xbf16>
      tpu.vector_store %arg7[%c0_15, %c0_16], %19 {strides = array<i32>} : memref<48x32xbf16, #tpu.memory_space<vmem>>, vector<48x32xbf16>,
    } else {
    }
    return
  }
  func.func @transform_0(%arg0: i32, %arg1: i32, %arg2: i32) -> (i32, i32) {
    %c0_i32 = arith.constant 0 : i32
    return %arg0, %arg2 : i32, i32
  }
  func.func @transform_1(%arg0: i32, %arg1: i32, %arg2: i32) -> (i32, i32) {
    %c0_i32 = arith.constant 0 : i32
    return %arg2, %arg1 : i32, i32
  }
  func.func @transform_2(%arg0: i32, %arg1: i32, %arg2: i32) -> (i32, i32) {
    %c0_i32 = arith.constant 0 : i32
    %c0_i32_0 = arith.constant 0 : i32
    return %c0_i32, %arg1 : i32, i32
  }
  func.func @transform_3(%arg0: i32, %arg1: i32, %arg2: i32) -> (i32, i32) {
    %c0_i32 = arith.constant 0 : i32
    return %arg0, %arg1 : i32, i32
  }
  func.func @transform_4(%arg0: i32, %arg1: i32, %arg2: i32) -> (i32, i32) {
    %c0_i32 = arith.constant 0 : i32
    return %arg0, %arg1 : i32, i32
  }
}

module attributes {stable_mosaic.version = 11 : i64} {
  func.func @_ln_matmul_kernel(%arg0: i32, %arg1: i32, %arg2: memref<16x32xbf16, #tpu.memory_space<vmem>>, %arg3: memref<1x32xf32, #tpu.memory_space<vmem>>, %arg4: memref<1x32xf32, #tpu.memory_space<vmem>>, %arg5: memref<32x10xbf16, #tpu.memory_space<vmem>>, %arg6: memref<1x10xf32, #tpu.memory_space<vmem>>, %arg7: memref<16x10xf32, #tpu.memory_space<vmem>>, %arg8: memref<16x32xbf16, #tpu.memory_space<vmem>>) attributes {dimension_semantics = [#tpu.dimension_semantics<parallel>, #tpu.dimension_semantics<arbitrary>], iteration_bounds = array<i64: 1, 1>, scalar_prefetch = 0 : i64, scratch_operands = 1 : i64, tpu.core_type = #tpu.core_type<tc>, window_params = [{transform_indices = @transform_0, window_bounds = array<i64: 16, 32>}, {pipeline_mode = #tpu.pipeline_mode<synchronous>, transform_indices = @transform_1, window_bounds = array<i64: 1, 32>}, {pipeline_mode = #tpu.pipeline_mode<synchronous>, transform_indices = @transform_2, window_bounds = array<i64: 1, 32>}, {transform_indices = @transform_3, window_bounds = array<i64: 32, 10>}, {transform_indices = @transform_4, window_bounds = array<i64: 1, 10>}, {transform_indices = @transform_5, window_bounds = array<i64: 16, 10>}]} {
    %c0_i32 = arith.constant 0 : i32
    %0 = arith.cmpi eq, %arg1, %c0_i32 : i32
    %1 = arith.extui %0 : i1 to i32
    %c0_i32_0 = arith.constant 0 : i32
    %2 = arith.cmpi ne, %1, %c0_i32_0 : i32
    scf.if %2 {
      %c0_8 = arith.constant 0 : index
      %c0_9 = arith.constant 0 : index
      %10 = vector.load %arg2[%c0_8, %c0_9] : memref<16x32xbf16, #tpu.memory_space<vmem>>, vector<16x32xbf16>
      %11 = arith.extf %10 : vector<16x32xbf16> to vector<16x32xf32>
      %cst_10 = arith.constant dense<0.000000e+00> : vector<16xf32>
      %12 = vector.multi_reduction <add>, %11, %cst_10 [1] : vector<16x32xf32> to vector<16xf32>
      %13 = vector.shape_cast %12 : vector<16xf32> to vector<16x1xf32>
      %cst_11 = arith.constant 3.200000e+01 : f32
      %14 = vector.broadcast %cst_11 : f32 to vector<16x1xf32>
      %15 = arith.divf %13, %14 : vector<16x1xf32>
      %16 = vector.broadcast %15 : vector<16x1xf32> to vector<16x32xf32>
      %17 = arith.subf %11, %16 : vector<16x32xf32>
      %18 = arith.mulf %17, %17 : vector<16x32xf32>
      %cst_12 = arith.constant dense<0.000000e+00> : vector<16xf32>
      %19 = vector.multi_reduction <add>, %18, %cst_12 [1] : vector<16x32xf32> to vector<16xf32>
      %20 = vector.shape_cast %19 : vector<16xf32> to vector<16x1xf32>
      %cst_13 = arith.constant 3.200000e+01 : f32
      %21 = vector.broadcast %cst_13 : f32 to vector<16x1xf32>
      %22 = arith.divf %20, %21 : vector<16x1xf32>
      %cst_14 = arith.constant 9.99999974E-6 : f32
      %23 = vector.broadcast %cst_14 : f32 to vector<16x1xf32>
      %24 = arith.addf %22, %23 : vector<16x1xf32>
      %25 = math.rsqrt %24 : vector<16x1xf32>
      %26 = vector.broadcast %25 : vector<16x1xf32> to vector<16x32xf32>
      %27 = arith.mulf %17, %26 : vector<16x32xf32>
      %c0_15 = arith.constant 0 : index
      %c0_16 = arith.constant 0 : index
      %28 = vector.load %arg3[%c0_15, %c0_16] : memref<1x32xf32, #tpu.memory_space<vmem>>, vector<1x32xf32>
      %29 = vector.broadcast %28 : vector<1x32xf32> to vector<16x32xf32>
      %30 = arith.mulf %27, %29 : vector<16x32xf32>
      %c0_17 = arith.constant 0 : index
      %c0_18 = arith.constant 0 : index
      %31 = vector.load %arg4[%c0_17, %c0_18] : memref<1x32xf32, #tpu.memory_space<vmem>>, vector<1x32xf32>
      %32 = vector.broadcast %31 : vector<1x32xf32> to vector<16x32xf32>
      %33 = arith.addf %30, %32 : vector<16x32xf32>
      %34 = arith.truncf %33 : vector<16x32xf32> to vector<16x32xbf16>
      %c0_19 = arith.constant 0 : index
      %c0_20 = arith.constant 0 : index
      %35 = vector.load %arg8[%c0_19, %c0_20] : memref<16x32xbf16, #tpu.memory_space<vmem>>, vector<16x32xbf16>
      tpu.vector_store %arg8[%c0_19, %c0_20], %34 {strides = array<i32>} : memref<16x32xbf16, #tpu.memory_space<vmem>>, vector<16x32xbf16>,
    } else {
    }
    %c0 = arith.constant 0 : index
    %c0_1 = arith.constant 0 : index
    %3 = vector.load %arg8[%c0, %c0_1] : memref<16x32xbf16, #tpu.memory_space<vmem>>, vector<16x32xbf16>
    %c0_2 = arith.constant 0 : index
    %c0_3 = arith.constant 0 : index
    %4 = vector.load %arg5[%c0_2, %c0_3] : memref<32x10xbf16, #tpu.memory_space<vmem>>, vector<32x10xbf16>
    %cst = arith.constant dense<0.000000e+00> : vector<16x10xf32>
    %5 = tpu.matmul %3, %4, %cst {dimension_numbers = #tpu.dot_dimension_numbers<[1], [0], [0], [1], [0, 0, 1, 1], [], []>} : vector<16x32xbf16>, vector<32x10xbf16>, vector<16x10xf32> -> vector<16x10xf32>
    %c0_4 = arith.constant 0 : index
    %c0_5 = arith.constant 0 : index
    %6 = vector.load %arg6[%c0_4, %c0_5] : memref<1x10xf32, #tpu.memory_space<vmem>>, vector<1x10xf32>
    %7 = vector.broadcast %6 : vector<1x10xf32> to vector<16x10xf32>
    %8 = arith.addf %5, %7 : vector<16x10xf32>
    %c0_6 = arith.constant 0 : index
    %c0_7 = arith.constant 0 : index
    %9 = vector.load %arg7[%c0_6, %c0_7] : memref<16x10xf32, #tpu.memory_space<vmem>>, vector<16x10xf32>
    tpu.vector_store %arg7[%c0_6, %c0_7], %8 {strides = array<i32>} : memref<16x10xf32, #tpu.memory_space<vmem>>, vector<16x10xf32>,
    return
  }
  func.func @transform_0(%arg0: i32, %arg1: i32) -> (i32, i32) {
    %c0_i32 = arith.constant 0 : i32
    %c0_i32_0 = arith.constant 0 : i32
    return %arg0, %c0_i32 : i32, i32
  }
  func.func @transform_1(%arg0: i32, %arg1: i32) -> (i32, i32) {
    %c0_i32 = arith.constant 0 : i32
    %c0_i32_0 = arith.constant 0 : i32
    %c0_i32_1 = arith.constant 0 : i32
    return %c0_i32, %c0_i32_0 : i32, i32
  }
  func.func @transform_2(%arg0: i32, %arg1: i32) -> (i32, i32) {
    %c0_i32 = arith.constant 0 : i32
    %c0_i32_0 = arith.constant 0 : i32
    %c0_i32_1 = arith.constant 0 : i32
    return %c0_i32, %c0_i32_0 : i32, i32
  }
  func.func @transform_3(%arg0: i32, %arg1: i32) -> (i32, i32) {
    %c0_i32 = arith.constant 0 : i32
    %c0_i32_0 = arith.constant 0 : i32
    return %c0_i32, %arg1 : i32, i32
  }
  func.func @transform_4(%arg0: i32, %arg1: i32) -> (i32, i32) {
    %c0_i32 = arith.constant 0 : i32
    %c0_i32_0 = arith.constant 0 : i32
    return %c0_i32, %arg1 : i32, i32
  }
  func.func @transform_5(%arg0: i32, %arg1: i32) -> (i32, i32) {
    %c0_i32 = arith.constant 0 : i32
    return %arg0, %arg1 : i32, i32
  }
}

</mosaic_0001>

<llo_original>
// kernel: vit_forward.12
$region0: #{vit_forward.12}
  #allocation0 [shape = 'u32[]', space=smem, size = 0x4, offset = 0x4, fixed_abs, tag = 'smem constant byte address 0x4 - core index']
  #allocation1 [shape = 'u32[72,128]{1,0:T(1,128)}', space=vmem, size = 0x9000, scoped, tag = 'internal scratch']
  #allocation2 [shape = 'f32[32,32]{1,0:T(8,128)}', space=vmem, size = 0x4000, scoped, tag = 'scratch operand']
  %s0 = inlined_call_operand.vmem [shape: bf16[32,48], index: 0, kind: input, shape index: {}]
  %s1 = inlined_call_operand.vmem [shape: bf16[48,32], index: 1, kind: input, shape index: {}]
  %s2 = inlined_call_operand.vmem [shape: f32[1,32], index: 2, kind: input, shape index: {}]
  %s3 = inlined_call_operand.vmem [shape: bf16[32,32], index: 3, kind: output, shape index: {}]
  %s4 = sld [smem:[#allocation0]]
  $region30: #{vit_forward.12} parent=0
    _
  %s6 = ssub.s32 1, %s4
  %s7 = scalar_select 0, %s6, %s4
  // Predicated region
  $region2: #{vit_forward.12} parent=0 // pred_check
    _
  $region3: #{vit_forward.12} parent=0 // pred_check_branch
    %9 = sbr.rel (0) target = $region5
  $region4: #{vit_forward.12} parent=0 // pred_region
    _
  $region5: #{vit_forward.12} parent=0 // pred_fallthru
    _
  // Predicated region
  $region6: #{vit_forward.12} parent=0 // pred_check
    _
  $region7: #{vit_forward.12} parent=0 // pred_check_branch
    %11 = sbr.rel (0) target = $region9
  $region8: #{vit_forward.12} parent=0 // pred_region
    _
  $region9: #{vit_forward.12} parent=0 // pred_fallthru
    _
  // Predicated region
  $region10: #{vit_forward.12} parent=0 // pred_check
    _
  $region11: #{vit_forward.12} parent=0 // pred_check_branch
    %13 = sbr.rel (0) target = $region13
  $region12: #{vit_forward.12} parent=0 // pred_region
    _
  $region13: #{vit_forward.12} parent=0 // pred_fallthru
    _
  %p15 = scmp.eq.s32.totalorder 0, 0
  // Predicated region
  $region14: #{vit_forward.12} parent=0 // pred_check
    %p16 = pneg %p15
  $region15: #{vit_forward.12} parent=0 // pred_check_branch
    %18 = sbr.rel (%p16) target = $region17
  $region16: #{vit_forward.12} parent=0 // pred_region
    %vm19 = vcmask 261120
    %20 = vst.msk [vmem:[#allocation2] sm:$0xff] %vm19, 0.0
    %21 = vst.msk [vmem:[#allocation2 + $0x8] sm:$0xff] %vm19, 0.0
    %22 = vst.msk [vmem:[#allocation2 + $0x10] sm:$0xff] %vm19, 0.0
    %23 = vst.msk [vmem:[#allocation2 + $0x18] sm:$0xff] %vm19, 0.0
  $region17: #{vit_forward.12} parent=0 // pred_fallthru
    _
  %v24 = vld [vmem:[#allocation2] sm:$0xff]
  %v25 = vld [vmem:[#allocation2 + $0x8] sm:$0xff]
  %v26 = vld [vmem:[#allocation2 + $0x10] sm:$0xff]
  %v27 = vld [vmem:[#allocation2 + $0x18] sm:$0xff]
  %v28 = vld [vmem:[%s0] sm:$0xf]
  %v29 = vld [vmem:[%s0 + $0x4] sm:$0xf]
  %v30 = vld [vmem:[%s0 + $0x8] sm:$0xf]
  %v31 = vld [vmem:[%s0 + $0xc] sm:$0xf]
  %v32 = vld [vmem:[%s1] sm:$0xf]
  %v33 = vld [vmem:[%s1 + $0x4] sm:$0xf]
  %v34 = vld [vmem:[%s1 + $0x8] sm:$0xf]
  %v35 = vld [vmem:[%s1 + $0xc] sm:$0xf]
  %v36 = vld [vmem:[%s1 + $0x10] sm:$0xf]
  %v37 = vld [vmem:[%s1 + $0x14] sm:$0xf]
  %v42 = vunpack.c.l.b16 %v28
  %v43 = vunpack.c.l.b16 %v29
  %v44 = vunpack.c.l.b16 %v30
  %v45 = vunpack.c.l.b16 %v31
  %v46 = vpack.c.b16 %v43, %v42
  %v47 = vpack.c.b16 %v45, %v44
  %v54 = vunpack.c.l.b16 %v32
  %v55 = vunpack.c.l.b16 %v33
  %v56 = vunpack.c.l.b16 %v34
  %v57 = vunpack.c.l.b16 %v35
  %v58 = vunpack.c.l.b16 %v36
  %v59 = vunpack.c.l.b16 %v37
  %v60 = vpack.c.b16 %v55, %v54
  %v61 = vpack.c.b16 %v57, %v56
  %v62 = vpack.c.b16 %v59, %v58
  %vm66 = vcmask 392192
  %v68 = vsel %vm66, %v46, 0
  %v71 = vsel %vm66, %v47, 0
  %73 = vmatpush.bf16.msra.mxu0 0
  %74 = vmatpush.bf16.msra.mxu0 0
  %75 = vmatpush.bf16.msra.mxu0 0
  %76 = vmatpush.bf16.msra.mxu0 0
  %77 = vmatpush.bf16.msra.mxu0 0
  %78 = vmatpush.bf16.msra.mxu0 %v62
  %79 = vmatpush.bf16.msra.mxu0 %v61
  %80 = vmatpush.bf16.msra.mxu0 %v60
  %81 = vmatmul.bf16.gmra.mxu0 %v68
  %v82 = vpop.f32.mrf.mxu0
  %v83 = vadd.f32 0.0, %v82
  %v84 = vpop.f32.mrf.mxu0
  %v85 = vadd.f32 0.0, %v84
  %86 = vmatmul.bf16.gmra.mxu0 %v71
  %v87 = vpop.f32.mrf.mxu0
  %v88 = vadd.f32 0.0, %v87
  %v89 = vpop.f32.mrf.mxu0
  %v90 = vadd.f32 0.0, %v89
  %91 = vdwg.mxu0
  %v92 = vadd.f32 %v24, %v83
  %v93 = vadd.f32 %v25, %v85
  %v94 = vadd.f32 %v26, %v88
  %v95 = vadd.f32 %v27, %v90
  %vm96 = vcmask 261120
  %97 = vst.msk [vmem:[#allocation2] sm:$0xff] %vm96, %v92
  %98 = vst.msk [vmem:[#allocation2 + $0x8] sm:$0xff] %vm96, %v93
  %99 = vst.msk [vmem:[#allocation2 + $0x10] sm:$0xff] %vm96, %v94
  %100 = vst.msk [vmem:[#allocation2 + $0x18] sm:$0xff] %vm96, %v95
  // Predicated region
  $region18: #{vit_forward.12} parent=0 // pred_check
    %p101 = pneg %p15
  $region19: #{vit_forward.12} parent=0 // pred_check_branch
    %103 = sbr.rel (%p101) target = $region21
  $region20: #{vit_forward.12} parent=0 // pred_region
    %v104 = vld [vmem:[#allocation2] sm:$0xff]
    %v105 = vld [vmem:[#allocation2 + $0x8] sm:$0xff]
    %v106 = vld [vmem:[#allocation2 + $0x10] sm:$0xff]
    %v107 = vld [vmem:[#allocation2 + $0x18] sm:$0xff]
    %v108 = vld [vmem:[%s2] sm:$0x1]
    %v110 = vperm.slane %v108, 0
    %v112 = vadd.f32 %v104, %v110
    %v113 = vadd.f32 %v105, %v110
    %v114 = vadd.f32 %v106, %v110
    %v115 = vadd.f32 %v107, %v110
    %v116 = vpack.c.bf16 %v112, %v112
    %v117 = vpack.c.bf16 %v113, %v113
    %v118 = vpack.c.bf16 %v114, %v114
    %v119 = vpack.c.bf16 %v115, %v115
    %vm120 = vcmask 257024
    %121 = vst.msk [vmem:[%s3] sm:$0xf] %vm120, %v116
    %122 = vst.msk [vmem:[%s3 + $0x4] sm:$0xf] %vm120, %v117
    %123 = vst.msk [vmem:[%s3 + $0x8] sm:$0xf] %vm120, %v118
    %124 = vst.msk [vmem:[%s3 + $0xc] sm:$0xf] %vm120, %v119
  $region21: #{vit_forward.12} parent=0 // pred_fallthru
    _
  // Predicated region
  $region22: #{vit_forward.12} parent=0 // pred_check
    _
  $region23: #{vit_forward.12} parent=0 // pred_check_branch
    %126 = sbr.rel (0) target = $region25
  $region24: #{vit_forward.12} parent=0 // pred_region
    _
  $region25: #{vit_forward.12} parent=0 // pred_fallthru
    _
  // Predicated region
  $region26: #{vit_forward.12} parent=0 // pred_check
    _
  $region27: #{vit_forward.12} parent=0 // pred_check_branch
    %128 = sbr.rel (0) target = $region29
  $region28: #{vit_forward.12} parent=0 // pred_region
    _
  $region29: #{vit_forward.12} parent=0 // pred_fallthru
    _

// kernel: vit_forward.13
$region0: #{vit_forward.13}
  #allocation0 [shape = 'u32[]', space=smem, size = 0x4, offset = 0x4, fixed_abs, tag = 'smem constant byte address 0x4 - core index']
  #allocation1 [shape = 'u32[72,128]{1,0:T(1,128)}', space=vmem, size = 0x9000, scoped, tag = 'internal scratch']
  #allocation2 [shape = 'bf16[48,32]{1,0:T(8,128)(2,1)}', space=vmem, size = 0x3000, scoped, tag = 'scratch operand']
  %s0 = inlined_call_operand.vmem [shape: bf16[48,32], index: 0, kind: input, shape index: {}]
  %s1 = inlined_call_operand.vmem [shape: f32[1,32], index: 1, kind: input, shape index: {}]
  %s2 = inlined_call_operand.vmem [shape: f32[1,32], index: 2, kind: input, shape index: {}]
  %s3 = inlined_call_operand.vmem [shape: bf16[32,96], index: 3, kind: input, shape index: {}]
  %s4 = inlined_call_operand.vmem [shape: f32[1,96], index: 4, kind: input, shape index: {}]
  %s5 = inlined_call_operand.vmem [shape: bf16[48,96], index: 5, kind: output, shape index: {}]
  %s6 = sld [smem:[#allocation0]]
  $region34: #{vit_forward.13} parent=0
    _
  %s8 = ssub.s32 1, %s6
  %s9 = scalar_select 0, %s8, %s6
  // Predicated region
  $region2: #{vit_forward.13} parent=0 // pred_check
    _
  $region3: #{vit_forward.13} parent=0 // pred_check_branch
    %11 = sbr.rel (0) target = $region5
  $region4: #{vit_forward.13} parent=0 // pred_region
    _
  $region5: #{vit_forward.13} parent=0 // pred_fallthru
    _
  // Predicated region
  $region6: #{vit_forward.13} parent=0 // pred_check
    _
  $region7: #{vit_forward.13} parent=0 // pred_check_branch
    %13 = sbr.rel (0) target = $region9
  $region8: #{vit_forward.13} parent=0 // pred_region
    _
  $region9: #{vit_forward.13} parent=0 // pred_fallthru
    _
  // Predicated region
  $region10: #{vit_forward.13} parent=0 // pred_check
    _
  $region11: #{vit_forward.13} parent=0 // pred_check_branch
    %15 = sbr.rel (0) target = $region13
  $region12: #{vit_forward.13} parent=0 // pred_region
    _
  $region13: #{vit_forward.13} parent=0 // pred_fallthru
    _
  // Predicated region
  $region14: #{vit_forward.13} parent=0 // pred_check
    _
  $region15: #{vit_forward.13} parent=0 // pred_check_branch
    %17 = sbr.rel (0) target = $region17
  $region16: #{vit_forward.13} parent=0 // pred_region
    _
  $region17: #{vit_forward.13} parent=0 // pred_fallthru
    _
  // Predicated region
  $region18: #{vit_forward.13} parent=0 // pred_check
    _
  $region19: #{vit_forward.13} parent=0 // pred_check_branch
    %19 = sbr.rel (0) target = $region21
  $region20: #{vit_forward.13} parent=0 // pred_region
    _
  $region21: #{vit_forward.13} parent=0 // pred_fallthru
    _
  %p21 = scmp.eq.s32.totalorder 0, 0
  // Predicated region
  $region22: #{vit_forward.13} parent=0 // pred_check
    %p22 = pneg %p21
  $region23: #{vit_forward.13} parent=0 // pred_check_branch
    %24 = sbr.rel (%p22) target = $region25
  $region24: #{vit_forward.13} parent=0 // pred_region
    %v25 = vld [vmem:[%s0] sm:$0xf]
    %v26 = vld [vmem:[%s0 + $0x4] sm:$0xf]
    %v27 = vld [vmem:[%s0 + $0x8] sm:$0xf]
    %v28 = vld [vmem:[%s0 + $0xc] sm:$0xf]
    %v29 = vld [vmem:[%s0 + $0x10] sm:$0xf]
    %v30 = vld [vmem:[%s0 + $0x14] sm:$0xf]
    %v31 = vunpack.c.l.bf16 %v25
    %v32 = vunpack.c.l.bf16 %v26
    %v33 = vunpack.c.l.bf16 %v27
    %v34 = vunpack.c.l.bf16 %v28
    %v35 = vunpack.c.l.bf16 %v29
    %v36 = vunpack.c.l.bf16 %v30
    %vm37 = vcmask 261120
    %v38 = vsel %vm37, %v31, 0.0
    %39 = vadd.xlane.f32.xlu0 %v38
    %v40 = vpop.xlane.xlu0 %39
    %v41 = vsel %vm37, %v32, 0.0
    %42 = vadd.xlane.f32.xlu0 %v41
    %v43 = vpop.xlane.xlu0 %42
    %v44 = vsel %vm37, %v33, 0.0
    %45 = vadd.xlane.f32.xlu0 %v44
    %v46 = vpop.xlane.xlu0 %45
    %v47 = vsel %vm37, %v34, 0.0
    %48 = vadd.xlane.f32.xlu0 %v47
    %v49 = vpop.xlane.xlu0 %48
    %v50 = vsel %vm37, %v35, 0.0
    %51 = vadd.xlane.f32.xlu0 %v50
    %v52 = vpop.xlane.xlu0 %51
    %v53 = vsel %vm37, %v36, 0.0
    %54 = vadd.xlane.f32.xlu0 %v53
    %v55 = vpop.xlane.xlu0 %54
    %v56 = vrcp.pop 32.0
    %v57 = vmul.f32 32.0, %v56
    %v58 = vsub.f32 1.0, %v57
    %v59 = vmul.f32 %v56, %v58
    %v60 = vadd.f32 %v56, %v59
    %vm61 = vweird.f32 %v56
    %v62 = vsel %vm61, %v56, %v60
    %v63 = vmul.f32 %v40, %v62
    %v64 = vmul.f32 %v43, %v62
    %v65 = vmul.f32 %v46, %v62
    %v66 = vmul.f32 %v49, %v62
    %v67 = vmul.f32 %v52, %v62
    %v68 = vmul.f32 %v55, %v62
    %v69 = vsub.f32 %v31, %v63
    %v70 = vsub.f32 %v32, %v64
    %v71 = vsub.f32 %v33, %v65
    %v72 = vsub.f32 %v34, %v66
    %v73 = vsub.f32 %v35, %v67
    %v74 = vsub.f32 %v36, %v68
    %v75 = vmul.f32 %v69, %v69
    %v76 = vmul.f32 %v70, %v70
    %v77 = vmul.f32 %v71, %v71
    %v78 = vmul.f32 %v72, %v72
    %v79 = vmul.f32 %v73, %v73
    %v80 = vmul.f32 %v74, %v74
    %v81 = vsel %vm37, %v75, 0.0
    %82 = vadd.xlane.f32.xlu0 %v81
    %v83 = vpop.xlane.xlu0 %82
    %v84 = vsel %vm37, %v76, 0.0
    %85 = vadd.xlane.f32.xlu0 %v84
    %v86 = vpop.xlane.xlu0 %85
    %v87 = vsel %vm37, %v77, 0.0
    %88 = vadd.xlane.f32.xlu0 %v87
    %v89 = vpop.xlane.xlu0 %88
    %v90 = vsel %vm37, %v78, 0.0
    %91 = vadd.xlane.f32.xlu0 %v90
    %v92 = vpop.xlane.xlu0 %91
    %v93 = vsel %vm37, %v79, 0.0
    %94 = vadd.xlane.f32.xlu0 %v93
    %v95 = vpop.xlane.xlu0 %94
    %v96 = vsel %vm37, %v80, 0.0
    %97 = vadd.xlane.f32.xlu0 %v96
    %v98 = vpop.xlane.xlu0 %97
    %v99 = vmul.f32 %v83, %v62
    %v100 = vmul.f32 %v86, %v62
    %v101 = vmul.f32 %v89, %v62
    %v102 = vmul.f32 %v92, %v62
    %v103 = vmul.f32 %v95, %v62
    %v104 = vmul.f32 %v98, %v62
    %v105 = vadd.f32 %v99, 1e-05
    %v106 = vadd.f32 %v100, 1e-05
    %v107 = vadd.f32 %v101, 1e-05
    %v108 = vadd.f32 %v102, 1e-05
    %v109 = vadd.f32 %v103, 1e-05
    %v110 = vadd.f32 %v104, 1e-05
    %v111 = vrsqrt.pop %v105
    %v112 = vmul.f32 %v111, %v105
    %v113 = vmul.f32 %v112, %v111
    %v114 = vmul.f32 0.5, %v113
    %v115 = vsub.f32 1.5, %v114
    %v116 = vmul.f32 %v111, %v115
    %vm117 = vweird.f32 %v105
    %vm118 = vweird.f32 %v111
    %vm119 = vmor %vm117, %vm118
    %v120 = vsel %vm119, %v111, %v116
    %v121 = vrsqrt.pop %v106
    %v122 = vmul.f32 %v121, %v106
    %v123 = vmul.f32 %v122, %v121
    %v124 = vmul.f32 0.5, %v123
    %v125 = vsub.f32 1.5, %v124
    %v126 = vmul.f32 %v121, %v125
    %vm127 = vweird.f32 %v106
    %vm128 = vweird.f32 %v121
    %vm129 = vmor %vm127, %vm128
    %v130 = vsel %vm129, %v121, %v126
    %v131 = vrsqrt.pop %v107
    %v132 = vmul.f32 %v131, %v107
    %v133 = vmul.f32 %v132, %v131
    %v134 = vmul.f32 0.5, %v133
    %v135 = vsub.f32 1.5, %v134
    %v136 = vmul.f32 %v131, %v135
    %vm137 = vweird.f32 %v107
    %vm138 = vweird.f32 %v131
    %vm139 = vmor %vm137, %vm138
    %v140 = vsel %vm139, %v131, %v136
    %v141 = vrsqrt.pop %v108
    %v142 = vmul.f32 %v141, %v108
    %v143 = vmul.f32 %v142, %v141
    %v144 = vmul.f32 0.5, %v143
    %v145 = vsub.f32 1.5, %v144
    %v146 = vmul.f32 %v141, %v145
    %vm147 = vweird.f32 %v108
    %vm148 = vweird.f32 %v141
    %vm149 = vmor %vm147, %vm148
    %v150 = vsel %vm149, %v141, %v146
    %v151 = vrsqrt.pop %v109
    %v152 = vmul.f32 %v151, %v109
    %v153 = vmul.f32 %v152, %v151
    %v154 = vmul.f32 0.5, %v153
    %v155 = vsub.f32 1.5, %v154
    %v156 = vmul.f32 %v151, %v155
    %vm157 = vweird.f32 %v109
    %vm158 = vweird.f32 %v151
    %vm159 = vmor %vm157, %vm158
    %v160 = vsel %vm159, %v151, %v156
    %v161 = vrsqrt.pop %v110
    %v162 = vmul.f32 %v161, %v110
    %v163 = vmul.f32 %v162, %v161
    %v164 = vmul.f32 0.5, %v163
    %v165 = vsub.f32 1.5, %v164
    %v166 = vmul.f32 %v161, %v165
    %vm167 = vweird.f32 %v110
    %vm168 = vweird.f32 %v161
    %vm169 = vmor %vm167, %vm168
    %v170 = vsel %vm169, %v161, %v166
    %v171 = vmul.f32 %v69, %v120
    %v172 = vmul.f32 %v70, %v130
    %v173 = vmul.f32 %v71, %v140
    %v174 = vmul.f32 %v72, %v150
    %v175 = vmul.f32 %v73, %v160
    %v176 = vmul.f32 %v74, %v170
    %v177 = vld [vmem:[%s1] sm:$0x1]
    %v179 = vperm.slane %v177, 0
    %v181 = vmul.f32 %v171, %v179
    %v182 = vmul.f32 %v172, %v179
    %v183 = vmul.f32 %v173, %v179
    %v184 = vmul.f32 %v174, %v179
    %v185 = vmul.f32 %v175, %v179
    %v186 = vmul.f32 %v176, %v179
    %v187 = vld [vmem:[%s2] sm:$0x1]
    %v189 = vperm.slane %v187, 0
    %v191 = vadd.f32 %v181, %v189
    %v192 = vadd.f32 %v182, %v189
    %v193 = vadd.f32 %v183, %v189
    %v194 = vadd.f32 %v184, %v189
    %v195 = vadd.f32 %v185, %v189
    %v196 = vadd.f32 %v186, %v189
    %v197 = vpack.c.bf16 %v191, %v191
    %v198 = vpack.c.bf16 %v192, %v192
    %v199 = vpack.c.bf16 %v193, %v193
    %v200 = vpack.c.bf16 %v194, %v194
    %v201 = vpack.c.bf16 %v195, %v195
    %v202 = vpack.c.bf16 %v196, %v196
    %vm203 = vcmask 257024
    %204 = vst.msk [vmem:[#allocation2] sm:$0xf] %vm203, %v197
    %205 = vst.msk [vmem:[#allocation2 + $0x4] sm:$0xf] %vm203, %v198
    %206 = vst.msk [vmem:[#allocation2 + $0x8] sm:$0xf] %vm203, %v199
    %207 = vst.msk [vmem:[#allocation2 + $0xc] sm:$0xf] %vm203, %v200
    %208 = vst.msk [vmem:[#allocation2 + $0x10] sm:$0xf] %vm203, %v201
    %209 = vst.msk [vmem:[#allocation2 + $0x14] sm:$0xf] %vm203, %v202
  $region25: #{vit_forward.13} parent=0 // pred_fallthru
    _
  %v210 = vld [vmem:[#allocation2] sm:$0xf]
  %v211 = vld [vmem:[#allocation2 + $0x4] sm:$0xf]
  %v212 = vld [vmem:[#allocation2 + $0x8] sm:$0xf]
  %v213 = vld [vmem:[#allocation2 + $0xc] sm:$0xf]
  %v214 = vld [vmem:[#allocation2 + $0x10] sm:$0xf]
  %v215 = vld [vmem:[#allocation2 + $0x14] sm:$0xf]
  %v216 = vld [vmem:[%s3] sm:$0xf]
  %v217 = vld [vmem:[%s3 + $0x4] sm:$0xf]
  %v218 = vld [vmem:[%s3 + $0x8] sm:$0xf]
  %v219 = vld [vmem:[%s3 + $0xc] sm:$0xf]
  %v220 = vld [vmem:[%s4] sm:$0x1]
  %v222 = vperm.slane %v220, 0
  %v230 = vunpack.c.l.b16 %v210
  %v231 = vunpack.c.l.b16 %v211
  %v232 = vunpack.c.l.b16 %v212
  %v233 = vunpack.c.l.b16 %v213
  %v234 = vunpack.c.l.b16 %v214
  %v235 = vunpack.c.l.b16 %v215
  %v236 = vpack.c.b16 %v231, %v230
  %v237 = vpack.c.b16 %v233, %v232
  %v238 = vpack.c.b16 %v235, %v234
  %v243 = vunpack.c.l.b16 %v216
  %v244 = vunpack.c.l.b16 %v217
  %v245 = vunpack.c.l.b16 %v218
  %v246 = vunpack.c.l.b16 %v219
  %v247 = vpack.c.b16 %v244, %v243
  %v248 = vpack.c.b16 %v246, %v245
  %vm251 = vcmask 261120
  %v253 = vsel %vm251, %v236, 0
  %v256 = vsel %vm251, %v237, 0
  %v259 = vsel %vm251, %v238, 0
  %261 = vmatpush.bf16.msra.mxu0 0
  %262 = vmatpush.bf16.msra.mxu0 0
  %263 = vmatpush.bf16.msra.mxu0 0
  %264 = vmatpush.bf16.msra.mxu0 0
  %265 = vmatpush.bf16.msra.mxu0 0
  %266 = vmatpush.bf16.msra.mxu0 0
  %267 = vmatpush.bf16.msra.mxu0 %v248
  %268 = vmatpush.bf16.msra.mxu0 %v247
  %269 = vmatmul.bf16.gmra.mxu0 %v253
  %v270 = vpop.f32.mrf.mxu0
  %v271 = vadd.f32 %v222, %v270
  %v272 = vpop.f32.mrf.mxu0
  %v273 = vadd.f32 %v222, %v272
  %274 = vmatmul.bf16.gmra.mxu0 %v256
  %v275 = vpop.f32.mrf.mxu0
  %v276 = vadd.f32 %v222, %v275
  %v277 = vpop.f32.mrf.mxu0
  %v278 = vadd.f32 %v222, %v277
  %279 = vmatmul.bf16.gmra.mxu0 %v259
  %v280 = vpop.f32.mrf.mxu0
  %v281 = vadd.f32 %v222, %v280
  %v282 = vpop.f32.mrf.mxu0
  %v283 = vadd.f32 %v222, %v282
  %284 = vdwg.mxu0
  %v285 = vpack.c.bf16 %v271, %v271
  %v286 = vpack.c.bf16 %v273, %v273
  %v287 = vpack.c.bf16 %v276, %v276
  %v288 = vpack.c.bf16 %v278, %v278
  %v289 = vpack.c.bf16 %v281, %v281
  %v290 = vpack.c.bf16 %v283, %v283
  %vm291 = vcmask 781312
  %292 = vst.msk [vmem:[%s5] sm:$0xf] %vm291, %v285
  %293 = vst.msk [vmem:[%s5 + $0x4] sm:$0xf] %vm291, %v286
  %294 = vst.msk [vmem:[%s5 + $0x8] sm:$0xf] %vm291, %v287
  %295 = vst.msk [vmem:[%s5 + $0xc] sm:$0xf] %vm291, %v288
  %296 = vst.msk [vmem:[%s5 + $0x10] sm:$0xf] %vm291, %v289
  %297 = vst.msk [vmem:[%s5 + $0x14] sm:$0xf] %vm291, %v290
  // Predicated region
  $region26: #{vit_forward.13} parent=0 // pred_check
    _
  $region27: #{vit_forward.13} parent=0 // pred_check_branch
    %299 = sbr.rel (0) target = $region29
  $region28: #{vit_forward.13} parent=0 // pred_region
    _
  $region29: #{vit_forward.13} parent=0 // pred_fallthru
    _
  // Predicated region
  $region30: #{vit_forward.13} parent=0 // pred_check
    _
  $region31: #{vit_forward.13} parent=0 // pred_check_branch
    %301 = sbr.rel (0) target = $region33
  $region32: #{vit_forward.13} parent=0 // pred_region
    _
  $region33: #{vit_forward.13} parent=0 // pred_fallthru
    _

// kernel: vit_forward.14
$region0: #{vit_forward.14}
  #allocation0 [shape = 'u32[]', space=smem, size = 0x4, offset = 0x4, fixed_abs, tag = 'smem constant byte address 0x4 - core index']
  #allocation1 [shape = 'u32[72,128]{1,0:T(1,128)}', space=vmem, size = 0x9000, scoped, tag = 'internal scratch']
  %s0 = inlined_call_operand.vmem [shape: bf16[2,4,17,8], index: 0, kind: input, shape index: {}]
  %s1 = inlined_call_operand.vmem [shape: bf16[2,4,17,8], index: 1, kind: input, shape index: {}]
  %s2 = inlined_call_operand.vmem [shape: bf16[2,4,17,8], index: 2, kind: input, shape index: {}]
  %s3 = inlined_call_operand.vmem [shape: bf16[2,4,17,8], index: 3, kind: output, shape index: {}]
  %s4 = sld [smem:[#allocation0]]
  $region45: #{vit_forward.14} parent=0
    _
  %s6 = ssub.s32 1, %s4
  %s7 = scalar_select 0, %s6, %s4
  loop: start=0, step=1, limit=10
  $region2: #{vit_forward.14} parent=0 // loop_pre_header
    _
  $region3: #{vit_forward.14} parent=0 // loop_header
    %s9 = sphi 0, %s13
    %p10 = scmp.ge.s32.totalorder %s9, 10
    %s16 = sphi 0, %s28
    %s17 = sphi 0, %s24
    %s18 = sphi 0, %s16
    %s19 = sphi 0, %s17
    %s20 = sphi 0, %s18
    %s21 = sphi 0, %s19
    %s33 = sphi 0, %s35
    %s36 = sphi 0, %s33
    %s37 = sphi 0, %s36
    %s53 = sphi 0, %s37
    %s61 = sphi 0, %s63
    %s64 = sphi 0, %s61
    %s65 = sphi 0, %s64
    %s81 = sphi 0, %s65
    %s89 = sphi 0, %s91
    %s92 = sphi 0, %s89
    %s93 = sphi 0, %s92
    %s109 = sphi 0, %s93
    %s117 = sphi 0, %s119
    %s120 = sphi 0, %s117
    %s121 = sphi 0, %s120
    %s137 = sphi 0, %s121
  $region4: #{vit_forward.14} parent=0 // loop_header_branch
    %12 = sbr.rel (%p10) target = $region8
  $region5: #{vit_forward.14} parent=0 // loop_body
    %s14 = ssub.s32 %s9, 1
    %s15 = ssub.s32 %s9, 2
    %s22 = sadd.s32 1, %s17
    %p23 = scmp.ge.s32.totalorder %s22, 4
    %s24 = scalar_select %p23, 0, %s22
    %s25 = sadd.s32 1, %s16
    %s26 = scalar_select %p23, %s25, %s16
    %p27 = scmp.ge.s32.totalorder %s26, 2
    %s28 = scalar_select %p27, 0, %s26
    %s29 = ssub.s32 %s16, %s28
    %s30 = ssub.s32 %s17, %s24
    %s31 = sor.u32 %s29, %s30
    %p32 = scmp.eq.s32.totalorder %s31, 0
    %s34 = sadd.s32 %s33, 1
    %s35 = scalar_select %p32, %s33, %s34
    %p38 = pneg %p32
    %p39 = scmp.eq.s32.totalorder %s9, 7
    %p40 = por %p38, %p39
    %p41 = scmp.ne.s32.totalorder %s33, %s36
    %p42 = scmp.eq.s32.totalorder %s9, 0
    %p43 = por %p41, %p42
    %p44 = scmp.ne.s32.totalorder %s33, %s36
    %p45 = scmp.eq.s32.totalorder %s14, 7
    %p46 = por %p44, %p45
    %p47 = scmp.ne.s32.totalorder %s36, %s37
    %p48 = scmp.eq.s32.totalorder %s14, 0
    %p49 = por %p47, %p48
    %p50 = scmp.ne.s32.totalorder %s36, %s37
    %p51 = scmp.eq.s32.totalorder %s15, 7
    %p52 = por %p50, %p51
    %p54 = scmp.ne.s32.totalorder %s37, %s53
    %p55 = scmp.eq.s32.totalorder %s15, 0
    %p56 = por %p54, %p55
    %s57 = ssub.s32 %s16, %s28
    %s58 = ssub.s32 %s17, %s24
    %s59 = sor.u32 %s57, %s58
    %p60 = scmp.eq.s32.totalorder %s59, 0
    %s62 = sadd.s32 %s61, 1
    %s63 = scalar_select %p60, %s61, %s62
    %p66 = pneg %p60
    %p67 = scmp.eq.s32.totalorder %s9, 7
    %p68 = por %p66, %p67
    %p69 = scmp.ne.s32.totalorder %s61, %s64
    %p70 = scmp.eq.s32.totalorder %s9, 0
    %p71 = por %p69, %p70
    %p72 = scmp.ne.s32.totalorder %s61, %s64
    %p73 = scmp.eq.s32.totalorder %s14, 7
    %p74 = por %p72, %p73
    %p75 = scmp.ne.s32.totalorder %s64, %s65
    %p76 = scmp.eq.s32.totalorder %s14, 0
    %p77 = por %p75, %p76
    %p78 = scmp.ne.s32.totalorder %s64, %s65
    %p79 = scmp.eq.s32.totalorder %s15, 7
    %p80 = por %p78, %p79
    %p82 = scmp.ne.s32.totalorder %s65, %s81
    %p83 = scmp.eq.s32.totalorder %s15, 0
    %p84 = por %p82, %p83
    %s85 = ssub.s32 %s16, %s28
    %s86 = ssub.s32 %s17, %s24
    %s87 = sor.u32 %s85, %s86
    %p88 = scmp.eq.s32.totalorder %s87, 0
    %s90 = sadd.s32 %s89, 1
    %s91 = scalar_select %p88, %s89, %s90
    %p94 = pneg %p88
    %p95 = scmp.eq.s32.totalorder %s9, 7
    %p96 = por %p94, %p95
    %p97 = scmp.ne.s32.totalorder %s89, %s92
    %p98 = scmp.eq.s32.totalorder %s9, 0
    %p99 = por %p97, %p98
    %p100 = scmp.ne.s32.totalorder %s89, %s92
    %p101 = scmp.eq.s32.totalorder %s14, 7
    %p102 = por %p100, %p101
    %p103 = scmp.ne.s32.totalorder %s92, %s93
    %p104 = scmp.eq.s32.totalorder %s14, 0
    %p105 = por %p103, %p104
    %p106 = scmp.ne.s32.totalorder %s92, %s93
    %p107 = scmp.eq.s32.totalorder %s15, 7
    %p108 = por %p106, %p107
    %p110 = scmp.ne.s32.totalorder %s93, %s109
    %p111 = scmp.eq.s32.totalorder %s15, 0
    %p112 = por %p110, %p111
    %s113 = ssub.s32 %s16, %s28
    %s114 = ssub.s32 %s17, %s24
    %s115 = sor.u32 %s113, %s114
    %p116 = scmp.eq.s32.totalorder %s115, 0
    %s118 = sadd.s32 %s117, 1
    %s119 = scalar_select %p116, %s117, %s118
    %p122 = pneg %p116
    %p123 = scmp.eq.s32.totalorder %s9, 7
    %p124 = por %p122, %p123
    %p125 = scmp.ne.s32.totalorder %s117, %s120
    %p126 = scmp.eq.s32.totalorder %s9, 0
    %p127 = por %p125, %p126
    %p128 = scmp.ne.s32.totalorder %s117, %s120
    %p129 = scmp.eq.s32.totalorder %s14, 7
    %p130 = por %p128, %p129
    %p131 = scmp.ne.s32.totalorder %s120, %s121
    %p132 = scmp.eq.s32.totalorder %s14, 0
    %p133 = por %p131, %p132
    %p134 = scmp.ne.s32.totalorder %s120, %s121
    %p135 = scmp.eq.s32.totalorder %s15, 7
    %p136 = por %p134, %p135
    %p138 = scmp.ne.s32.totalorder %s121, %s137
    %p139 = scmp.eq.s32.totalorder %s15, 0
    %p140 = por %p138, %p139
    %p141 = scmp.le.s32.totalorder 1, %s9
    %p142 = scmp.lt.s32.totalorder %s9, 9
    %p143 = pnand %p141, %p142
    %p144 = pneg %p143
    // Predicated region
    $region9: #{vit_forward.14} parent=5 // pred_check
      _
    $region10: #{vit_forward.14} parent=5 // pred_check_branch
      %146 = sbr.rel (%p143) target = $region12
    $region11: #{vit_forward.14} parent=5 // pred_region
      %s147 = ssub.s32 %s9, 1
    $region12: #{vit_forward.14} parent=5 // pred_fallthru
      _
    %p148 = scmp.lt.s32.totalorder %s9, 8
    // Predicated region
    $region13: #{vit_forward.14} parent=5 // pred_check
      %p149 = pneg %p148
    $region14: #{vit_forward.14} parent=5 // pred_check_branch
      %151 = sbr.rel (%p149) target = $region16
    $region15: #{vit_forward.14} parent=5 // pred_region
      // Predicated region
      $region17: #{vit_forward.14} parent=15 // pred_check
        %p152 = pneg %p43
      $region18: #{vit_forward.14} parent=15 // pred_check_branch
        %154 = sbr.rel (%p152) target = $region20
      $region19: #{vit_forward.14} parent=15 // pred_region
        %p155 = scmp.lt.s32.totalorder %s16, 1
        %s156 = scalar_select %p155, %s16, 1
        %p157 = scmp.lt.s32.totalorder %s17, 3
        %s158 = scalar_select %p157, %s17, 3
        %s159 = smul.addr %s158, 3
        %s160 = smul.addr %s156, 12
        %s161 = sadd.s32 %s159, %s160
        %s162 = smul.addr %s161, 4
        %s163 = scalar_lea.vmem %s0, %s162
      $region20: #{vit_forward.14} parent=15 // pred_fallthru
        _
      // Predicated region
      $region21: #{vit_forward.14} parent=15 // pred_check
        %p164 = pneg %p71
      $region22: #{vit_forward.14} parent=15 // pred_check_branch
        %166 = sbr.rel (%p164) target = $region24
      $region23: #{vit_forward.14} parent=15 // pred_region
        %p167 = scmp.lt.s32.totalorder %s16, 1
        %s168 = scalar_select %p167, %s16, 1
        %p169 = scmp.lt.s32.totalorder %s17, 3
        %s170 = scalar_select %p169, %s17, 3
        %s171 = smul.addr %s170, 3
        %s172 = smul.addr %s168, 12
        %s173 = sadd.s32 %s171, %s172
        %s174 = smul.addr %s173, 4
        %s175 = scalar_lea.vmem %s1, %s174
      $region24: #{vit_forward.14} parent=15 // pred_fallthru
        _
      // Predicated region
      $region25: #{vit_forward.14} parent=15 // pred_check
        %p176 = pneg %p99
      $region26: #{vit_forward.14} parent=15 // pred_check_branch
        %178 = sbr.rel (%p176) target = $region28
      $region27: #{vit_forward.14} parent=15 // pred_region
        %p179 = scmp.lt.s32.totalorder %s16, 1
        %s180 = scalar_select %p179, %s16, 1
        %p181 = scmp.lt.s32.totalorder %s17, 3
        %s182 = scalar_select %p181, %s17, 3
        %s183 = smul.addr %s182, 3
        %s184 = smul.addr %s180, 12
        %s185 = sadd.s32 %s183, %s184
        %s186 = smul.addr %s185, 4
        %s187 = scalar_lea.vmem %s2, %s186
      $region28: #{vit_forward.14} parent=15 // pred_fallthru
        _
    $region16: #{vit_forward.14} parent=5 // pred_fallthru
      _
    %p188 = scmp.le.s32.totalorder 1, %s9
    %p189 = scmp.lt.s32.totalorder %s9, 9
    %p190 = pnand %p188, %p189
    %p191 = pneg %p190
    // Predicated region
    $region29: #{vit_forward.14} parent=5 // pred_check
      _
    $region30: #{vit_forward.14} parent=5 // pred_check_branch
      %193 = sbr.rel (%p190) target = $region32
    $region31: #{vit_forward.14} parent=5 // pred_region
      %s194 = ssub.s32 %s9, 1
      %p195 = scmp.lt.s32.totalorder %s18, 1
      %s196 = scalar_select %p195, %s18, 1
      %p197 = scmp.lt.s32.totalorder %s19, 3
      %s198 = scalar_select %p197, %s19, 3
      %s199 = smul.addr %s198, 3
      %s200 = smul.addr %s196, 12
      %s201 = sadd.s32 %s199, %s200
      %s202 = smul.addr %s201, 4
      %s203 = scalar_lea.vmem %s0, %s202
      %p204 = pneg %p49
      %p205 = pneg %p46
      %p206 = scmp.lt.s32.totalorder %s18, 1
      %s207 = scalar_select %p206, %s18, 1
      %p208 = scmp.lt.s32.totalorder %s19, 3
      %s209 = scalar_select %p208, %s19, 3
      %s210 = smul.addr %s209, 3
      %s211 = smul.addr %s207, 12
      %s212 = sadd.s32 %s210, %s211
      %s213 = smul.addr %s212, 4
      %s214 = scalar_lea.vmem %s1, %s213
      %p215 = pneg %p77
      %p216 = pneg %p74
      %p217 = scmp.lt.s32.totalorder %s18, 1
      %s218 = scalar_select %p217, %s18, 1
      %p219 = scmp.lt.s32.totalorder %s19, 3
      %s220 = scalar_select %p219, %s19, 3
      %s221 = smul.addr %s220, 3
      %s222 = smul.addr %s218, 12
      %s223 = sadd.s32 %s221, %s222
      %s224 = smul.addr %s223, 4
      %s225 = scalar_lea.vmem %s2, %s224
      %p226 = pneg %p105
      %p227 = pneg %p102
      %p228 = pneg %p133
      %p229 = pneg %p130
      %p230 = scmp.lt.s32.totalorder %s18, 1
      %s231 = scalar_select %p230, %s18, 1
      %p232 = scmp.lt.s32.totalorder %s19, 3
      %s233 = scalar_select %p232, %s19, 3
      %s234 = smul.addr %s233, 3
      %s235 = smul.addr %s231, 12
      %s236 = sadd.s32 %s234, %s235
      %s237 = smul.addr %s236, 4
      %s238 = scalar_lea.vmem %s3, %s237
      %p239 = scmp.lt.s32.totalorder %s18, 1
      %s240 = scalar_select %p239, %s18, 1
      %p241 = scmp.lt.s32.totalorder %s19, 3
      %s242 = scalar_select %p241, %s19, 3
      %s243 = smul.addr %s242, 3
      %s244 = smul.addr %s240, 12
      %s245 = sadd.s32 %s243, %s244
      %s246 = smul.addr %s245, 4
      %s247 = scalar_lea.vmem %s0, %s246
      %p248 = scmp.lt.s32.totalorder %s18, 1
      %s249 = scalar_select %p248, %s18, 1
      %p250 = scmp.lt.s32.totalorder %s19, 3
      %s251 = scalar_select %p250, %s19, 3
      %s252 = smul.addr %s251, 3
      %s253 = smul.addr %s249, 12
      %s254 = sadd.s32 %s252, %s253
      %s255 = smul.addr %s254, 4
      %s256 = scalar_lea.vmem %s1, %s255
      %p257 = scmp.lt.s32.totalorder %s18, 1
      %s258 = scalar_select %p257, %s18, 1
      %p259 = scmp.lt.s32.totalorder %s19, 3
      %s260 = scalar_select %p259, %s19, 3
      %s261 = smul.addr %s260, 3
      %s262 = smul.addr %s258, 12
      %s263 = sadd.s32 %s261, %s262
      %s264 = smul.addr %s263, 4
      %s265 = scalar_lea.vmem %s2, %s264
      %p266 = scmp.lt.s32.totalorder %s18, 1
      %s267 = scalar_select %p266, %s18, 1
      %p268 = scmp.lt.s32.totalorder %s19, 3
      %s269 = scalar_select %p268, %s19, 3
      %s270 = smul.addr %s269, 3
      %s271 = smul.addr %s267, 12
      %s272 = sadd.s32 %s270, %s271
      %s273 = smul.addr %s272, 4
      %s274 = scalar_lea.vmem %s3, %s273
      %v276 = vld [vmem:[%s247] sm:$0xf]
      %v277 = vld [vmem:[%s247 + $0x4] sm:$0xf]
      %v278 = vld [vmem:[%s247 + $0x8] sm:$0x1]
      %v279 = vunpack.c.l.bf16 %v276
      %v280 = vunpack.c.l.bf16 %v277
      %v281 = vunpack.c.l.bf16 %v278
      %v282 = vmul.f32 %v279, 0.35355338
      %v283 = vmul.f32 %v280, 0.35355338
      %v284 = vmul.f32 %v281, 0.35355338
      %v285 = vpack.c.bf16 %v283, %v282
      %v286 = vpack.c.bf16 %v284, %v284
      %v287 = vld [vmem:[%s256] sm:$0xf]
      %v288 = vld [vmem:[%s256 + $0x4] sm:$0xf]
      %v289 = vld [vmem:[%s256 + $0x8] sm:$0x1]
      %v290 = vld [vmem:[%s265] sm:$0xf]
      %v291 = vld [vmem:[%s265 + $0x4] sm:$0xf]
      %v292 = vld [vmem:[%s265 + $0x8] sm:$0x1]
      %v296 = vunpack.c.l.b16 %v287
      %v297 = vunpack.c.l.b16 %v288
      %v298 = vunpack.c.l.b16 %v289
      %v299 = vpack.c.b16 %v297, %v296
      %v300 = vpack.c.b16 %v298, %v298
      %vm301 = vcmask 64512
      %v303 = vsel %vm301, %v285, 0
      %v306 = vsel %vm301, %v286, 0
      %v309 = vsel %vm301, %v299, 0
      %v312 = vsel %vm301, %v300, 0
      %314 = vmatpush.bf16.xpose.msra.mxu0 0
      %315 = vmatpush.bf16.xpose.msra.mxu0 0
      %316 = vmatpush.bf16.xpose.msra.mxu0 0
      %317 = vmatpush.bf16.xpose.msra.mxu0 0
      %318 = vmatpush.bf16.xpose.msra.mxu0 0
      %319 = vmatpush.bf16.xpose.msra.mxu0 0
      %320 = vmatpush.bf16.xpose.msra.mxu0 %v312
      %321 = vmatpush.bf16.xpose.msra.mxu0 %v309
      %322 = vmatmul.bf16.gmra.mxu0 %v303
      %v323 = vpop.f32.mrf.mxu0
      %v324 = vadd.f32 0.0, %v323
      %v325 = vpop.f32.mrf.mxu0
      %v326 = vadd.f32 0.0, %v325
      %327 = vmatmul.bf16.gmra.mxu0 %v306
      %v328 = vpop.f32.mrf.mxu0
      %v329 = vadd.f32 0.0, %v328
      %v330 = vpop.f32.mrf.mxu0
      %331 = vdwg.mxu0
      %vm332 = vcmask 138240
      %v333 = vsel %vm332, %v324, -inf
      %334 = vmax.xlane.f32.xlu0 %v333
      %v335 = vpop.xlane.xlu0 %334
      %v336 = vsel %vm332, %v326, -inf
      %337 = vmax.xlane.f32.xlu0 %v336
      %v338 = vpop.xlane.xlu0 %337
      %vm339 = vcmask 131072
      %v340 = vsel %vm339, %v329, -inf
      %341 = vmax.xlane.f32.xlu0 %v340
      %v342 = vpop.xlane.xlu0 %341
      %v343 = vsub.f32 %v324, %v335
      %v344 = vsub.f32 %v326, %v338
      %v345 = vsub.f32 %v329, %v342
      %v346 = vmul.f32 %v343, 1.442695
      %v347 = vpow.pop %v346
      %v348 = vmul.f32 %v344, 1.442695
      %v349 = vpow.pop %v348
      %v350 = vmul.f32 %v345, 1.442695
      %v351 = vpow.pop %v350
      %v352 = vsel %vm332, %v347, 0.0
      %353 = vadd.xlane.f32.xlu0 %v352
      %v354 = vpop.xlane.xlu0 %353
      %v355 = vsel %vm332, %v349, 0.0
      %356 = vadd.xlane.f32.xlu0 %v355
      %v357 = vpop.xlane.xlu0 %356
      %v358 = vsel %vm339, %v351, 0.0
      %359 = vadd.xlane.f32.xlu0 %v358
      %v360 = vpop.xlane.xlu0 %359
      %v361 = vrcp.pop %v354
      %v362 = vrcp.pop %v357
      %v363 = vrcp.pop %v360
      %v364 = vpack.c.bf16 %v349, %v347
      %v365 = vpack.c.bf16 %v351, %v351
      %v369 = vunpack.c.l.b16 %v290
      %v370 = vunpack.c.l.b16 %v291
      %v371 = vunpack.c.l.b16 %v292
      %v372 = vpack.c.b16 %v370, %v369
      %v373 = vpack.c.b16 %v371, %v371
      %v376 = vsel %vm332, %v364, 0
      %v379 = vsel %vm332, %v365, 0
      %vm381 = vcmask 1040384
      %v382 = vsel 0, 4294967295, 65535
      %v383 = vsel %vm381, %v382, 0
      %v385 = vand.u32 %v373, %v383
      %387 = vmatpush.bf16.msra.mxu0 0
      %388 = vmatpush.bf16.msra.mxu0 0
      %389 = vmatpush.bf16.msra.mxu0 0
      %390 = vmatpush.bf16.msra.mxu0 0
      %391 = vmatpush.bf16.msra.mxu0 0
      %392 = vmatpush.bf16.msra.mxu0 0
      %393 = vmatpush.bf16.msra.mxu0 %v385
      %394 = vmatpush.bf16.msra.mxu0 %v372
      %395 = vmatmul.bf16.gmra.mxu0 %v376
      %v396 = vpop.f32.mrf.mxu0
      %v397 = vadd.f32 0.0, %v396
      %v398 = vpop.f32.mrf.mxu0
      %v399 = vadd.f32 0.0, %v398
      %400 = vmatmul.bf16.gmra.mxu0 %v379
      %v401 = vpop.f32.mrf.mxu0
      %v402 = vadd.f32 0.0, %v401
      %v403 = vpop.f32.mrf.mxu0
      %404 = vdwg.mxu0
      %v405 = vmul.f32 %v397, %v361
      %v406 = vmul.f32 %v399, %v362
      %v407 = vmul.f32 %v402, %v363
      %v408 = vpack.c.bf16 %v405, %v405
      %v409 = vpack.c.bf16 %v406, %v406
      %v410 = vpack.c.bf16 %v407, %v407
      %vm411 = vcmask 60416
      %412 = vst.msk [vmem:[%s274] sm:$0xf] %vm411, %v408
      %413 = vst.msk [vmem:[%s274 + $0x4] sm:$0xf] %vm411, %v409
      %vm414 = vcmask 57344
      %vm415 = vsmask.f32 256
      %vm416 = vmand %vm414, %vm415
      %v417 = vld [vmem:[%s274 + $0x8] sm:$0x1]
      %v418 = vsel %vm416, %v410, %v417
      %419 = vst [vmem:[%s274 + $0x8] sm:$0x1] %v418
      %p420 = scmp.lt.s32.totalorder %s18, 1
      %s421 = scalar_select %p420, %s18, 1
      %p422 = scmp.lt.s32.totalorder %s19, 3
      %s423 = scalar_select %p422, %s19, 3
      %s424 = smul.addr %s423, 3
      %s425 = smul.addr %s421, 12
      %s426 = sadd.s32 %s424, %s425
      %s427 = smul.addr %s426, 4
      %s428 = scalar_lea.vmem %s3, %s427
      // Predicated region
      $region33: #{vit_forward.14} parent=31 // pred_check
        %p429 = pneg %p130
      $region34: #{vit_forward.14} parent=31 // pred_check_branch
        %431 = sbr.rel (%p429) target = $region36
      $region35: #{vit_forward.14} parent=31 // pred_region
        _
      $region36: #{vit_forward.14} parent=31 // pred_fallthru
        _
    $region32: #{vit_forward.14} parent=5 // pred_fallthru
      _
    %p432 = scmp.le.s32.totalorder 2, %s9
    // Predicated region
    $region37: #{vit_forward.14} parent=5 // pred_check
      %p433 = pneg %p432
    $region38: #{vit_forward.14} parent=5 // pred_check_branch
      %435 = sbr.rel (%p433) target = $region40
    $region39: #{vit_forward.14} parent=5 // pred_region
      %s436 = ssub.s32 %s9, 2
      // Predicated region
      $region41: #{vit_forward.14} parent=39 // pred_check
        %p437 = pneg %p136
      $region42: #{vit_forward.14} parent=39 // pred_check_branch
        %439 = sbr.rel (%p437) target = $region44
      $region43: #{vit_forward.14} parent=39 // pred_region
        %p440 = scmp.lt.s32.totalorder %s20, 1
        %s441 = scalar_select %p440, %s20, 1
        %p442 = scmp.lt.s32.totalorder %s21, 3
        %s443 = scalar_select %p442, %s21, 3
        %s444 = smul.addr %s443, 3
        %s445 = smul.addr %s441, 12
        %s446 = sadd.s32 %s444, %s445
        %s447 = smul.addr %s446, 4
        %s448 = scalar_lea.vmem %s3, %s447
      $region44: #{vit_forward.14} parent=39 // pred_fallthru
        _
    $region40: #{vit_forward.14} parent=5 // pred_fallthru
      _
  $region6: #{vit_forward.14} parent=0 // loop_footer
    %s13 = sadd.s32 1, %s9
  $region7: #{vit_forward.14} parent=0 // loop_footer_branch
    %8 = sbr.rel target = $region3
  $region8: #{vit_forward.14} parent=0 // loop_exit
    _

// kernel: vit_forward.15
$region0: #{vit_forward.15}
  #allocation0 [shape = 'u32[]', space=smem, size = 0x4, offset = 0x4, fixed_abs, tag = 'smem constant byte address 0x4 - core index']
  #allocation1 [shape = 'u32[72,128]{1,0:T(1,128)}', space=vmem, size = 0x9000, scoped, tag = 'internal scratch']
  #allocation2 [shape = 'f32[48,32]{1,0:T(8,128)}', space=vmem, size = 0x6000, scoped, tag = 'scratch operand']
  %s0 = inlined_call_operand.vmem [shape: bf16[48,32], index: 0, kind: input, shape index: {}]
  %s1 = inlined_call_operand.vmem [shape: bf16[32,32], index: 1, kind: input, shape index: {}]
  %s2 = inlined_call_operand.vmem [shape: f32[1,32], index: 2, kind: input, shape index: {}]
  %s3 = inlined_call_operand.vmem [shape: bf16[48,32], index: 3, kind: input, shape index: {}]
  %s4 = inlined_call_operand.vmem [shape: bf16[48,32], index: 4, kind: output, shape index: {}]
  %s5 = sld [smem:[#allocation0]]
  $region34: #{vit_forward.15} parent=0
    _
  %s7 = ssub.s32 1, %s5
  %s8 = scalar_select 0, %s7, %s5
  // Predicated region
  $region2: #{vit_forward.15} parent=0 // pred_check
    _
  $region3: #{vit_forward.15} parent=0 // pred_check_branch
    %10 = sbr.rel (0) target = $region5
  $region4: #{vit_forward.15} parent=0 // pred_region
    _
  $region5: #{vit_forward.15} parent=0 // pred_fallthru
    _
  // Predicated region
  $region6: #{vit_forward.15} parent=0 // pred_check
    _
  $region7: #{vit_forward.15} parent=0 // pred_check_branch
    %12 = sbr.rel (0) target = $region9
  $region8: #{vit_forward.15} parent=0 // pred_region
    _
  $region9: #{vit_forward.15} parent=0 // pred_fallthru
    _
  // Predicated region
  $region10: #{vit_forward.15} parent=0 // pred_check
    _
  $region11: #{vit_forward.15} parent=0 // pred_check_branch
    %14 = sbr.rel (0) target = $region13
  $region12: #{vit_forward.15} parent=0 // pred_region
    _
  $region13: #{vit_forward.15} parent=0 // pred_fallthru
    _
  // Predicated region
  $region14: #{vit_forward.15} parent=0 // pred_check
    _
  $region15: #{vit_forward.15} parent=0 // pred_check_branch
    %16 = sbr.rel (0) target = $region17
  $region16: #{vit_forward.15} parent=0 // pred_region
    _
  $region17: #{vit_forward.15} parent=0 // pred_fallthru
    _
  %p18 = scmp.eq.s32.totalorder 0, 0
  // Predicated region
  $region18: #{vit_forward.15} parent=0 // pred_check
    %p19 = pneg %p18
  $region19: #{vit_forward.15} parent=0 // pred_check_branch
    %21 = sbr.rel (%p19) target = $region21
  $region20: #{vit_forward.15} parent=0 // pred_region
    %vm22 = vcmask 261120
    %23 = vst.msk [vmem:[#allocation2] sm:$0xff] %vm22, 0.0
    %24 = vst.msk [vmem:[#allocation2 + $0x8] sm:$0xff] %vm22, 0.0
    %25 = vst.msk [vmem:[#allocation2 + $0x10] sm:$0xff] %vm22, 0.0
    %26 = vst.msk [vmem:[#allocation2 + $0x18] sm:$0xff] %vm22, 0.0
    %27 = vst.msk [vmem:[#allocation2 + $0x20] sm:$0xff] %vm22, 0.0
    %28 = vst.msk [vmem:[#allocation2 + $0x28] sm:$0xff] %vm22, 0.0
  $region21: #{vit_forward.15} parent=0 // pred_fallthru
    _
  %v29 = vld [vmem:[#allocation2] sm:$0xff]
  %v30 = vld [vmem:[#allocation2 + $0x8] sm:$0xff]
  %v31 = vld [vmem:[#allocation2 + $0x10] sm:$0xff]
  %v32 = vld [vmem:[#allocation2 + $0x18] sm:$0xff]
  %v33 = vld [vmem:[#allocation2 + $0x20] sm:$0xff]
  %v34 = vld [vmem:[#allocation2 + $0x28] sm:$0xff]
  %v35 = vld [vmem:[%s0] sm:$0xf]
  %v36 = vld [vmem:[%s0 + $0x4] sm:$0xf]
  %v37 = vld [vmem:[%s0 + $0x8] sm:$0xf]
  %v38 = vld [vmem:[%s0 + $0xc] sm:$0xf]
  %v39 = vld [vmem:[%s0 + $0x10] sm:$0xf]
  %v40 = vld [vmem:[%s0 + $0x14] sm:$0xf]
  %v41 = vld [vmem:[%s1] sm:$0xf]
  %v42 = vld [vmem:[%s1 + $0x4] sm:$0xf]
  %v43 = vld [vmem:[%s1 + $0x8] sm:$0xf]
  %v44 = vld [vmem:[%s1 + $0xc] sm:$0xf]
  %v51 = vunpack.c.l.b16 %v35
  %v52 = vunpack.c.l.b16 %v36
  %v53 = vunpack.c.l.b16 %v37
  %v54 = vunpack.c.l.b16 %v38
  %v55 = vunpack.c.l.b16 %v39
  %v56 = vunpack.c.l.b16 %v40
  %v57 = vpack.c.b16 %v52, %v51
  %v58 = vpack.c.b16 %v54, %v53
  %v59 = vpack.c.b16 %v56, %v55
  %v64 = vunpack.c.l.b16 %v41
  %v65 = vunpack.c.l.b16 %v42
  %v66 = vunpack.c.l.b16 %v43
  %v67 = vunpack.c.l.b16 %v44
  %v68 = vpack.c.b16 %v65, %v64
  %v69 = vpack.c.b16 %v67, %v66
  %vm72 = vcmask 261120
  %v74 = vsel %vm72, %v57, 0
  %v77 = vsel %vm72, %v58, 0
  %v80 = vsel %vm72, %v59, 0
  %82 = vmatpush.bf16.msra.mxu0 0
  %83 = vmatpush.bf16.msra.mxu0 0
  %84 = vmatpush.bf16.msra.mxu0 0
  %85 = vmatpush.bf16.msra.mxu0 0
  %86 = vmatpush.bf16.msra.mxu0 0
  %87 = vmatpush.bf16.msra.mxu0 0
  %88 = vmatpush.bf16.msra.mxu0 %v69
  %89 = vmatpush.bf16.msra.mxu0 %v68
  %90 = vmatmul.bf16.gmra.mxu0 %v74
  %v91 = vpop.f32.mrf.mxu0
  %v92 = vadd.f32 0.0, %v91
  %v93 = vpop.f32.mrf.mxu0
  %v94 = vadd.f32 0.0, %v93
  %95 = vmatmul.bf16.gmra.mxu0 %v77
  %v96 = vpop.f32.mrf.mxu0
  %v97 = vadd.f32 0.0, %v96
  %v98 = vpop.f32.mrf.mxu0
  %v99 = vadd.f32 0.0, %v98
  %100 = vmatmul.bf16.gmra.mxu0 %v80
  %v101 = vpop.f32.mrf.mxu0
  %v102 = vadd.f32 0.0, %v101
  %v103 = vpop.f32.mrf.mxu0
  %v104 = vadd.f32 0.0, %v103
  %105 = vdwg.mxu0
  %v106 = vadd.f32 %v29, %v92
  %v107 = vadd.f32 %v30, %v94
  %v108 = vadd.f32 %v31, %v97
  %v109 = vadd.f32 %v32, %v99
  %v110 = vadd.f32 %v33, %v102
  %v111 = vadd.f32 %v34, %v104
  %112 = vst.msk [vmem:[#allocation2] sm:$0xff] %vm72, %v106
  %113 = vst.msk [vmem:[#allocation2 + $0x8] sm:$0xff] %vm72, %v107
  %114 = vst.msk [vmem:[#allocation2 + $0x10] sm:$0xff] %vm72, %v108
  %115 = vst.msk [vmem:[#allocation2 + $0x18] sm:$0xff] %vm72, %v109
  %116 = vst.msk [vmem:[#allocation2 + $0x20] sm:$0xff] %vm72, %v110
  %117 = vst.msk [vmem:[#allocation2 + $0x28] sm:$0xff] %vm72, %v111
  // Predicated region
  $region22: #{vit_forward.15} parent=0 // pred_check
    %p118 = pneg %p18
  $region23: #{vit_forward.15} parent=0 // pred_check_branch
    %120 = sbr.rel (%p118) target = $region25
  $region24: #{vit_forward.15} parent=0 // pred_region
    %v121 = vld [vmem:[#allocation2] sm:$0xff]
    %v122 = vld [vmem:[#allocation2 + $0x8] sm:$0xff]
    %v123 = vld [vmem:[#allocation2 + $0x10] sm:$0xff]
    %v124 = vld [vmem:[#allocation2 + $0x18] sm:$0xff]
    %v125 = vld [vmem:[#allocation2 + $0x20] sm:$0xff]
    %v126 = vld [vmem:[#allocation2 + $0x28] sm:$0xff]
    %v127 = vld [vmem:[%s2] sm:$0x1]
    %v129 = vperm.slane %v127, 0
    %v131 = vadd.f32 %v121, %v129
    %v132 = vadd.f32 %v122, %v129
    %v133 = vadd.f32 %v123, %v129
    %v134 = vadd.f32 %v124, %v129
    %v135 = vadd.f32 %v125, %v129
    %v136 = vadd.f32 %v126, %v129
    %v137 = vld [vmem:[%s3] sm:$0xf]
    %v138 = vld [vmem:[%s3 + $0x4] sm:$0xf]
    %v139 = vld [vmem:[%s3 + $0x8] sm:$0xf]
    %v140 = vld [vmem:[%s3 + $0xc] sm:$0xf]
    %v141 = vld [vmem:[%s3 + $0x10] sm:$0xf]
    %v142 = vld [vmem:[%s3 + $0x14] sm:$0xf]
    %v143 = vunpack.c.l.bf16 %v137
    %v144 = vunpack.c.l.bf16 %v138
    %v145 = vunpack.c.l.bf16 %v139
    %v146 = vunpack.c.l.bf16 %v140
    %v147 = vunpack.c.l.bf16 %v141
    %v148 = vunpack.c.l.bf16 %v142
    %v149 = vadd.f32 %v131, %v143
    %v150 = vadd.f32 %v132, %v144
    %v151 = vadd.f32 %v133, %v145
    %v152 = vadd.f32 %v134, %v146
    %v153 = vadd.f32 %v135, %v147
    %v154 = vadd.f32 %v136, %v148
    %v155 = vpack.c.bf16 %v149, %v149
    %v156 = vpack.c.bf16 %v150, %v150
    %v157 = vpack.c.bf16 %v151, %v151
    %v158 = vpack.c.bf16 %v152, %v152
    %v159 = vpack.c.bf16 %v153, %v153
    %v160 = vpack.c.bf16 %v154, %v154
    %vm161 = vcmask 257024
    %162 = vst.msk [vmem:[%s4] sm:$0xf] %vm161, %v155
    %163 = vst.msk [vmem:[%s4 + $0x4] sm:$0xf] %vm161, %v156
    %164 = vst.msk [vmem:[%s4 + $0x8] sm:$0xf] %vm161, %v157
    %165 = vst.msk [vmem:[%s4 + $0xc] sm:$0xf] %vm161, %v158
    %166 = vst.msk [vmem:[%s4 + $0x10] sm:$0xf] %vm161, %v159
    %167 = vst.msk [vmem:[%s4 + $0x14] sm:$0xf] %vm161, %v160
  $region25: #{vit_forward.15} parent=0 // pred_fallthru
    _
  // Predicated region
  $region26: #{vit_forward.15} parent=0 // pred_check
    _
  $region27: #{vit_forward.15} parent=0 // pred_check_branch
    %169 = sbr.rel (0) target = $region29
  $region28: #{vit_forward.15} parent=0 // pred_region
    _
  $region29: #{vit_forward.15} parent=0 // pred_fallthru
    _
  // Predicated region
  $region30: #{vit_forward.15} parent=0 // pred_check
    _
  $region31: #{vit_forward.15} parent=0 // pred_check_branch
    %171 = sbr.rel (0) target = $region33
  $region32: #{vit_forward.15} parent=0 // pred_region
    _
  $region33: #{vit_forward.15} parent=0 // pred_fallthru
    _

// kernel: vit_forward.16
$region0: #{vit_forward.16}
  #allocation0 [shape = 'u32[]', space=smem, size = 0x4, offset = 0x4, fixed_abs, tag = 'smem constant byte address 0x4 - core index']
  #allocation1 [shape = 'u32[72,128]{1,0:T(1,128)}', space=vmem, size = 0x9000, scoped, tag = 'internal scratch']
  #allocation2 [shape = 'bf16[48,32]{1,0:T(8,128)(2,1)}', space=vmem, size = 0x3000, scoped, tag = 'scratch operand']
  %s0 = inlined_call_operand.vmem [shape: bf16[48,32], index: 0, kind: input, shape index: {}]
  %s1 = inlined_call_operand.vmem [shape: f32[1,32], index: 1, kind: input, shape index: {}]
  %s2 = inlined_call_operand.vmem [shape: f32[1,32], index: 2, kind: input, shape index: {}]
  %s3 = inlined_call_operand.vmem [shape: bf16[32,2048], index: 3, kind: input, shape index: {}]
  %s4 = inlined_call_operand.vmem [shape: f32[1,2048], index: 4, kind: input, shape index: {}]
  %s5 = inlined_call_operand.vmem [shape: bf16[48,2048], index: 5, kind: output, shape index: {}]
  %s6 = sld [smem:[#allocation0]]
  $region99: #{vit_forward.16} parent=0
    _
  %s8 = ssub.s32 1, %s6
  %s9 = scalar_select 0, %s8, %s6
  $region1: #{vit_forward.16} parent=0
    #allocation3 [shape = 'u8[65536]{0}', space=vmem, size = 0x10000, scoped, tag = 'input window, operand 3']
    #allocation4 [shape = 'u8[98304]{0}', space=vmem, size = 0x18000, scoped, tag = 'output window, operand 0']
    loop: start=0, step=1, limit=6
    $region2: #{vit_forward.16} parent=1 // loop_pre_header
      _
    $region3: #{vit_forward.16} parent=1 // loop_header
      %s11 = sphi 0, %s15
      %p12 = scmp.ge.s32.totalorder %s11, 6
      %s18 = sphi 0, %s30
      %s19 = sphi 0, %s26
      %s20 = sphi 0, %s18
      %s21 = sphi 0, %s19
      %s22 = sphi 0, %s20
      %s23 = sphi 0, %s21
      %s33 = sphi 0, %s35
      %s36 = sphi 0, %s33
      %s37 = sphi 0, %s36
      %s53 = sphi 0, %s37
      %s57 = sphi 0, %s57
      %s59 = sphi 0, %s57
      %s60 = sphi 0, %s59
      %s74 = sphi 0, %s60
      %s78 = sphi 0, %s78
      %s80 = sphi 0, %s78
      %s81 = sphi 0, %s80
      %s95 = sphi 0, %s81
      %s101 = sphi 0, %s103
      %s104 = sphi 0, %s101
      %s105 = sphi 0, %s104
      %s121 = sphi 0, %s105
      %s127 = sphi 0, %s129
      %s130 = sphi 0, %s127
      %s131 = sphi 0, %s130
      %s147 = sphi 0, %s131
      %s155 = sphi 0, %s157
      %s158 = sphi 0, %s155
      %s159 = sphi 0, %s158
      %s175 = sphi 0, %s159
    $region4: #{vit_forward.16} parent=1 // loop_header_branch
      %14 = sbr.rel (%p12) target = $region8
    $region5: #{vit_forward.16} parent=1 // loop_body
      %s16 = ssub.s32 %s11, 1
      %s17 = ssub.s32 %s11, 2
      %s24 = sadd.s32 1, %s19
      %p25 = scmp.ge.s32.totalorder %s24, 4
      %s26 = scalar_select %p25, 0, %s24
      %s27 = sadd.s32 1, %s18
      %s28 = scalar_select %p25, %s27, %s18
      %p29 = scmp.ge.s32.totalorder %s28, 1
      %s30 = scalar_select %p29, 0, %s28
      %s31 = ssub.s32 %s18, %s30
      %p32 = scmp.eq.s32.totalorder %s31, 0
      %s34 = sadd.s32 %s33, 1
      %s35 = scalar_select %p32, %s33, %s34
      %p38 = pneg %p32
      %p39 = scmp.eq.s32.totalorder %s11, 3
      %p40 = por %p38, %p39
      %p41 = scmp.ne.s32.totalorder %s33, %s36
      %p42 = scmp.eq.s32.totalorder %s11, 0
      %p43 = por %p41, %p42
      %p44 = scmp.ne.s32.totalorder %s33, %s36
      %p45 = scmp.eq.s32.totalorder %s16, 3
      %p46 = por %p44, %p45
      %p47 = scmp.ne.s32.totalorder %s36, %s37
      %p48 = scmp.eq.s32.totalorder %s16, 0
      %p49 = por %p47, %p48
      %p50 = scmp.ne.s32.totalorder %s36, %s37
      %p51 = scmp.eq.s32.totalorder %s17, 3
      %p52 = por %p50, %p51
      %p54 = scmp.ne.s32.totalorder %s37, %s53
      %p55 = scmp.eq.s32.totalorder %s17, 0
      %p56 = por %p54, %p55
      %s58 = sadd.s32 %s57, 1
      %p61 = scmp.eq.s32.totalorder %s11, 3
      %p62 = scmp.ne.s32.totalorder %s57, %s59
      %p63 = scmp.eq.s32.totalorder %s11, 0
      %p64 = por %p62, %p63
      %p65 = scmp.ne.s32.totalorder %s57, %s59
      %p66 = scmp.eq.s32.totalorder %s16, 3
      %p67 = por %p65, %p66
      %p68 = scmp.ne.s32.totalorder %s59, %s60
      %p69 = scmp.eq.s32.totalorder %s16, 0
      %p70 = por %p68, %p69
      %p71 = scmp.ne.s32.totalorder %s59, %s60
      %p72 = scmp.eq.s32.totalorder %s17, 3
      %p73 = por %p71, %p72
      %p75 = scmp.ne.s32.totalorder %s60, %s74
      %p76 = scmp.eq.s32.totalorder %s17, 0
      %p77 = por %p75, %p76
      %s79 = sadd.s32 %s78, 1
      %p82 = scmp.eq.s32.totalorder %s11, 3
      %p83 = scmp.ne.s32.totalorder %s78, %s80
      %p84 = scmp.eq.s32.totalorder %s11, 0
      %p85 = por %p83, %p84
      %p86 = scmp.ne.s32.totalorder %s78, %s80
      %p87 = scmp.eq.s32.totalorder %s16, 3
      %p88 = por %p86, %p87
      %p89 = scmp.ne.s32.totalorder %s80, %s81
      %p90 = scmp.eq.s32.totalorder %s16, 0
      %p91 = por %p89, %p90
      %p92 = scmp.ne.s32.totalorder %s80, %s81
      %p93 = scmp.eq.s32.totalorder %s17, 3
      %p94 = por %p92, %p93
      %p96 = scmp.ne.s32.totalorder %s81, %s95
      %p97 = scmp.eq.s32.totalorder %s17, 0
      %p98 = por %p96, %p97
      %s99 = ssub.s32 %s19, %s26
      %p100 = scmp.eq.s32.totalorder %s99, 0
      %s102 = sadd.s32 %s101, 1
      %s103 = scalar_select %p100, %s101, %s102
      %p106 = pneg %p100
      %p107 = scmp.eq.s32.totalorder %s11, 3
      %p108 = por %p106, %p107
      %p109 = scmp.ne.s32.totalorder %s101, %s104
      %p110 = scmp.eq.s32.totalorder %s11, 0
      %p111 = por %p109, %p110
      %p112 = scmp.ne.s32.totalorder %s101, %s104
      %p113 = scmp.eq.s32.totalorder %s16, 3
      %p114 = por %p112, %p113
      %p115 = scmp.ne.s32.totalorder %s104, %s105
      %p116 = scmp.eq.s32.totalorder %s16, 0
      %p117 = por %p115, %p116
      %p118 = scmp.ne.s32.totalorder %s104, %s105
      %p119 = scmp.eq.s32.totalorder %s17, 3
      %p120 = por %p118, %p119
      %p122 = scmp.ne.s32.totalorder %s105, %s121
      %p123 = scmp.eq.s32.totalorder %s17, 0
      %p124 = por %p122, %p123
      %s125 = ssub.s32 %s19, %s26
      %p126 = scmp.eq.s32.totalorder %s125, 0
      %s128 = sadd.s32 %s127, 1
      %s129 = scalar_select %p126, %s127, %s128
      %p132 = pneg %p126
      %p133 = scmp.eq.s32.totalorder %s11, 3
      %p134 = por %p132, %p133
      %p135 = scmp.ne.s32.totalorder %s127, %s130
      %p136 = scmp.eq.s32.totalorder %s11, 0
      %p137 = por %p135, %p136
      %p138 = scmp.ne.s32.totalorder %s127, %s130
      %p139 = scmp.eq.s32.totalorder %s16, 3
      %p140 = por %p138, %p139
      %p141 = scmp.ne.s32.totalorder %s130, %s131
      %p142 = scmp.eq.s32.totalorder %s16, 0
      %p143 = por %p141, %p142
      %p144 = scmp.ne.s32.totalorder %s130, %s131
      %p145 = scmp.eq.s32.totalorder %s17, 3
      %p146 = por %p144, %p145
      %p148 = scmp.ne.s32.totalorder %s131, %s147
      %p149 = scmp.eq.s32.totalorder %s17, 0
      %p150 = por %p148, %p149
      %s151 = ssub.s32 %s18, %s30
      %s152 = ssub.s32 %s19, %s26
      %s153 = sor.u32 %s151, %s152
      %p154 = scmp.eq.s32.totalorder %s153, 0
      %s156 = sadd.s32 %s155, 1
      %s157 = scalar_select %p154, %s155, %s156
      %p160 = pneg %p154
      %p161 = scmp.eq.s32.totalorder %s11, 3
      %p162 = por %p160, %p161
      %p163 = scmp.ne.s32.totalorder %s155, %s158
      %p164 = scmp.eq.s32.totalorder %s11, 0
      %p165 = por %p163, %p164
      %p166 = scmp.ne.s32.totalorder %s155, %s158
      %p167 = scmp.eq.s32.totalorder %s16, 3
      %p168 = por %p166, %p167
      %p169 = scmp.ne.s32.totalorder %s158, %s159
      %p170 = scmp.eq.s32.totalorder %s16, 0
      %p171 = por %p169, %p170
      %p172 = scmp.ne.s32.totalorder %s158, %s159
      %p173 = scmp.eq.s32.totalorder %s17, 3
      %p174 = por %p172, %p173
      %p176 = scmp.ne.s32.totalorder %s159, %s175
      %p177 = scmp.eq.s32.totalorder %s17, 0
      %p178 = por %p176, %p177
      %p179 = scmp.le.s32.totalorder 1, %s11
      %p180 = scmp.lt.s32.totalorder %s11, 5
      %p181 = pnand %p179, %p180
      %p182 = pneg %p181
      // Predicated region
      $region9: #{vit_forward.16} parent=5 // pred_check
        _
      $region10: #{vit_forward.16} parent=5 // pred_check_branch
        %184 = sbr.rel (%p181) target = $region12
      $region11: #{vit_forward.16} parent=5 // pred_region
        %s185 = ssub.s32 %s11, 1
        // Predicated region
        $region13: #{vit_forward.16} parent=11 // pred_check
          %p186 = pneg %p49
        $region14: #{vit_forward.16} parent=11 // pred_check_branch
          %188 = sbr.rel (%p186) target = $region16
        $region15: #{vit_forward.16} parent=11 // pred_region
          %s189 = smul.u32 6, %s20
          %p190 = scmp.lt.s32.totalorder %s189, 5
          %s191 = scalar_select %p190, %s189, 5
          %s192 = smul.addr %s191, 4
          %s193 = scalar_lea.vmem %s0, %s192
          %s194 = smul.u32 6, %s20
        $region16: #{vit_forward.16} parent=11 // pred_fallthru
          _
        // Predicated region
        $region17: #{vit_forward.16} parent=11 // pred_check
          %p195 = pneg %p70
        $region18: #{vit_forward.16} parent=11 // pred_check_branch
          %197 = sbr.rel (%p195) target = $region20
        $region19: #{vit_forward.16} parent=11 // pred_region
          _
        $region20: #{vit_forward.16} parent=11 // pred_fallthru
          _
        // Predicated region
        $region21: #{vit_forward.16} parent=11 // pred_check
          %p198 = pneg %p91
        $region22: #{vit_forward.16} parent=11 // pred_check_branch
          %200 = sbr.rel (%p198) target = $region24
        $region23: #{vit_forward.16} parent=11 // pred_region
          _
        $region24: #{vit_forward.16} parent=11 // pred_fallthru
          _
      $region12: #{vit_forward.16} parent=5 // pred_fallthru
        _
      %p201 = scmp.lt.s32.totalorder %s11, 4
      // Predicated region
      $region25: #{vit_forward.16} parent=5 // pred_check
        %p202 = pneg %p201
      $region26: #{vit_forward.16} parent=5 // pred_check_branch
        %204 = sbr.rel (%p202) target = $region28
      $region27: #{vit_forward.16} parent=5 // pred_region
        // Predicated region
        $region29: #{vit_forward.16} parent=27 // pred_check
          %p205 = pneg %p111
        $region30: #{vit_forward.16} parent=27 // pred_check_branch
          %207 = sbr.rel (%p205) target = $region32
        $region31: #{vit_forward.16} parent=27 // pred_region
          %s208 = sand.u32 %s101, 1
          %s209 = sand.u32 %s101, 1
          %s210 = smul.addr %s209, 64
          %s211 = scalar_lea.vmem [#allocation3], %s210
          %s212 = smul.u32 4, %s19
          %s213 = smul.addr %s212, 4
          %s214 = scalar_lea.vmem %s3, %s213
          // Predicated region
          $region33: #{vit_forward.16} parent=31 // pred_check
            _
          $region34: #{vit_forward.16} parent=31 // pred_check_branch
            %216 = sbr.rel (0) target = $region36
          $region35: #{vit_forward.16} parent=31 // pred_region
            // Predicated region
            $region37: #{vit_forward.16} parent=35 // pred_check
              _
            $region38: #{vit_forward.16} parent=35 // pred_check_branch
              %218 = sbr.rel (0) target = $region40
            $region39: #{vit_forward.16} parent=35 // pred_region
              loop: start=0, step=1, limit=1
              $region41: #{vit_forward.16} parent=39 // loop_pre_header
                _
              $region42: #{vit_forward.16} parent=39 // loop_header
                %s220 = sphi 0, %s224
                %p221 = scmp.ge.s32.totalorder %s220, 1
                %s225 = sphi %s214, %s214
                %s226 = sphi %s211, %s211
              $region43: #{vit_forward.16} parent=39 // loop_header_branch
                %223 = sbr.rel (%p221) target = $region47
              $region44: #{vit_forward.16} parent=39 // loop_body
                %v227 = vld [vmem:[%s225] sm:$0xff]
                %228 = vst [vmem:[%s226] sm:$0xff] %v227
                %v229 = vld [vmem:[%s225 + $0x8] sm:$0xff]
                %230 = vst [vmem:[%s226 + $0x8] sm:$0xff] %v229
                %v231 = vld [vmem:[%s225 + $0x40] sm:$0xff]
                %232 = vst [vmem:[%s226 + $0x10] sm:$0xff] %v231
                %v233 = vld [vmem:[%s225 + $0x48] sm:$0xff]
                %234 = vst [vmem:[%s226 + $0x18] sm:$0xff] %v233
                %v235 = vld [vmem:[%s225 + $0x80] sm:$0xff]
                %236 = vst [vmem:[%s226 + $0x20] sm:$0xff] %v235
                %v237 = vld [vmem:[%s225 + $0x88] sm:$0xff]
                %238 = vst [vmem:[%s226 + $0x28] sm:$0xff] %v237
                %v239 = vld [vmem:[%s225 + $0xc0] sm:$0xff]
                %240 = vst [vmem:[%s226 + $0x30] sm:$0xff] %v239
                %v241 = vld [vmem:[%s225 + $0xc8] sm:$0xff]
                %242 = vst [vmem:[%s226 + $0x38] sm:$0xff] %v241
              $region45: #{vit_forward.16} parent=39 // loop_footer
                %s224 = sadd.s32 1, %s220
              $region46: #{vit_forward.16} parent=39 // loop_footer_branch
                %219 = sbr.rel target = $region42
              $region47: #{vit_forward.16} parent=39 // loop_exit
                _
            $region40: #{vit_forward.16} parent=35 // pred_fallthru
              _
            // Predicated region
            $region48: #{vit_forward.16} parent=35 // pred_check
              _
            $region49: #{vit_forward.16} parent=35 // pred_check_branch
              %244 = sbr.rel target = $region51
            $region50: #{vit_forward.16} parent=35 // pred_region
              _
            $region51: #{vit_forward.16} parent=35 // pred_fallthru
              _
          $region36: #{vit_forward.16} parent=31 // pred_fallthru
            _
          %245 = vnop
        $region32: #{vit_forward.16} parent=27 // pred_fallthru
          _
        // Predicated region
        $region52: #{vit_forward.16} parent=27 // pred_check
          %p246 = pneg %p137
        $region53: #{vit_forward.16} parent=27 // pred_check_branch
          %248 = sbr.rel (%p246) target = $region55
        $region54: #{vit_forward.16} parent=27 // pred_region
          %s249 = smul.u32 4, %s19
          %p250 = scmp.lt.s32.totalorder %s249, 15
          %s251 = scalar_select %p250, %s249, 15
          %s252 = scalar_lea.vmem %s4, %s251
          %s253 = smul.u32 4, %s19
        $region55: #{vit_forward.16} parent=27 // pred_fallthru
          _
      $region28: #{vit_forward.16} parent=5 // pred_fallthru
        _
      %p254 = scmp.le.s32.totalorder 1, %s11
      %p255 = scmp.lt.s32.totalorder %s11, 5
      %p256 = pnand %p254, %p255
      %p257 = pneg %p256
      // Predicated region
      $region56: #{vit_forward.16} parent=5 // pred_check
        _
      $region57: #{vit_forward.16} parent=5 // pred_check_branch
        %259 = sbr.rel (%p256) target = $region59
      $region58: #{vit_forward.16} parent=5 // pred_region
        %s260 = ssub.s32 %s11, 1
        %s261 = sand.u32 %s104, 1
        %s262 = sand.u32 %s104, 1
        %s263 = smul.addr %s262, 64
        %s264 = scalar_lea.vmem [#allocation3], %s263
        // Predicated region
        $region60: #{vit_forward.16} parent=58 // pred_check
          %p265 = pneg %p117
        $region61: #{vit_forward.16} parent=58 // pred_check_branch
          %267 = sbr.rel (%p265) target = $region63
        $region62: #{vit_forward.16} parent=58 // pred_region
          _
        $region63: #{vit_forward.16} parent=58 // pred_fallthru
          _
        %s268 = smul.u32 6, %s20
        %p269 = scmp.lt.s32.totalorder %s268, 5
        %s270 = scalar_select %p269, %s268, 5
        %s271 = smul.addr %s270, 4
        %s272 = scalar_lea.vmem %s0, %s271
        %p273 = pneg %p49
        %p274 = pneg %p46
        %p275 = pneg %p70
        %p276 = pneg %p67
        %p277 = pneg %p91
        %p278 = pneg %p88
        %s279 = sand.u32 %s104, 1
        %s280 = sand.u32 %s104, 1
        %s281 = smul.addr %s280, 64
        %s282 = scalar_lea.vmem [#allocation3], %s281
        %p283 = pneg %p117
        %p284 = pneg %p114
        %s285 = smul.u32 4, %s21
        %p286 = scmp.lt.s32.totalorder %s285, 15
        %s287 = scalar_select %p286, %s285, 15
        %s288 = scalar_lea.vmem %s4, %s287
        %p289 = pneg %p143
        %p290 = pneg %p140
        %p291 = pneg %p171
        %p292 = pneg %p168
        %s293 = sand.u32 %s158, 1
        %s294 = sand.u32 %s158, 1
        %s295 = smul.addr %s294, 96
        %s296 = scalar_lea.vmem [#allocation4], %s295
        %s297 = smul.u32 6, %s20
        %p298 = scmp.lt.s32.totalorder %s297, 5
        %s299 = scalar_select %p298, %s297, 5
        %s300 = smul.addr %s299, 4
        %s301 = scalar_lea.vmem %s0, %s300
        %s302 = smul.u32 6, %s20
        %s303 = smul.u32 4, %s21
        %s304 = smul.u32 4, %s21
        %p305 = scmp.lt.s32.totalorder %s304, 15
        %s306 = scalar_select %p305, %s304, 15
        %s307 = scalar_lea.vmem %s4, %s306
        %s308 = smul.u32 4, %s21
        %s309 = smul.u32 6, %s20
        %s310 = smul.u32 4, %s21
        %p312 = scmp.eq.s32.totalorder %s21, 0
        // Predicated region
        $region64: #{vit_forward.16} parent=58 // pred_check
          %p313 = pneg %p312
        $region65: #{vit_forward.16} parent=58 // pred_check_branch
          %315 = sbr.rel (%p313) target = $region67
        $region66: #{vit_forward.16} parent=58 // pred_region
          %v316 = vld [vmem:[%s301] sm:$0xf]
          %v317 = vld [vmem:[%s301 + $0x4] sm:$0xf]
          %v318 = vld [vmem:[%s301 + $0x8] sm:$0xf]
          %v319 = vld [vmem:[%s301 + $0xc] sm:$0xf]
          %v320 = vld [vmem:[%s301 + $0x10] sm:$0xf]
          %v321 = vld [vmem:[%s301 + $0x14] sm:$0xf]
          %v322 = vunpack.c.l.bf16 %v316
          %v323 = vunpack.c.l.bf16 %v317
          %v324 = vunpack.c.l.bf16 %v318
          %v325 = vunpack.c.l.bf16 %v319
          %v326 = vunpack.c.l.bf16 %v320
          %v327 = vunpack.c.l.bf16 %v321
          %vm328 = vcmask 261120
          %v329 = vsel %vm328, %v322, 0.0
          %330 = vadd.xlane.f32.xlu0 %v329
          %v331 = vpop.xlane.xlu0 %330
          %v332 = vsel %vm328, %v323, 0.0
          %333 = vadd.xlane.f32.xlu0 %v332
          %v334 = vpop.xlane.xlu0 %333
          %v335 = vsel %vm328, %v324, 0.0
          %336 = vadd.xlane.f32.xlu0 %v335
          %v337 = vpop.xlane.xlu0 %336
          %v338 = vsel %vm328, %v325, 0.0
          %339 = vadd.xlane.f32.xlu0 %v338
          %v340 = vpop.xlane.xlu0 %339
          %v341 = vsel %vm328, %v326, 0.0
          %342 = vadd.xlane.f32.xlu0 %v341
          %v343 = vpop.xlane.xlu0 %342
          %v344 = vsel %vm328, %v327, 0.0
          %345 = vadd.xlane.f32.xlu0 %v344
          %v346 = vpop.xlane.xlu0 %345
          %v347 = vrcp.pop 32.0
          %v348 = vmul.f32 32.0, %v347
          %v349 = vsub.f32 1.0, %v348
          %v350 = vmul.f32 %v347, %v349
          %v351 = vadd.f32 %v347, %v350
          %vm352 = vweird.f32 %v347
          %v353 = vsel %vm352, %v347, %v351
          %v354 = vmul.f32 %v331, %v353
          %v355 = vmul.f32 %v334, %v353
          %v356 = vmul.f32 %v337, %v353
          %v357 = vmul.f32 %v340, %v353
          %v358 = vmul.f32 %v343, %v353
          %v359 = vmul.f32 %v346, %v353
          %v360 = vsub.f32 %v322, %v354
          %v361 = vsub.f32 %v323, %v355
          %v362 = vsub.f32 %v324, %v356
          %v363 = vsub.f32 %v325, %v357
          %v364 = vsub.f32 %v326, %v358
          %v365 = vsub.f32 %v327, %v359
          %v366 = vmul.f32 %v360, %v360
          %v367 = vmul.f32 %v361, %v361
          %v368 = vmul.f32 %v362, %v362
          %v369 = vmul.f32 %v363, %v363
          %v370 = vmul.f32 %v364, %v364
          %v371 = vmul.f32 %v365, %v365
          %v372 = vsel %vm328, %v366, 0.0
          %373 = vadd.xlane.f32.xlu0 %v372
          %v374 = vpop.xlane.xlu0 %373
          %v375 = vsel %vm328, %v367, 0.0
          %376 = vadd.xlane.f32.xlu0 %v375
          %v377 = vpop.xlane.xlu0 %376
          %v378 = vsel %vm328, %v368, 0.0
          %379 = vadd.xlane.f32.xlu0 %v378
          %v380 = vpop.xlane.xlu0 %379
          %v381 = vsel %vm328, %v369, 0.0
          %382 = vadd.xlane.f32.xlu0 %v381
          %v383 = vpop.xlane.xlu0 %382
          %v384 = vsel %vm328, %v370, 0.0
          %385 = vadd.xlane.f32.xlu0 %v384
          %v386 = vpop.xlane.xlu0 %385
          %v387 = vsel %vm328, %v371, 0.0
          %388 = vadd.xlane.f32.xlu0 %v387
          %v389 = vpop.xlane.xlu0 %388
          %v390 = vmul.f32 %v374, %v353
          %v391 = vmul.f32 %v377, %v353
          %v392 = vmul.f32 %v380, %v353
          %v393 = vmul.f32 %v383, %v353
          %v394 = vmul.f32 %v386, %v353
          %v395 = vmul.f32 %v389, %v353
          %v396 = vadd.f32 %v390, 1e-05
          %v397 = vadd.f32 %v391, 1e-05
          %v398 = vadd.f32 %v392, 1e-05
          %v399 = vadd.f32 %v393, 1e-05
          %v400 = vadd.f32 %v394, 1e-05
          %v401 = vadd.f32 %v395, 1e-05
          %v402 = vrsqrt.pop %v396
          %v403 = vmul.f32 %v402, %v396
          %v404 = vmul.f32 %v403, %v402
          %v405 = vmul.f32 0.5, %v404
          %v406 = vsub.f32 1.5, %v405
          %v407 = vmul.f32 %v402, %v406
          %vm408 = vweird.f32 %v396
          %vm409 = vweird.f32 %v402
          %vm410 = vmor %vm408, %vm409
          %v411 = vsel %vm410, %v402, %v407
          %v412 = vrsqrt.pop %v397
          %v413 = vmul.f32 %v412, %v397
          %v414 = vmul.f32 %v413, %v412
          %v415 = vmul.f32 0.5, %v414
          %v416 = vsub.f32 1.5, %v415
          %v417 = vmul.f32 %v412, %v416
          %vm418 = vweird.f32 %v397
          %vm419 = vweird.f32 %v412
          %vm420 = vmor %vm418, %vm419
          %v421 = vsel %vm420, %v412, %v417
          %v422 = vrsqrt.pop %v398
          %v423 = vmul.f32 %v422, %v398
          %v424 = vmul.f32 %v423, %v422
          %v425 = vmul.f32 0.5, %v424
          %v426 = vsub.f32 1.5, %v425
          %v427 = vmul.f32 %v422, %v426
          %vm428 = vweird.f32 %v398
          %vm429 = vweird.f32 %v422
          %vm430 = vmor %vm428, %vm429
          %v431 = vsel %vm430, %v422, %v427
          %v432 = vrsqrt.pop %v399
          %v433 = vmul.f32 %v432, %v399
          %v434 = vmul.f32 %v433, %v432
          %v435 = vmul.f32 0.5, %v434
          %v436 = vsub.f32 1.5, %v435
          %v437 = vmul.f32 %v432, %v436
          %vm438 = vweird.f32 %v399
          %vm439 = vweird.f32 %v432
          %vm440 = vmor %vm438, %vm439
          %v441 = vsel %vm440, %v432, %v437
          %v442 = vrsqrt.pop %v400
          %v443 = vmul.f32 %v442, %v400
          %v444 = vmul.f32 %v443, %v442
          %v445 = vmul.f32 0.5, %v444
          %v446 = vsub.f32 1.5, %v445
          %v447 = vmul.f32 %v442, %v446
          %vm448 = vweird.f32 %v400
          %vm449 = vweird.f32 %v442
          %vm450 = vmor %vm448, %vm449
          %v451 = vsel %vm450, %v442, %v447
          %v452 = vrsqrt.pop %v401
          %v453 = vmul.f32 %v452, %v401
          %v454 = vmul.f32 %v453, %v452
          %v455 = vmul.f32 0.5, %v454
          %v456 = vsub.f32 1.5, %v455
          %v457 = vmul.f32 %v452, %v456
          %vm458 = vweird.f32 %v401
          %vm459 = vweird.f32 %v452
          %vm460 = vmor %vm458, %vm459
          %v461 = vsel %vm460, %v452, %v457
          %v462 = vmul.f32 %v360, %v411
          %v463 = vmul.f32 %v361, %v421
          %v464 = vmul.f32 %v362, %v431
          %v465 = vmul.f32 %v363, %v441
          %v466 = vmul.f32 %v364, %v451
          %v467 = vmul.f32 %v365, %v461
          %v468 = vld [vmem:[%s1] sm:$0x1]
          %v470 = vperm.slane %v468, 0
          %v472 = vmul.f32 %v462, %v470
          %v473 = vmul.f32 %v463, %v470
          %v474 = vmul.f32 %v464, %v470
          %v475 = vmul.f32 %v465, %v470
          %v476 = vmul.f32 %v466, %v470
          %v477 = vmul.f32 %v467, %v470
          %v478 = vld [vmem:[%s2] sm:$0x1]
          %v480 = vperm.slane %v478, 0
          %v482 = vadd.f32 %v472, %v480
          %v483 = vadd.f32 %v473, %v480
          %v484 = vadd.f32 %v474, %v480
          %v485 = vadd.f32 %v475, %v480
          %v486 = vadd.f32 %v476, %v480
          %v487 = vadd.f32 %v477, %v480
          %v488 = vpack.c.bf16 %v482, %v482
          %v489 = vpack.c.bf16 %v483, %v483
          %v490 = vpack.c.bf16 %v484, %v484
          %v491 = vpack.c.bf16 %v485, %v485
          %v492 = vpack.c.bf16 %v486, %v486
          %v493 = vpack.c.bf16 %v487, %v487
          %vm494 = vcmask 257024
          %495 = vst.msk [vmem:[#allocation2] sm:$0xf] %vm494, %v488
          %496 = vst.msk [vmem:[#allocation2 + $0x4] sm:$0xf] %vm494, %v489
          %497 = vst.msk [vmem:[#allocation2 + $0x8] sm:$0xf] %vm494, %v490
          %498 = vst.msk [vmem:[#allocation2 + $0xc] sm:$0xf] %vm494, %v491
          %499 = vst.msk [vmem:[#allocation2 + $0x10] sm:$0xf] %vm494, %v492
          %500 = vst.msk [vmem:[#allocation2 + $0x14] sm:$0xf] %vm494, %v493
        $region67: #{vit_forward.16} parent=58 // pred_fallthru
          _
        %v501 = vld [vmem:[#allocation2] sm:$0xf]
        %v502 = vld [vmem:[#allocation2 + $0x4] sm:$0xf]
        %v503 = vld [vmem:[#allocation2 + $0x8] sm:$0xf]
        %v504 = vld [vmem:[#allocation2 + $0xc] sm:$0xf]
        %v505 = vld [vmem:[#allocation2 + $0x10] sm:$0xf]
        %v506 = vld [vmem:[#allocation2 + $0x14] sm:$0xf]
        %v507 = vld [vmem:[%s264] sm:$0xff]
        %v508 = vld [vmem:[%s264 + $0x8] sm:$0xff]
        %v509 = vld [vmem:[%s264 + $0x10] sm:$0xff]
        %v510 = vld [vmem:[%s264 + $0x18] sm:$0xff]
        %v511 = vld [vmem:[%s264 + $0x20] sm:$0xff]
        %v512 = vld [vmem:[%s264 + $0x28] sm:$0xff]
        %v513 = vld [vmem:[%s264 + $0x30] sm:$0xff]
        %v514 = vld [vmem:[%s264 + $0x38] sm:$0xff]
        %v515 = vld [vmem:[%s307] sm:$0xf]
        %v517 = vperm.slane %v515, 0
        %v518 = vperm.slane %v515, 1
        %v519 = vperm.slane %v515, 2
        %v520 = vperm.slane %v515, 3
        %v531 = vunpack.c.l.b16 %v501
        %v532 = vunpack.c.l.b16 %v502
        %v533 = vunpack.c.l.b16 %v503
        %v534 = vunpack.c.l.b16 %v504
        %v535 = vunpack.c.l.b16 %v505
        %v536 = vunpack.c.l.b16 %v506
        %v537 = vpack.c.b16 %v532, %v531
        %v538 = vpack.c.b16 %v534, %v533
        %v539 = vpack.c.b16 %v536, %v535
        %v548 = vunpack.c.l.b16 %v507
        %v549 = vunpack.c.h.b16 %v507
        %v550 = vunpack.c.l.b16 %v508
        %v551 = vunpack.c.h.b16 %v508
        %v552 = vunpack.c.l.b16 %v509
        %v553 = vunpack.c.h.b16 %v509
        %v554 = vunpack.c.l.b16 %v510
        %v555 = vunpack.c.h.b16 %v510
        %v556 = vunpack.c.l.b16 %v511
        %v557 = vunpack.c.h.b16 %v511
        %v558 = vunpack.c.l.b16 %v512
        %v559 = vunpack.c.h.b16 %v512
        %v560 = vunpack.c.l.b16 %v513
        %v561 = vunpack.c.h.b16 %v513
        %v562 = vunpack.c.l.b16 %v514
        %v563 = vunpack.c.h.b16 %v514
        %v564 = vpack.c.b16 %v552, %v548
        %v565 = vpack.c.b16 %v553, %v549
        %v566 = vpack.c.b16 %v554, %v550
        %v567 = vpack.c.b16 %v555, %v551
        %v568 = vpack.c.b16 %v560, %v556
        %v569 = vpack.c.b16 %v561, %v557
        %v570 = vpack.c.b16 %v562, %v558
        %v571 = vpack.c.b16 %v563, %v559
        %vm580 = vcmask 261120
        %v582 = vsel %vm580, %v537, 0
        %v585 = vsel %vm580, %v538, 0
        %v588 = vsel %vm580, %v539, 0
        %590 = vmatpush.bf16.msra.mxu0 0
        %591 = vmatpush.bf16.msra.mxu0 0
        %592 = vmatpush.bf16.msra.mxu0 0
        %593 = vmatpush.bf16.msra.mxu0 0
        %594 = vmatpush.bf16.msra.mxu0 0
        %595 = vmatpush.bf16.msra.mxu0 0
        %596 = vmatpush.bf16.msra.mxu0 %v568
        %597 = vmatpush.bf16.msra.mxu0 %v564
        %598 = vmatmul.bf16.gmra.mxu0 %v582
        %v599 = vpop.f32.mrf.mxu0
        %v600 = vadd.f32 %v517, %v599
        %v601 = vpop.f32.mrf.mxu0
        %v602 = vadd.f32 %v517, %v601
        %603 = vmatmul.bf16.gmra.mxu0 %v585
        %v604 = vpop.f32.mrf.mxu0
        %v605 = vadd.f32 %v517, %v604
        %v606 = vpop.f32.mrf.mxu0
        %v607 = vadd.f32 %v517, %v606
        %608 = vmatmul.bf16.gmra.mxu0 %v588
        %v609 = vpop.f32.mrf.mxu0
        %v610 = vadd.f32 %v517, %v609
        %v611 = vpop.f32.mrf.mxu0
        %v612 = vadd.f32 %v517, %v611
        %613 = vdwg.mxu0
        %614 = vmatpush.bf16.msra.mxu0 0
        %615 = vmatpush.bf16.msra.mxu0 0
        %616 = vmatpush.bf16.msra.mxu0 0
        %617 = vmatpush.bf16.msra.mxu0 0
        %618 = vmatpush.bf16.msra.mxu0 0
        %619 = vmatpush.bf16.msra.mxu0 0
        %620 = vmatpush.bf16.msra.mxu0 %v569
        %621 = vmatpush.bf16.msra.mxu0 %v565
        %622 = vmatmul.bf16.gmra.mxu0 %v582
        %v623 = vpop.f32.mrf.mxu0
        %v624 = vadd.f32 %v518, %v623
        %v625 = vpop.f32.mrf.mxu0
        %v626 = vadd.f32 %v518, %v625
        %627 = vmatmul.bf16.gmra.mxu0 %v585
        %v628 = vpop.f32.mrf.mxu0
        %v629 = vadd.f32 %v518, %v628
        %v630 = vpop.f32.mrf.mxu0
        %v631 = vadd.f32 %v518, %v630
        %632 = vmatmul.bf16.gmra.mxu0 %v588
        %v633 = vpop.f32.mrf.mxu0
        %v634 = vadd.f32 %v518, %v633
        %v635 = vpop.f32.mrf.mxu0
        %v636 = vadd.f32 %v518, %v635
        %637 = vdwg.mxu0
        %638 = vmatpush.bf16.msra.mxu0 0
        %639 = vmatpush.bf16.msra.mxu0 0
        %640 = vmatpush.bf16.msra.mxu0 0
        %641 = vmatpush.bf16.msra.mxu0 0
        %642 = vmatpush.bf16.msra.mxu0 0
        %643 = vmatpush.bf16.msra.mxu0 0
        %644 = vmatpush.bf16.msra.mxu0 %v570
        %645 = vmatpush.bf16.msra.mxu0 %v566
        %646 = vmatmul.bf16.gmra.mxu0 %v582
        %v647 = vpop.f32.mrf.mxu0
        %v648 = vadd.f32 %v519, %v647
        %v649 = vpop.f32.mrf.mxu0
        %v650 = vadd.f32 %v519, %v649
        %651 = vmatmul.bf16.gmra.mxu0 %v585
        %v652 = vpop.f32.mrf.mxu0
        %v653 = vadd.f32 %v519, %v652
        %v654 = vpop.f32.mrf.mxu0
        %v655 = vadd.f32 %v519, %v654
        %656 = vmatmul.bf16.gmra.mxu0 %v588
        %v657 = vpop.f32.mrf.mxu0
        %v658 = vadd.f32 %v519, %v657
        %v659 = vpop.f32.mrf.mxu0
        %v660 = vadd.f32 %v519, %v659
        %661 = vdwg.mxu0
        %662 = vmatpush.bf16.msra.mxu0 0
        %663 = vmatpush.bf16.msra.mxu0 0
        %664 = vmatpush.bf16.msra.mxu0 0
        %665 = vmatpush.bf16.msra.mxu0 0
        %666 = vmatpush.bf16.msra.mxu0 0
        %667 = vmatpush.bf16.msra.mxu0 0
        %668 = vmatpush.bf16.msra.mxu0 %v571
        %669 = vmatpush.bf16.msra.mxu0 %v567
        %670 = vmatmul.bf16.gmra.mxu0 %v582
        %v671 = vpop.f32.mrf.mxu0
        %v672 = vadd.f32 %v520, %v671
        %v673 = vpop.f32.mrf.mxu0
        %v674 = vadd.f32 %v520, %v673
        %675 = vmatmul.bf16.gmra.mxu0 %v585
        %v676 = vpop.f32.mrf.mxu0
        %v677 = vadd.f32 %v520, %v676
        %v678 = vpop.f32.mrf.mxu0
        %v679 = vadd.f32 %v520, %v678
        %680 = vmatmul.bf16.gmra.mxu0 %v588
        %v681 = vpop.f32.mrf.mxu0
        %v682 = vadd.f32 %v520, %v681
        %v683 = vpop.f32.mrf.mxu0
        %v684 = vadd.f32 %v520, %v683
        %685 = vdwg.mxu0
        %v686 = vmax.f32 %v600, 0.0
        %v687 = vmax.f32 %v624, 0.0
        %v688 = vmax.f32 %v648, 0.0
        %v689 = vmax.f32 %v672, 0.0
        %v690 = vmax.f32 %v602, 0.0
        %v691 = vmax.f32 %v626, 0.0
        %v692 = vmax.f32 %v650, 0.0
        %v693 = vmax.f32 %v674, 0.0
        %v694 = vmax.f32 %v605, 0.0
        %v695 = vmax.f32 %v629, 0.0
        %v696 = vmax.f32 %v653, 0.0
        %v697 = vmax.f32 %v677, 0.0
        %v698 = vmax.f32 %v607, 0.0
        %v699 = vmax.f32 %v631, 0.0
        %v700 = vmax.f32 %v655, 0.0
        %v701 = vmax.f32 %v679, 0.0
        %v702 = vmax.f32 %v610, 0.0
        %v703 = vmax.f32 %v634, 0.0
        %v704 = vmax.f32 %v658, 0.0
        %v705 = vmax.f32 %v682, 0.0
        %v706 = vmax.f32 %v612, 0.0
        %v707 = vmax.f32 %v636, 0.0
        %v708 = vmax.f32 %v660, 0.0
        %v709 = vmax.f32 %v684, 0.0
        %v710 = vpack.c.bf16 %v687, %v686
        %v711 = vpack.c.bf16 %v689, %v688
        %v712 = vpack.c.bf16 %v691, %v690
        %v713 = vpack.c.bf16 %v693, %v692
        %v714 = vpack.c.bf16 %v695, %v694
        %v715 = vpack.c.bf16 %v697, %v696
        %v716 = vpack.c.bf16 %v699, %v698
        %v717 = vpack.c.bf16 %v701, %v700
        %v718 = vpack.c.bf16 %v703, %v702
        %v719 = vpack.c.bf16 %v705, %v704
        %v720 = vpack.c.bf16 %v707, %v706
        %v721 = vpack.c.bf16 %v709, %v708
        %722 = vst [vmem:[%s296] sm:$0xff] %v710
        %723 = vst [vmem:[%s296 + $0x8] sm:$0xff] %v711
        %724 = vst [vmem:[%s296 + $0x10] sm:$0xff] %v712
        %725 = vst [vmem:[%s296 + $0x18] sm:$0xff] %v713
        %726 = vst [vmem:[%s296 + $0x20] sm:$0xff] %v714
        %727 = vst [vmem:[%s296 + $0x28] sm:$0xff] %v715
        %728 = vst [vmem:[%s296 + $0x30] sm:$0xff] %v716
        %729 = vst [vmem:[%s296 + $0x38] sm:$0xff] %v717
        %730 = vst [vmem:[%s296 + $0x40] sm:$0xff] %v718
        %731 = vst [vmem:[%s296 + $0x48] sm:$0xff] %v719
        %732 = vst [vmem:[%s296 + $0x50] sm:$0xff] %v720
        %733 = vst [vmem:[%s296 + $0x58] sm:$0xff] %v721
        %s734 = sand.u32 %s158, 1
        %s735 = sand.u32 %s158, 1
        %s736 = smul.addr %s735, 96
        %s737 = scalar_lea.vmem [#allocation4], %s736
        // Predicated region
        $region68: #{vit_forward.16} parent=58 // pred_check
          %p738 = pneg %p168
        $region69: #{vit_forward.16} parent=58 // pred_check_branch
          %740 = sbr.rel (%p738) target = $region71
        $region70: #{vit_forward.16} parent=58 // pred_region
          %s741 = smul.u32 6, %s20
          %s742 = smul.u32 4, %s21
          %s743 = smul.addr %s741, 16
          %s744 = sadd.s32 %s742, %s743
          %s745 = smul.addr %s744, 4
          %s746 = scalar_lea.vmem %s5, %s745
          // Predicated region
          $region72: #{vit_forward.16} parent=70 // pred_check
            _
          $region73: #{vit_forward.16} parent=70 // pred_check_branch
            %748 = sbr.rel (0) target = $region75
          $region74: #{vit_forward.16} parent=70 // pred_region
            // Predicated region
            $region76: #{vit_forward.16} parent=74 // pred_check
              _
            $region77: #{vit_forward.16} parent=74 // pred_check_branch
              %750 = sbr.rel (0) target = $region79
            $region78: #{vit_forward.16} parent=74 // pred_region
              loop: start=0, step=1, limit=1
              $region80: #{vit_forward.16} parent=78 // loop_pre_header
                _
              $region81: #{vit_forward.16} parent=78 // loop_header
                %s752 = sphi 0, %s756
                %p753 = scmp.ge.s32.totalorder %s752, 1
                %s757 = sphi %s737, %s737
                %s758 = sphi %s746, %s746
              $region82: #{vit_forward.16} parent=78 // loop_header_branch
                %755 = sbr.rel (%p753) target = $region86
              $region83: #{vit_forward.16} parent=78 // loop_body
                %v759 = vld [vmem:[%s757] sm:$0xff]
                %760 = vst [vmem:[%s758] sm:$0xff] %v759
                %v761 = vld [vmem:[%s757 + $0x8] sm:$0xff]
                %762 = vst [vmem:[%s758 + $0x8] sm:$0xff] %v761
                %v763 = vld [vmem:[%s757 + $0x10] sm:$0xff]
                %764 = vst [vmem:[%s758 + $0x40] sm:$0xff] %v763
                %v765 = vld [vmem:[%s757 + $0x18] sm:$0xff]
                %766 = vst [vmem:[%s758 + $0x48] sm:$0xff] %v765
                %v767 = vld [vmem:[%s757 + $0x20] sm:$0xff]
                %768 = vst [vmem:[%s758 + $0x80] sm:$0xff] %v767
                %v769 = vld [vmem:[%s757 + $0x28] sm:$0xff]
                %770 = vst [vmem:[%s758 + $0x88] sm:$0xff] %v769
                %v771 = vld [vmem:[%s757 + $0x30] sm:$0xff]
                %772 = vst [vmem:[%s758 + $0xc0] sm:$0xff] %v771
                %v773 = vld [vmem:[%s757 + $0x38] sm:$0xff]
                %774 = vst [vmem:[%s758 + $0xc8] sm:$0xff] %v773
                %v775 = vld [vmem:[%s757 + $0x40] sm:$0xff]
                %776 = vst [vmem:[%s758 + $0x100] sm:$0xff] %v775
                %v777 = vld [vmem:[%s757 + $0x48] sm:$0xff]
                %778 = vst [vmem:[%s758 + $0x108] sm:$0xff] %v777
                %v779 = vld [vmem:[%s757 + $0x50] sm:$0xff]
                %780 = vst [vmem:[%s758 + $0x140] sm:$0xff] %v779
                %v781 = vld [vmem:[%s757 + $0x58] sm:$0xff]
                %782 = vst [vmem:[%s758 + $0x148] sm:$0xff] %v781
              $region84: #{vit_forward.16} parent=78 // loop_footer
                %s756 = sadd.s32 1, %s752
              $region85: #{vit_forward.16} parent=78 // loop_footer_branch
                %751 = sbr.rel target = $region81
              $region86: #{vit_forward.16} parent=78 // loop_exit
                _
            $region79: #{vit_forward.16} parent=74 // pred_fallthru
              _
            // Predicated region
            $region87: #{vit_forward.16} parent=74 // pred_check
              _
            $region88: #{vit_forward.16} parent=74 // pred_check_branch
              %784 = sbr.rel target = $region90
            $region89: #{vit_forward.16} parent=74 // pred_region
              _
            $region90: #{vit_forward.16} parent=74 // pred_fallthru
              _
          $region75: #{vit_forward.16} parent=70 // pred_fallthru
            _
          %785 = vnop
        $region71: #{vit_forward.16} parent=58 // pred_fallthru
          _
      $region59: #{vit_forward.16} parent=5 // pred_fallthru
        _
      %p786 = scmp.le.s32.totalorder 2, %s11
      // Predicated region
      $region91: #{vit_forward.16} parent=5 // pred_check
        %p787 = pneg %p786
      $region92: #{vit_forward.16} parent=5 // pred_check_branch
        %789 = sbr.rel (%p787) target = $region94
      $region93: #{vit_forward.16} parent=5 // pred_region
        %s790 = ssub.s32 %s11, 2
        // Predicated region
        $region95: #{vit_forward.16} parent=93 // pred_check
          %p791 = pneg %p174
        $region96: #{vit_forward.16} parent=93 // pred_check_branch
          %793 = sbr.rel (%p791) target = $region98
        $region97: #{vit_forward.16} parent=93 // pred_region
          %s794 = sand.u32 %s159, 1
          %s795 = sand.u32 %s159, 1
          %s796 = smul.addr %s795, 96
          %s797 = scalar_lea.vmem [#allocation4], %s796
        $region98: #{vit_forward.16} parent=93 // pred_fallthru
          _
      $region94: #{vit_forward.16} parent=5 // pred_fallthru
        _
    $region6: #{vit_forward.16} parent=1 // loop_footer
      %s15 = sadd.s32 1, %s11
    $region7: #{vit_forward.16} parent=1 // loop_footer_branch
      %10 = sbr.rel target = $region3
    $region8: #{vit_forward.16} parent=1 // loop_exit
      _

// kernel: vit_forward.17
$region0: #{vit_forward.17}
  #allocation0 [shape = 'u32[]', space=smem, size = 0x4, offset = 0x4, fixed_abs, tag = 'smem constant byte address 0x4 - core index']
  #allocation1 [shape = 'u32[72,128]{1,0:T(1,128)}', space=vmem, size = 0x9000, scoped, tag = 'internal scratch']
  #allocation2 [shape = 'f32[48,32]{1,0:T(8,128)}', space=vmem, size = 0x6000, scoped, tag = 'scratch operand']
  %s0 = inlined_call_operand.vmem [shape: bf16[48,2048], index: 0, kind: input, shape index: {}]
  %s1 = inlined_call_operand.vmem [shape: bf16[2048,32], index: 1, kind: input, shape index: {}]
  %s2 = inlined_call_operand.vmem [shape: f32[1,32], index: 2, kind: input, shape index: {}]
  %s3 = inlined_call_operand.vmem [shape: bf16[48,32], index: 3, kind: input, shape index: {}]
  %s4 = inlined_call_operand.vmem [shape: bf16[48,32], index: 4, kind: output, shape index: {}]
  %s5 = sld [smem:[#allocation0]]
  $region80: #{vit_forward.17} parent=0
    _
  %s7 = ssub.s32 1, %s5
  %s8 = scalar_select 0, %s7, %s5
  $region1: #{vit_forward.17} parent=0
    #allocation3 [shape = 'u8[98304]{0}', space=vmem, size = 0x18000, scoped, tag = 'input window, operand 0']
    loop: start=0, step=1, limit=6
    $region2: #{vit_forward.17} parent=1 // loop_pre_header
      _
    $region3: #{vit_forward.17} parent=1 // loop_header
      %s10 = sphi 0, %s14
      %p11 = scmp.ge.s32.totalorder %s10, 6
      %s17 = sphi 0, %s36
      %s18 = sphi 0, %s32
      %s19 = sphi 0, %s28
      %s20 = sphi 0, %s17
      %s21 = sphi 0, %s18
      %s22 = sphi 0, %s19
      %s23 = sphi 0, %s20
      %s24 = sphi 0, %s21
      %s25 = sphi 0, %s22
      %s41 = sphi 0, %s43
      %s44 = sphi 0, %s41
      %s45 = sphi 0, %s44
      %s61 = sphi 0, %s45
      %s69 = sphi 0, %s71
      %s72 = sphi 0, %s69
      %s73 = sphi 0, %s72
      %s89 = sphi 0, %s73
      %s95 = sphi 0, %s97
      %s98 = sphi 0, %s95
      %s99 = sphi 0, %s98
      %s115 = sphi 0, %s99
      %s123 = sphi 0, %s125
      %s126 = sphi 0, %s123
      %s127 = sphi 0, %s126
      %s143 = sphi 0, %s127
      %s151 = sphi 0, %s153
      %s154 = sphi 0, %s151
      %s155 = sphi 0, %s154
      %s171 = sphi 0, %s155
    $region4: #{vit_forward.17} parent=1 // loop_header_branch
      %13 = sbr.rel (%p11) target = $region8
    $region5: #{vit_forward.17} parent=1 // loop_body
      %s15 = ssub.s32 %s10, 1
      %s16 = ssub.s32 %s10, 2
      %s26 = sadd.s32 1, %s19
      %p27 = scmp.ge.s32.totalorder %s26, 4
      %s28 = scalar_select %p27, 0, %s26
      %s29 = sadd.s32 1, %s18
      %s30 = scalar_select %p27, %s29, %s18
      %p31 = scmp.ge.s32.totalorder %s30, 1
      %s32 = scalar_select %p31, 0, %s30
      %s33 = sadd.s32 1, %s17
      %s34 = scalar_select %p31, %s33, %s17
      %p35 = scmp.ge.s32.totalorder %s34, 1
      %s36 = scalar_select %p35, 0, %s34
      %s37 = ssub.s32 %s17, %s36
      %s38 = ssub.s32 %s19, %s28
      %s39 = sor.u32 %s37, %s38
      %p40 = scmp.eq.s32.totalorder %s39, 0
      %s42 = sadd.s32 %s41, 1
      %s43 = scalar_select %p40, %s41, %s42
      %p46 = pneg %p40
      %p47 = scmp.eq.s32.totalorder %s10, 3
      %p48 = por %p46, %p47
      %p49 = scmp.ne.s32.totalorder %s41, %s44
      %p50 = scmp.eq.s32.totalorder %s10, 0
      %p51 = por %p49, %p50
      %p52 = scmp.ne.s32.totalorder %s41, %s44
      %p53 = scmp.eq.s32.totalorder %s15, 3
      %p54 = por %p52, %p53
      %p55 = scmp.ne.s32.totalorder %s44, %s45
      %p56 = scmp.eq.s32.totalorder %s15, 0
      %p57 = por %p55, %p56
      %p58 = scmp.ne.s32.totalorder %s44, %s45
      %p59 = scmp.eq.s32.totalorder %s16, 3
      %p60 = por %p58, %p59
      %p62 = scmp.ne.s32.totalorder %s45, %s61
      %p63 = scmp.eq.s32.totalorder %s16, 0
      %p64 = por %p62, %p63
      %s65 = ssub.s32 %s19, %s28
      %s66 = ssub.s32 %s18, %s32
      %s67 = sor.u32 %s65, %s66
      %p68 = scmp.eq.s32.totalorder %s67, 0
      %s70 = sadd.s32 %s69, 1
      %s71 = scalar_select %p68, %s69, %s70
      %p74 = pneg %p68
      %p75 = scmp.eq.s32.totalorder %s10, 3
      %p76 = por %p74, %p75
      %p77 = scmp.ne.s32.totalorder %s69, %s72
      %p78 = scmp.eq.s32.totalorder %s10, 0
      %p79 = por %p77, %p78
      %p80 = scmp.ne.s32.totalorder %s69, %s72
      %p81 = scmp.eq.s32.totalorder %s15, 3
      %p82 = por %p80, %p81
      %p83 = scmp.ne.s32.totalorder %s72, %s73
      %p84 = scmp.eq.s32.totalorder %s15, 0
      %p85 = por %p83, %p84
      %p86 = scmp.ne.s32.totalorder %s72, %s73
      %p87 = scmp.eq.s32.totalorder %s16, 3
      %p88 = por %p86, %p87
      %p90 = scmp.ne.s32.totalorder %s73, %s89
      %p91 = scmp.eq.s32.totalorder %s16, 0
      %p92 = por %p90, %p91
      %s93 = ssub.s32 %s18, %s32
      %p94 = scmp.eq.s32.totalorder %s93, 0
      %s96 = sadd.s32 %s95, 1
      %s97 = scalar_select %p94, %s95, %s96
      %p100 = pneg %p94
      %p101 = scmp.eq.s32.totalorder %s10, 3
      %p102 = por %p100, %p101
      %p103 = scmp.ne.s32.totalorder %s95, %s98
      %p104 = scmp.eq.s32.totalorder %s10, 0
      %p105 = por %p103, %p104
      %p106 = scmp.ne.s32.totalorder %s95, %s98
      %p107 = scmp.eq.s32.totalorder %s15, 3
      %p108 = por %p106, %p107
      %p109 = scmp.ne.s32.totalorder %s98, %s99
      %p110 = scmp.eq.s32.totalorder %s15, 0
      %p111 = por %p109, %p110
      %p112 = scmp.ne.s32.totalorder %s98, %s99
      %p113 = scmp.eq.s32.totalorder %s16, 3
      %p114 = por %p112, %p113
      %p116 = scmp.ne.s32.totalorder %s99, %s115
      %p117 = scmp.eq.s32.totalorder %s16, 0
      %p118 = por %p116, %p117
      %s119 = ssub.s32 %s17, %s36
      %s120 = ssub.s32 %s18, %s32
      %s121 = sor.u32 %s119, %s120
      %p122 = scmp.eq.s32.totalorder %s121, 0
      %s124 = sadd.s32 %s123, 1
      %s125 = scalar_select %p122, %s123, %s124
      %p128 = pneg %p122
      %p129 = scmp.eq.s32.totalorder %s10, 3
      %p130 = por %p128, %p129
      %p131 = scmp.ne.s32.totalorder %s123, %s126
      %p132 = scmp.eq.s32.totalorder %s10, 0
      %p133 = por %p131, %p132
      %p134 = scmp.ne.s32.totalorder %s123, %s126
      %p135 = scmp.eq.s32.totalorder %s15, 3
      %p136 = por %p134, %p135
      %p137 = scmp.ne.s32.totalorder %s126, %s127
      %p138 = scmp.eq.s32.totalorder %s15, 0
      %p139 = por %p137, %p138
      %p140 = scmp.ne.s32.totalorder %s126, %s127
      %p141 = scmp.eq.s32.totalorder %s16, 3
      %p142 = por %p140, %p141
      %p144 = scmp.ne.s32.totalorder %s127, %s143
      %p145 = scmp.eq.s32.totalorder %s16, 0
      %p146 = por %p144, %p145
      %s147 = ssub.s32 %s17, %s36
      %s148 = ssub.s32 %s18, %s32
      %s149 = sor.u32 %s147, %s148
      %p150 = scmp.eq.s32.totalorder %s149, 0
      %s152 = sadd.s32 %s151, 1
      %s153 = scalar_select %p150, %s151, %s152
      %p156 = pneg %p150
      %p157 = scmp.eq.s32.totalorder %s10, 3
      %p158 = por %p156, %p157
      %p159 = scmp.ne.s32.totalorder %s151, %s154
      %p160 = scmp.eq.s32.totalorder %s10, 0
      %p161 = por %p159, %p160
      %p162 = scmp.ne.s32.totalorder %s151, %s154
      %p163 = scmp.eq.s32.totalorder %s15, 3
      %p164 = por %p162, %p163
      %p165 = scmp.ne.s32.totalorder %s154, %s155
      %p166 = scmp.eq.s32.totalorder %s15, 0
      %p167 = por %p165, %p166
      %p168 = scmp.ne.s32.totalorder %s154, %s155
      %p169 = scmp.eq.s32.totalorder %s16, 3
      %p170 = por %p168, %p169
      %p172 = scmp.ne.s32.totalorder %s155, %s171
      %p173 = scmp.eq.s32.totalorder %s16, 0
      %p174 = por %p172, %p173
      %p175 = scmp.le.s32.totalorder 1, %s10
      %p176 = scmp.lt.s32.totalorder %s10, 5
      %p177 = pnand %p175, %p176
      %p178 = pneg %p177
      // Predicated region
      $region9: #{vit_forward.17} parent=5 // pred_check
        _
      $region10: #{vit_forward.17} parent=5 // pred_check_branch
        %180 = sbr.rel (%p177) target = $region12
      $region11: #{vit_forward.17} parent=5 // pred_region
        %s181 = ssub.s32 %s10, 1
        // Predicated region
        $region13: #{vit_forward.17} parent=11 // pred_check
          %p182 = pneg %p111
        $region14: #{vit_forward.17} parent=11 // pred_check_branch
          %184 = sbr.rel (%p182) target = $region16
        $region15: #{vit_forward.17} parent=11 // pred_region
          %p185 = scmp.lt.s32.totalorder %s21, 0
          %s186 = scalar_select %p185, %s21, 0
          %s187 = scalar_lea.vmem %s2, %s186
        $region16: #{vit_forward.17} parent=11 // pred_fallthru
          _
        // Predicated region
        $region17: #{vit_forward.17} parent=11 // pred_check
          %p188 = pneg %p139
        $region18: #{vit_forward.17} parent=11 // pred_check_branch
          %190 = sbr.rel (%p188) target = $region20
        $region19: #{vit_forward.17} parent=11 // pred_region
          %s191 = smul.u32 6, %s20
          %p192 = scmp.lt.s32.totalorder %s191, 5
          %s193 = scalar_select %p192, %s191, 5
          %p194 = scmp.lt.s32.totalorder %s21, 0
          %s195 = scalar_select %p194, %s21, 0
          %s196 = sadd.s32 %s195, %s193
          %s197 = smul.addr %s196, 4
          %s198 = scalar_lea.vmem %s3, %s197
          %s199 = smul.u32 6, %s20
        $region20: #{vit_forward.17} parent=11 // pred_fallthru
          _
      $region12: #{vit_forward.17} parent=5 // pred_fallthru
        _
      %p200 = scmp.lt.s32.totalorder %s10, 4
      // Predicated region
      $region21: #{vit_forward.17} parent=5 // pred_check
        %p201 = pneg %p200
      $region22: #{vit_forward.17} parent=5 // pred_check_branch
        %203 = sbr.rel (%p201) target = $region24
      $region23: #{vit_forward.17} parent=5 // pred_region
        // Predicated region
        $region25: #{vit_forward.17} parent=23 // pred_check
          %p204 = pneg %p51
        $region26: #{vit_forward.17} parent=23 // pred_check_branch
          %206 = sbr.rel (%p204) target = $region28
        $region27: #{vit_forward.17} parent=23 // pred_region
          %s207 = sand.u32 %s41, 1
          %s208 = sand.u32 %s41, 1
          %s209 = smul.addr %s208, 96
          %s210 = scalar_lea.vmem [#allocation3], %s209
          %s211 = smul.u32 6, %s17
          %s212 = smul.u32 4, %s19
          %s213 = smul.addr %s211, 16
          %s214 = sadd.s32 %s212, %s213
          %s215 = smul.addr %s214, 4
          %s216 = scalar_lea.vmem %s0, %s215
          // Predicated region
          $region29: #{vit_forward.17} parent=27 // pred_check
            _
          $region30: #{vit_forward.17} parent=27 // pred_check_branch
            %218 = sbr.rel (0) target = $region32
          $region31: #{vit_forward.17} parent=27 // pred_region
            // Predicated region
            $region33: #{vit_forward.17} parent=31 // pred_check
              _
            $region34: #{vit_forward.17} parent=31 // pred_check_branch
              %220 = sbr.rel (0) target = $region36
            $region35: #{vit_forward.17} parent=31 // pred_region
              loop: start=0, step=1, limit=1
              $region37: #{vit_forward.17} parent=35 // loop_pre_header
                _
              $region38: #{vit_forward.17} parent=35 // loop_header
                %s222 = sphi 0, %s226
                %p223 = scmp.ge.s32.totalorder %s222, 1
                %s227 = sphi %s216, %s216
                %s228 = sphi %s210, %s210
              $region39: #{vit_forward.17} parent=35 // loop_header_branch
                %225 = sbr.rel (%p223) target = $region43
              $region40: #{vit_forward.17} parent=35 // loop_body
                %v229 = vld [vmem:[%s227] sm:$0xff]
                %230 = vst [vmem:[%s228] sm:$0xff] %v229
                %v231 = vld [vmem:[%s227 + $0x8] sm:$0xff]
                %232 = vst [vmem:[%s228 + $0x8] sm:$0xff] %v231
                %v233 = vld [vmem:[%s227 + $0x40] sm:$0xff]
                %234 = vst [vmem:[%s228 + $0x10] sm:$0xff] %v233
                %v235 = vld [vmem:[%s227 + $0x48] sm:$0xff]
                %236 = vst [vmem:[%s228 + $0x18] sm:$0xff] %v235
                %v237 = vld [vmem:[%s227 + $0x80] sm:$0xff]
                %238 = vst [vmem:[%s228 + $0x20] sm:$0xff] %v237
                %v239 = vld [vmem:[%s227 + $0x88] sm:$0xff]
                %240 = vst [vmem:[%s228 + $0x28] sm:$0xff] %v239
                %v241 = vld [vmem:[%s227 + $0xc0] sm:$0xff]
                %242 = vst [vmem:[%s228 + $0x30] sm:$0xff] %v241
                %v243 = vld [vmem:[%s227 + $0xc8] sm:$0xff]
                %244 = vst [vmem:[%s228 + $0x38] sm:$0xff] %v243
                %v245 = vld [vmem:[%s227 + $0x100] sm:$0xff]
                %246 = vst [vmem:[%s228 + $0x40] sm:$0xff] %v245
                %v247 = vld [vmem:[%s227 + $0x108] sm:$0xff]
                %248 = vst [vmem:[%s228 + $0x48] sm:$0xff] %v247
                %v249 = vld [vmem:[%s227 + $0x140] sm:$0xff]
                %250 = vst [vmem:[%s228 + $0x50] sm:$0xff] %v249
                %v251 = vld [vmem:[%s227 + $0x148] sm:$0xff]
                %252 = vst [vmem:[%s228 + $0x58] sm:$0xff] %v251
              $region41: #{vit_forward.17} parent=35 // loop_footer
                %s226 = sadd.s32 1, %s222
              $region42: #{vit_forward.17} parent=35 // loop_footer_branch
                %221 = sbr.rel target = $region38
              $region43: #{vit_forward.17} parent=35 // loop_exit
                _
            $region36: #{vit_forward.17} parent=31 // pred_fallthru
              _
            // Predicated region
            $region44: #{vit_forward.17} parent=31 // pred_check
              _
            $region45: #{vit_forward.17} parent=31 // pred_check_branch
              %254 = sbr.rel target = $region47
            $region46: #{vit_forward.17} parent=31 // pred_region
              _
            $region47: #{vit_forward.17} parent=31 // pred_fallthru
              _
          $region32: #{vit_forward.17} parent=27 // pred_fallthru
            _
          %255 = vnop
        $region28: #{vit_forward.17} parent=23 // pred_fallthru
          _
        // Predicated region
        $region48: #{vit_forward.17} parent=23 // pred_check
          %p256 = pneg %p79
        $region49: #{vit_forward.17} parent=23 // pred_check_branch
          %258 = sbr.rel (%p256) target = $region51
        $region50: #{vit_forward.17} parent=23 // pred_region
          %s259 = smul.u32 64, %s19
          %p260 = scmp.lt.s32.totalorder %s259, 255
          %s261 = scalar_select %p260, %s259, 255
          %p262 = scmp.lt.s32.totalorder %s18, 0
          %s263 = scalar_select %p262, %s18, 0
          %s264 = sadd.s32 %s263, %s261
          %s265 = smul.addr %s264, 4
          %s266 = scalar_lea.vmem %s1, %s265
          %s267 = smul.u32 64, %s19
        $region51: #{vit_forward.17} parent=23 // pred_fallthru
          _
      $region24: #{vit_forward.17} parent=5 // pred_fallthru
        _
      %p268 = scmp.le.s32.totalorder 1, %s10
      %p269 = scmp.lt.s32.totalorder %s10, 5
      %p270 = pnand %p268, %p269
      %p271 = pneg %p270
      // Predicated region
      $region52: #{vit_forward.17} parent=5 // pred_check
        _
      $region53: #{vit_forward.17} parent=5 // pred_check_branch
        %273 = sbr.rel (%p270) target = $region55
      $region54: #{vit_forward.17} parent=5 // pred_region
        %s274 = ssub.s32 %s10, 1
        %s275 = sand.u32 %s44, 1
        %s276 = sand.u32 %s44, 1
        %s277 = smul.addr %s276, 96
        %s278 = scalar_lea.vmem [#allocation3], %s277
        // Predicated region
        $region56: #{vit_forward.17} parent=54 // pred_check
          %p279 = pneg %p57
        $region57: #{vit_forward.17} parent=54 // pred_check_branch
          %281 = sbr.rel (%p279) target = $region59
        $region58: #{vit_forward.17} parent=54 // pred_region
          _
        $region59: #{vit_forward.17} parent=54 // pred_fallthru
          _
        %s282 = sand.u32 %s44, 1
        %s283 = sand.u32 %s44, 1
        %s284 = smul.addr %s283, 96
        %s285 = scalar_lea.vmem [#allocation3], %s284
        %p286 = pneg %p57
        %p287 = pneg %p54
        %s288 = smul.u32 64, %s22
        %p289 = scmp.lt.s32.totalorder %s288, 255
        %s290 = scalar_select %p289, %s288, 255
        %p291 = scmp.lt.s32.totalorder %s21, 0
        %s292 = scalar_select %p291, %s21, 0
        %s293 = sadd.s32 %s292, %s290
        %s294 = smul.addr %s293, 4
        %s295 = scalar_lea.vmem %s1, %s294
        %p296 = pneg %p85
        %p297 = pneg %p82
        %p298 = scmp.lt.s32.totalorder %s21, 0
        %s299 = scalar_select %p298, %s21, 0
        %s300 = scalar_lea.vmem %s2, %s299
        %p301 = pneg %p111
        %p302 = pneg %p108
        %s303 = smul.u32 6, %s20
        %p304 = scmp.lt.s32.totalorder %s303, 5
        %s305 = scalar_select %p304, %s303, 5
        %p306 = scmp.lt.s32.totalorder %s21, 0
        %s307 = scalar_select %p306, %s21, 0
        %s308 = sadd.s32 %s307, %s305
        %s309 = smul.addr %s308, 4
        %s310 = scalar_lea.vmem %s3, %s309
        %p311 = pneg %p139
        %p312 = pneg %p136
        %p313 = pneg %p167
        %p314 = pneg %p164
        %s315 = smul.u32 6, %s20
        %p316 = scmp.lt.s32.totalorder %s315, 5
        %s317 = scalar_select %p316, %s315, 5
        %p318 = scmp.lt.s32.totalorder %s21, 0
        %s319 = scalar_select %p318, %s21, 0
        %s320 = sadd.s32 %s319, %s317
        %s321 = smul.addr %s320, 4
        %s322 = scalar_lea.vmem %s4, %s321
        %s323 = smul.u32 6, %s20
        %s324 = smul.u32 4, %s22
        %s325 = smul.u32 64, %s22
        %p326 = scmp.lt.s32.totalorder %s325, 255
        %s327 = scalar_select %p326, %s325, 255
        %p328 = scmp.lt.s32.totalorder %s21, 0
        %s329 = scalar_select %p328, %s21, 0
        %s330 = sadd.s32 %s329, %s327
        %s331 = smul.addr %s330, 4
        %s332 = scalar_lea.vmem %s1, %s331
        %s333 = smul.u32 64, %s22
        %p334 = scmp.lt.s32.totalorder %s21, 0
        %s335 = scalar_select %p334, %s21, 0
        %s336 = scalar_lea.vmem %s2, %s335
        %s337 = smul.u32 6, %s20
        %p338 = scmp.lt.s32.totalorder %s337, 5
        %s339 = scalar_select %p338, %s337, 5
        %p340 = scmp.lt.s32.totalorder %s21, 0
        %s341 = scalar_select %p340, %s21, 0
        %s342 = sadd.s32 %s341, %s339
        %s343 = smul.addr %s342, 4
        %s344 = scalar_lea.vmem %s3, %s343
        %s345 = smul.u32 6, %s20
        %s346 = smul.u32 6, %s20
        %p347 = scmp.lt.s32.totalorder %s346, 5
        %s348 = scalar_select %p347, %s346, 5
        %p349 = scmp.lt.s32.totalorder %s21, 0
        %s350 = scalar_select %p349, %s21, 0
        %s351 = sadd.s32 %s350, %s348
        %s352 = smul.addr %s351, 4
        %s353 = scalar_lea.vmem %s4, %s352
        %s354 = smul.u32 6, %s20
        %p355 = scmp.eq.s32.totalorder %s22, 0
        // Predicated region
        $region60: #{vit_forward.17} parent=54 // pred_check
          %p356 = pneg %p355
        $region61: #{vit_forward.17} parent=54 // pred_check_branch
          %358 = sbr.rel (%p356) target = $region63
        $region62: #{vit_forward.17} parent=54 // pred_region
          %vm359 = vcmask 261120
          %360 = vst.msk [vmem:[#allocation2] sm:$0xff] %vm359, 0.0
          %361 = vst.msk [vmem:[#allocation2 + $0x8] sm:$0xff] %vm359, 0.0
          %362 = vst.msk [vmem:[#allocation2 + $0x10] sm:$0xff] %vm359, 0.0
          %363 = vst.msk [vmem:[#allocation2 + $0x18] sm:$0xff] %vm359, 0.0
          %364 = vst.msk [vmem:[#allocation2 + $0x20] sm:$0xff] %vm359, 0.0
          %365 = vst.msk [vmem:[#allocation2 + $0x28] sm:$0xff] %vm359, 0.0
        $region63: #{vit_forward.17} parent=54 // pred_fallthru
          _
        %v366 = vld [vmem:[#allocation2] sm:$0xff]
        %v367 = vld [vmem:[#allocation2 + $0x8] sm:$0xff]
        %v368 = vld [vmem:[#allocation2 + $0x10] sm:$0xff]
        %v369 = vld [vmem:[#allocation2 + $0x18] sm:$0xff]
        %v370 = vld [vmem:[#allocation2 + $0x20] sm:$0xff]
        %v371 = vld [vmem:[#allocation2 + $0x28] sm:$0xff]
        %v372 = vld [vmem:[%s278] sm:$0xff]
        %v373 = vld [vmem:[%s278 + $0x8] sm:$0xff]
        %v374 = vld [vmem:[%s278 + $0x10] sm:$0xff]
        %v375 = vld [vmem:[%s278 + $0x18] sm:$0xff]
        %v376 = vld [vmem:[%s278 + $0x20] sm:$0xff]
        %v377 = vld [vmem:[%s278 + $0x28] sm:$0xff]
        %v378 = vld [vmem:[%s278 + $0x30] sm:$0xff]
        %v379 = vld [vmem:[%s278 + $0x38] sm:$0xff]
        %v380 = vld [vmem:[%s278 + $0x40] sm:$0xff]
        %v381 = vld [vmem:[%s278 + $0x48] sm:$0xff]
        %v382 = vld [vmem:[%s278 + $0x50] sm:$0xff]
        %v383 = vld [vmem:[%s278 + $0x58] sm:$0xff]
        %v384 = vld [vmem:[%s332] sm:$0xf]
        %v385 = vld [vmem:[%s332 + $0x4] sm:$0xf]
        %v386 = vld [vmem:[%s332 + $0x8] sm:$0xf]
        %v387 = vld [vmem:[%s332 + $0xc] sm:$0xf]
        %v388 = vld [vmem:[%s332 + $0x10] sm:$0xf]
        %v389 = vld [vmem:[%s332 + $0x14] sm:$0xf]
        %v390 = vld [vmem:[%s332 + $0x18] sm:$0xf]
        %v391 = vld [vmem:[%s332 + $0x1c] sm:$0xf]
        %v392 = vld [vmem:[%s332 + $0x20] sm:$0xf]
        %v393 = vld [vmem:[%s332 + $0x24] sm:$0xf]
        %v394 = vld [vmem:[%s332 + $0x28] sm:$0xf]
        %v395 = vld [vmem:[%s332 + $0x2c] sm:$0xf]
        %v396 = vld [vmem:[%s332 + $0x30] sm:$0xf]
        %v397 = vld [vmem:[%s332 + $0x34] sm:$0xf]
        %v398 = vld [vmem:[%s332 + $0x38] sm:$0xf]
        %v399 = vld [vmem:[%s332 + $0x3c] sm:$0xf]
        %v400 = vld [vmem:[%s332 + $0x40] sm:$0xf]
        %v401 = vld [vmem:[%s332 + $0x44] sm:$0xf]
        %v402 = vld [vmem:[%s332 + $0x48] sm:$0xf]
        %v403 = vld [vmem:[%s332 + $0x4c] sm:$0xf]
        %v404 = vld [vmem:[%s332 + $0x50] sm:$0xf]
        %v405 = vld [vmem:[%s332 + $0x54] sm:$0xf]
        %v406 = vld [vmem:[%s332 + $0x58] sm:$0xf]
        %v407 = vld [vmem:[%s332 + $0x5c] sm:$0xf]
        %v408 = vld [vmem:[%s332 + $0x60] sm:$0xf]
        %v409 = vld [vmem:[%s332 + $0x64] sm:$0xf]
        %v410 = vld [vmem:[%s332 + $0x68] sm:$0xf]
        %v411 = vld [vmem:[%s332 + $0x6c] sm:$0xf]
        %v412 = vld [vmem:[%s332 + $0x70] sm:$0xf]
        %v413 = vld [vmem:[%s332 + $0x74] sm:$0xf]
        %v414 = vld [vmem:[%s332 + $0x78] sm:$0xf]
        %v415 = vld [vmem:[%s332 + $0x7c] sm:$0xf]
        %v416 = vld [vmem:[%s332 + $0x80] sm:$0xf]
        %v417 = vld [vmem:[%s332 + $0x84] sm:$0xf]
        %v418 = vld [vmem:[%s332 + $0x88] sm:$0xf]
        %v419 = vld [vmem:[%s332 + $0x8c] sm:$0xf]
        %v420 = vld [vmem:[%s332 + $0x90] sm:$0xf]
        %v421 = vld [vmem:[%s332 + $0x94] sm:$0xf]
        %v422 = vld [vmem:[%s332 + $0x98] sm:$0xf]
        %v423 = vld [vmem:[%s332 + $0x9c] sm:$0xf]
        %v424 = vld [vmem:[%s332 + $0xa0] sm:$0xf]
        %v425 = vld [vmem:[%s332 + $0xa4] sm:$0xf]
        %v426 = vld [vmem:[%s332 + $0xa8] sm:$0xf]
        %v427 = vld [vmem:[%s332 + $0xac] sm:$0xf]
        %v428 = vld [vmem:[%s332 + $0xb0] sm:$0xf]
        %v429 = vld [vmem:[%s332 + $0xb4] sm:$0xf]
        %v430 = vld [vmem:[%s332 + $0xb8] sm:$0xf]
        %v431 = vld [vmem:[%s332 + $0xbc] sm:$0xf]
        %v432 = vld [vmem:[%s332 + $0xc0] sm:$0xf]
        %v433 = vld [vmem:[%s332 + $0xc4] sm:$0xf]
        %v434 = vld [vmem:[%s332 + $0xc8] sm:$0xf]
        %v435 = vld [vmem:[%s332 + $0xcc] sm:$0xf]
        %v436 = vld [vmem:[%s332 + $0xd0] sm:$0xf]
        %v437 = vld [vmem:[%s332 + $0xd4] sm:$0xf]
        %v438 = vld [vmem:[%s332 + $0xd8] sm:$0xf]
        %v439 = vld [vmem:[%s332 + $0xdc] sm:$0xf]
        %v440 = vld [vmem:[%s332 + $0xe0] sm:$0xf]
        %v441 = vld [vmem:[%s332 + $0xe4] sm:$0xf]
        %v442 = vld [vmem:[%s332 + $0xe8] sm:$0xf]
        %v443 = vld [vmem:[%s332 + $0xec] sm:$0xf]
        %v444 = vld [vmem:[%s332 + $0xf0] sm:$0xf]
        %v445 = vld [vmem:[%s332 + $0xf4] sm:$0xf]
        %v446 = vld [vmem:[%s332 + $0xf8] sm:$0xf]
        %v447 = vld [vmem:[%s332 + $0xfc] sm:$0xf]
        %v460 = vunpack.c.l.b16 %v372
        %v461 = vunpack.c.h.b16 %v372
        %v462 = vunpack.c.l.b16 %v373
        %v463 = vunpack.c.h.b16 %v373
        %v464 = vunpack.c.l.b16 %v374
        %v465 = vunpack.c.h.b16 %v374
        %v466 = vunpack.c.l.b16 %v375
        %v467 = vunpack.c.h.b16 %v375
        %v468 = vunpack.c.l.b16 %v376
        %v469 = vunpack.c.h.b16 %v376
        %v470 = vunpack.c.l.b16 %v377
        %v471 = vunpack.c.h.b16 %v377
        %v472 = vunpack.c.l.b16 %v378
        %v473 = vunpack.c.h.b16 %v378
        %v474 = vunpack.c.l.b16 %v379
        %v475 = vunpack.c.h.b16 %v379
        %v476 = vunpack.c.l.b16 %v380
        %v477 = vunpack.c.h.b16 %v380
        %v478 = vunpack.c.l.b16 %v381
        %v479 = vunpack.c.h.b16 %v381
        %v480 = vunpack.c.l.b16 %v382
        %v481 = vunpack.c.h.b16 %v382
        %v482 = vunpack.c.l.b16 %v383
        %v483 = vunpack.c.h.b16 %v383
        %v484 = vpack.c.b16 %v464, %v460
        %v485 = vpack.c.b16 %v465, %v461
        %v486 = vpack.c.b16 %v466, %v462
        %v487 = vpack.c.b16 %v467, %v463
        %v488 = vpack.c.b16 %v472, %v468
        %v489 = vpack.c.b16 %v473, %v469
        %v490 = vpack.c.b16 %v474, %v470
        %v491 = vpack.c.b16 %v475, %v471
        %v492 = vpack.c.b16 %v480, %v476
        %v493 = vpack.c.b16 %v481, %v477
        %v494 = vpack.c.b16 %v482, %v478
        %v495 = vpack.c.b16 %v483, %v479
        %v572 = vunpack.c.l.b16 %v384
        %v573 = vunpack.c.l.b16 %v385
        %v574 = vunpack.c.l.b16 %v386
        %v575 = vunpack.c.l.b16 %v387
        %v576 = vunpack.c.l.b16 %v388
        %v577 = vunpack.c.l.b16 %v389
        %v578 = vunpack.c.l.b16 %v390
        %v579 = vunpack.c.l.b16 %v391
        %v580 = vunpack.c.l.b16 %v392
        %v581 = vunpack.c.l.b16 %v393
        %v582 = vunpack.c.l.b16 %v394
        %v583 = vunpack.c.l.b16 %v395
        %v584 = vunpack.c.l.b16 %v396
        %v585 = vunpack.c.l.b16 %v397
        %v586 = vunpack.c.l.b16 %v398
        %v587 = vunpack.c.l.b16 %v399
        %v588 = vunpack.c.l.b16 %v400
        %v589 = vunpack.c.l.b16 %v401
        %v590 = vunpack.c.l.b16 %v402
        %v591 = vunpack.c.l.b16 %v403
        %v592 = vunpack.c.l.b16 %v404
        %v593 = vunpack.c.l.b16 %v405
        %v594 = vunpack.c.l.b16 %v406
        %v595 = vunpack.c.l.b16 %v407
        %v596 = vunpack.c.l.b16 %v408
        %v597 = vunpack.c.l.b16 %v409
        %v598 = vunpack.c.l.b16 %v410
        %v599 = vunpack.c.l.b16 %v411
        %v600 = vunpack.c.l.b16 %v412
        %v601 = vunpack.c.l.b16 %v413
        %v602 = vunpack.c.l.b16 %v414
        %v603 = vunpack.c.l.b16 %v415
        %v604 = vunpack.c.l.b16 %v416
        %v605 = vunpack.c.l.b16 %v417
        %v606 = vunpack.c.l.b16 %v418
        %v607 = vunpack.c.l.b16 %v419
        %v608 = vunpack.c.l.b16 %v420
        %v609 = vunpack.c.l.b16 %v421
        %v610 = vunpack.c.l.b16 %v422
        %v611 = vunpack.c.l.b16 %v423
        %v612 = vunpack.c.l.b16 %v424
        %v613 = vunpack.c.l.b16 %v425
        %v614 = vunpack.c.l.b16 %v426
        %v615 = vunpack.c.l.b16 %v427
        %v616 = vunpack.c.l.b16 %v428
        %v617 = vunpack.c.l.b16 %v429
        %v618 = vunpack.c.l.b16 %v430
        %v619 = vunpack.c.l.b16 %v431
        %v620 = vunpack.c.l.b16 %v432
        %v621 = vunpack.c.l.b16 %v433
        %v622 = vunpack.c.l.b16 %v434
        %v623 = vunpack.c.l.b16 %v435
        %v624 = vunpack.c.l.b16 %v436
        %v625 = vunpack.c.l.b16 %v437
        %v626 = vunpack.c.l.b16 %v438
        %v627 = vunpack.c.l.b16 %v439
        %v628 = vunpack.c.l.b16 %v440
        %v629 = vunpack.c.l.b16 %v441
        %v630 = vunpack.c.l.b16 %v442
        %v631 = vunpack.c.l.b16 %v443
        %v632 = vunpack.c.l.b16 %v444
        %v633 = vunpack.c.l.b16 %v445
        %v634 = vunpack.c.l.b16 %v446
        %v635 = vunpack.c.l.b16 %v447
        %v636 = vpack.c.b16 %v573, %v572
        %v637 = vpack.c.b16 %v575, %v574
        %v638 = vpack.c.b16 %v577, %v576
        %v639 = vpack.c.b16 %v579, %v578
        %v640 = vpack.c.b16 %v581, %v580
        %v641 = vpack.c.b16 %v583, %v582
        %v642 = vpack.c.b16 %v585, %v584
        %v643 = vpack.c.b16 %v587, %v586
        %v644 = vpack.c.b16 %v589, %v588
        %v645 = vpack.c.b16 %v591, %v590
        %v646 = vpack.c.b16 %v593, %v592
        %v647 = vpack.c.b16 %v595, %v594
        %v648 = vpack.c.b16 %v597, %v596
        %v649 = vpack.c.b16 %v599, %v598
        %v650 = vpack.c.b16 %v601, %v600
        %v651 = vpack.c.b16 %v603, %v602
        %v652 = vpack.c.b16 %v605, %v604
        %v653 = vpack.c.b16 %v607, %v606
        %v654 = vpack.c.b16 %v609, %v608
        %v655 = vpack.c.b16 %v611, %v610
        %v656 = vpack.c.b16 %v613, %v612
        %v657 = vpack.c.b16 %v615, %v614
        %v658 = vpack.c.b16 %v617, %v616
        %v659 = vpack.c.b16 %v619, %v618
        %v660 = vpack.c.b16 %v621, %v620
        %v661 = vpack.c.b16 %v623, %v622
        %v662 = vpack.c.b16 %v625, %v624
        %v663 = vpack.c.b16 %v627, %v626
        %v664 = vpack.c.b16 %v629, %v628
        %v665 = vpack.c.b16 %v631, %v630
        %v666 = vpack.c.b16 %v633, %v632
        %v667 = vpack.c.b16 %v635, %v634
        %700 = vmatpush.bf16.msra.mxu0 %v643
        %701 = vmatpush.bf16.msra.mxu0 %v642
        %702 = vmatpush.bf16.msra.mxu0 %v641
        %703 = vmatpush.bf16.msra.mxu0 %v640
        %704 = vmatpush.bf16.msra.mxu0 %v639
        %705 = vmatpush.bf16.msra.mxu0 %v638
        %706 = vmatpush.bf16.msra.mxu0 %v637
        %707 = vmatpush.bf16.msra.mxu0 %v636
        %708 = vmatmul.bf16.gmra.mxu0 %v484
        %v709 = vpop.f32.mrf.mxu0
        %v710 = vadd.f32 0.0, %v709
        %v711 = vpop.f32.mrf.mxu0
        %v712 = vadd.f32 0.0, %v711
        %713 = vmatmul.bf16.gmra.mxu0 %v488
        %v714 = vpop.f32.mrf.mxu0
        %v715 = vadd.f32 0.0, %v714
        %v716 = vpop.f32.mrf.mxu0
        %v717 = vadd.f32 0.0, %v716
        %718 = vmatmul.bf16.gmra.mxu0 %v492
        %v719 = vpop.f32.mrf.mxu0
        %v720 = vadd.f32 0.0, %v719
        %v721 = vpop.f32.mrf.mxu0
        %v722 = vadd.f32 0.0, %v721
        %723 = vdwg.mxu0
        %724 = vmatpush.bf16.msra.mxu0 %v651
        %725 = vmatpush.bf16.msra.mxu0 %v650
        %726 = vmatpush.bf16.msra.mxu0 %v649
        %727 = vmatpush.bf16.msra.mxu0 %v648
        %728 = vmatpush.bf16.msra.mxu0 %v647
        %729 = vmatpush.bf16.msra.mxu0 %v646
        %730 = vmatpush.bf16.msra.mxu0 %v645
        %731 = vmatpush.bf16.msra.mxu0 %v644
        %732 = vmatmul.bf16.gmra.mxu0 %v485
        %v733 = vpop.f32.mrf.mxu0
        %v734 = vadd.f32 %v710, %v733
        %v735 = vpop.f32.mrf.mxu0
        %v736 = vadd.f32 %v712, %v735
        %737 = vmatmul.bf16.gmra.mxu0 %v489
        %v738 = vpop.f32.mrf.mxu0
        %v739 = vadd.f32 %v715, %v738
        %v740 = vpop.f32.mrf.mxu0
        %v741 = vadd.f32 %v717, %v740
        %742 = vmatmul.bf16.gmra.mxu0 %v493
        %v743 = vpop.f32.mrf.mxu0
        %v744 = vadd.f32 %v720, %v743
        %v745 = vpop.f32.mrf.mxu0
        %v746 = vadd.f32 %v722, %v745
        %747 = vdwg.mxu0
        %748 = vmatpush.bf16.msra.mxu0 %v659
        %749 = vmatpush.bf16.msra.mxu0 %v658
        %750 = vmatpush.bf16.msra.mxu0 %v657
        %751 = vmatpush.bf16.msra.mxu0 %v656
        %752 = vmatpush.bf16.msra.mxu0 %v655
        %753 = vmatpush.bf16.msra.mxu0 %v654
        %754 = vmatpush.bf16.msra.mxu0 %v653
        %755 = vmatpush.bf16.msra.mxu0 %v652
        %756 = vmatmul.bf16.gmra.mxu0 %v486
        %v757 = vpop.f32.mrf.mxu0
        %v758 = vadd.f32 %v734, %v757
        %v759 = vpop.f32.mrf.mxu0
        %v760 = vadd.f32 %v736, %v759
        %761 = vmatmul.bf16.gmra.mxu0 %v490
        %v762 = vpop.f32.mrf.mxu0
        %v763 = vadd.f32 %v739, %v762
        %v764 = vpop.f32.mrf.mxu0
        %v765 = vadd.f32 %v741, %v764
        %766 = vmatmul.bf16.gmra.mxu0 %v494
        %v767 = vpop.f32.mrf.mxu0
        %v768 = vadd.f32 %v744, %v767
        %v769 = vpop.f32.mrf.mxu0
        %v770 = vadd.f32 %v746, %v769
        %771 = vdwg.mxu0
        %772 = vmatpush.bf16.msra.mxu0 %v667
        %773 = vmatpush.bf16.msra.mxu0 %v666
        %774 = vmatpush.bf16.msra.mxu0 %v665
        %775 = vmatpush.bf16.msra.mxu0 %v664
        %776 = vmatpush.bf16.msra.mxu0 %v663
        %777 = vmatpush.bf16.msra.mxu0 %v662
        %778 = vmatpush.bf16.msra.mxu0 %v661
        %779 = vmatpush.bf16.msra.mxu0 %v660
        %780 = vmatmul.bf16.gmra.mxu0 %v487
        %v781 = vpop.f32.mrf.mxu0
        %v782 = vadd.f32 %v758, %v781
        %v783 = vpop.f32.mrf.mxu0
        %v784 = vadd.f32 %v760, %v783
        %785 = vmatmul.bf16.gmra.mxu0 %v491
        %v786 = vpop.f32.mrf.mxu0
        %v787 = vadd.f32 %v763, %v786
        %v788 = vpop.f32.mrf.mxu0
        %v789 = vadd.f32 %v765, %v788
        %790 = vmatmul.bf16.gmra.mxu0 %v495
        %v791 = vpop.f32.mrf.mxu0
        %v792 = vadd.f32 %v768, %v791
        %v793 = vpop.f32.mrf.mxu0
        %v794 = vadd.f32 %v770, %v793
        %795 = vdwg.mxu0
        %v796 = vadd.f32 %v366, %v782
        %v797 = vadd.f32 %v367, %v784
        %v798 = vadd.f32 %v368, %v787
        %v799 = vadd.f32 %v369, %v789
        %v800 = vadd.f32 %v370, %v792
        %v801 = vadd.f32 %v371, %v794
        %vm802 = vcmask 261120
        %803 = vst.msk [vmem:[#allocation2] sm:$0xff] %vm802, %v796
        %804 = vst.msk [vmem:[#allocation2 + $0x8] sm:$0xff] %vm802, %v797
        %805 = vst.msk [vmem:[#allocation2 + $0x10] sm:$0xff] %vm802, %v798
        %806 = vst.msk [vmem:[#allocation2 + $0x18] sm:$0xff] %vm802, %v799
        %807 = vst.msk [vmem:[#allocation2 + $0x20] sm:$0xff] %vm802, %v800
        %808 = vst.msk [vmem:[#allocation2 + $0x28] sm:$0xff] %vm802, %v801
        %p809 = scmp.eq.s32.totalorder %s22, 3
        // Predicated region
        $region64: #{vit_forward.17} parent=54 // pred_check
          %p810 = pneg %p809
        $region65: #{vit_forward.17} parent=54 // pred_check_branch
          %812 = sbr.rel (%p810) target = $region67
        $region66: #{vit_forward.17} parent=54 // pred_region
          %v813 = vld [vmem:[#allocation2] sm:$0xff]
          %v814 = vld [vmem:[#allocation2 + $0x8] sm:$0xff]
          %v815 = vld [vmem:[#allocation2 + $0x10] sm:$0xff]
          %v816 = vld [vmem:[#allocation2 + $0x18] sm:$0xff]
          %v817 = vld [vmem:[#allocation2 + $0x20] sm:$0xff]
          %v818 = vld [vmem:[#allocation2 + $0x28] sm:$0xff]
          %v819 = vld [vmem:[%s336] sm:$0x1]
          %v821 = vperm.slane %v819, 0
          %v823 = vadd.f32 %v813, %v821
          %v824 = vadd.f32 %v814, %v821
          %v825 = vadd.f32 %v815, %v821
          %v826 = vadd.f32 %v816, %v821
          %v827 = vadd.f32 %v817, %v821
          %v828 = vadd.f32 %v818, %v821
          %v829 = vld [vmem:[%s344] sm:$0xf]
          %v830 = vld [vmem:[%s344 + $0x4] sm:$0xf]
          %v831 = vld [vmem:[%s344 + $0x8] sm:$0xf]
          %v832 = vld [vmem:[%s344 + $0xc] sm:$0xf]
          %v833 = vld [vmem:[%s344 + $0x10] sm:$0xf]
          %v834 = vld [vmem:[%s344 + $0x14] sm:$0xf]
          %v835 = vunpack.c.l.bf16 %v829
          %v836 = vunpack.c.l.bf16 %v830
          %v837 = vunpack.c.l.bf16 %v831
          %v838 = vunpack.c.l.bf16 %v832
          %v839 = vunpack.c.l.bf16 %v833
          %v840 = vunpack.c.l.bf16 %v834
          %v841 = vadd.f32 %v823, %v835
          %v842 = vadd.f32 %v824, %v836
          %v843 = vadd.f32 %v825, %v837
          %v844 = vadd.f32 %v826, %v838
          %v845 = vadd.f32 %v827, %v839
          %v846 = vadd.f32 %v828, %v840
          %v847 = vpack.c.bf16 %v841, %v841
          %v848 = vpack.c.bf16 %v842, %v842
          %v849 = vpack.c.bf16 %v843, %v843
          %v850 = vpack.c.bf16 %v844, %v844
          %v851 = vpack.c.bf16 %v845, %v845
          %v852 = vpack.c.bf16 %v846, %v846
          %vm853 = vcmask 257024
          %854 = vst.msk [vmem:[%s353] sm:$0xf] %vm853, %v847
          %855 = vst.msk [vmem:[%s353 + $0x4] sm:$0xf] %vm853, %v848
          %856 = vst.msk [vmem:[%s353 + $0x8] sm:$0xf] %vm853, %v849
          %857 = vst.msk [vmem:[%s353 + $0xc] sm:$0xf] %vm853, %v850
          %858 = vst.msk [vmem:[%s353 + $0x10] sm:$0xf] %vm853, %v851
          %859 = vst.msk [vmem:[%s353 + $0x14] sm:$0xf] %vm853, %v852
        $region67: #{vit_forward.17} parent=54 // pred_fallthru
          _
        %s860 = smul.u32 6, %s20
        %p861 = scmp.lt.s32.totalorder %s860, 5
        %s862 = scalar_select %p861, %s860, 5
        %p863 = scmp.lt.s32.totalorder %s21, 0
        %s864 = scalar_select %p863, %s21, 0
        %s865 = sadd.s32 %s864, %s862
        %s866 = smul.addr %s865, 4
        %s867 = scalar_lea.vmem %s4, %s866
        // Predicated region
        $region68: #{vit_forward.17} parent=54 // pred_check
          %p868 = pneg %p164
        $region69: #{vit_forward.17} parent=54 // pred_check_branch
          %870 = sbr.rel (%p868) target = $region71
        $region70: #{vit_forward.17} parent=54 // pred_region
          %s871 = smul.u32 6, %s20
        $region71: #{vit_forward.17} parent=54 // pred_fallthru
          _
        // Predicated region
        $region72: #{vit_forward.17} parent=54 // pred_check
          %p872 = pneg %p164
        $region73: #{vit_forward.17} parent=54 // pred_check_branch
          %874 = sbr.rel (%p872) target = $region75
        $region74: #{vit_forward.17} parent=54 // pred_region
          %s875 = smul.u32 6, %s20
          %p876 = scmp.lt.s32.totalorder %s875, 5
          %s877 = scalar_select %p876, %s875, 5
          %p878 = scmp.lt.s32.totalorder %s21, 0
          %s879 = scalar_select %p878, %s21, 0
          %s880 = sadd.s32 %s879, %s877
          %s881 = smul.addr %s880, 4
          %s882 = scalar_lea.vmem %s4, %s881
        $region75: #{vit_forward.17} parent=54 // pred_fallthru
          _
      $region55: #{vit_forward.17} parent=5 // pred_fallthru
        _
      %p883 = scmp.le.s32.totalorder 2, %s10
      // Predicated region
      $region76: #{vit_forward.17} parent=5 // pred_check
        %p884 = pneg %p883
      $region77: #{vit_forward.17} parent=5 // pred_check_branch
        %886 = sbr.rel (%p884) target = $region79
      $region78: #{vit_forward.17} parent=5 // pred_region
        %s887 = ssub.s32 %s10, 2
      $region79: #{vit_forward.17} parent=5 // pred_fallthru
        _
    $region6: #{vit_forward.17} parent=1 // loop_footer
      %s14 = sadd.s32 1, %s10
    $region7: #{vit_forward.17} parent=1 // loop_footer_branch
      %9 = sbr.rel target = $region3
    $region8: #{vit_forward.17} parent=1 // loop_exit
      _

// kernel: vit_forward.23
$region0: #{vit_forward.23}
  #allocation0 [shape = 'u32[]', space=smem, size = 0x4, offset = 0x4, fixed_abs, tag = 'smem constant byte address 0x4 - core index']
  #allocation1 [shape = 'u32[72,128]{1,0:T(1,128)}', space=vmem, size = 0x9000, scoped, tag = 'internal scratch']
  #allocation2 [shape = 'bf16[16,32]{1,0:T(8,128)(2,1)}', space=vmem, size = 0x1000, scoped, tag = 'scratch operand']
  %s0 = inlined_call_operand.vmem [shape: bf16[16,32], index: 0, kind: input, shape index: {}]
  %s1 = inlined_call_operand.vmem [shape: f32[1,32], index: 1, kind: input, shape index: {}]
  %s2 = inlined_call_operand.vmem [shape: f32[1,32], index: 2, kind: input, shape index: {}]
  %s3 = inlined_call_operand.vmem [shape: bf16[32,10], index: 3, kind: input, shape index: {}]
  %s4 = inlined_call_operand.vmem [shape: f32[1,10], index: 4, kind: input, shape index: {}]
  %s5 = inlined_call_operand.vmem [shape: f32[16,10], index: 5, kind: output, shape index: {}]
  %s6 = sld [smem:[#allocation0]]
  $region34: #{vit_forward.23} parent=0
    _
  %s8 = ssub.s32 1, %s6
  %s9 = scalar_select 0, %s8, %s6
  // Predicated region
  $region2: #{vit_forward.23} parent=0 // pred_check
    _
  $region3: #{vit_forward.23} parent=0 // pred_check_branch
    %11 = sbr.rel (0) target = $region5
  $region4: #{vit_forward.23} parent=0 // pred_region
    _
  $region5: #{vit_forward.23} parent=0 // pred_fallthru
    _
  // Predicated region
  $region6: #{vit_forward.23} parent=0 // pred_check
    _
  $region7: #{vit_forward.23} parent=0 // pred_check_branch
    %13 = sbr.rel (0) target = $region9
  $region8: #{vit_forward.23} parent=0 // pred_region
    _
  $region9: #{vit_forward.23} parent=0 // pred_fallthru
    _
  // Predicated region
  $region10: #{vit_forward.23} parent=0 // pred_check
    _
  $region11: #{vit_forward.23} parent=0 // pred_check_branch
    %15 = sbr.rel (0) target = $region13
  $region12: #{vit_forward.23} parent=0 // pred_region
    _
  $region13: #{vit_forward.23} parent=0 // pred_fallthru
    _
  // Predicated region
  $region14: #{vit_forward.23} parent=0 // pred_check
    _
  $region15: #{vit_forward.23} parent=0 // pred_check_branch
    %17 = sbr.rel (0) target = $region17
  $region16: #{vit_forward.23} parent=0 // pred_region
    _
  $region17: #{vit_forward.23} parent=0 // pred_fallthru
    _
  // Predicated region
  $region18: #{vit_forward.23} parent=0 // pred_check
    _
  $region19: #{vit_forward.23} parent=0 // pred_check_branch
    %19 = sbr.rel (0) target = $region21
  $region20: #{vit_forward.23} parent=0 // pred_region
    _
  $region21: #{vit_forward.23} parent=0 // pred_fallthru
    _
  %p21 = scmp.eq.s32.totalorder 0, 0
  // Predicated region
  $region22: #{vit_forward.23} parent=0 // pred_check
    %p22 = pneg %p21
  $region23: #{vit_forward.23} parent=0 // pred_check_branch
    %24 = sbr.rel (%p22) target = $region25
  $region24: #{vit_forward.23} parent=0 // pred_region
    %v25 = vld [vmem:[%s0] sm:$0xf]
    %v26 = vld [vmem:[%s0 + $0x4] sm:$0xf]
    %v27 = vunpack.c.l.bf16 %v25
    %v28 = vunpack.c.l.bf16 %v26
    %vm29 = vcmask 261120
    %v30 = vsel %vm29, %v27, 0.0
    %31 = vadd.xlane.f32.xlu0 %v30
    %v32 = vpop.xlane.xlu0 %31
    %v33 = vsel %vm29, %v28, 0.0
    %34 = vadd.xlane.f32.xlu0 %v33
    %v35 = vpop.xlane.xlu0 %34
    %v36 = vrcp.pop 32.0
    %v37 = vmul.f32 32.0, %v36
    %v38 = vsub.f32 1.0, %v37
    %v39 = vmul.f32 %v36, %v38
    %v40 = vadd.f32 %v36, %v39
    %vm41 = vweird.f32 %v36
    %v42 = vsel %vm41, %v36, %v40
    %v43 = vmul.f32 %v32, %v42
    %v44 = vmul.f32 %v35, %v42
    %v45 = vsub.f32 %v27, %v43
    %v46 = vsub.f32 %v28, %v44
    %v47 = vmul.f32 %v45, %v45
    %v48 = vmul.f32 %v46, %v46
    %v49 = vsel %vm29, %v47, 0.0
    %50 = vadd.xlane.f32.xlu0 %v49
    %v51 = vpop.xlane.xlu0 %50
    %v52 = vsel %vm29, %v48, 0.0
    %53 = vadd.xlane.f32.xlu0 %v52
    %v54 = vpop.xlane.xlu0 %53
    %v55 = vmul.f32 %v51, %v42
    %v56 = vmul.f32 %v54, %v42
    %v57 = vadd.f32 %v55, 1e-05
    %v58 = vadd.f32 %v56, 1e-05
    %v59 = vrsqrt.pop %v57
    %v60 = vmul.f32 %v59, %v57
    %v61 = vmul.f32 %v60, %v59
    %v62 = vmul.f32 0.5, %v61
    %v63 = vsub.f32 1.5, %v62
    %v64 = vmul.f32 %v59, %v63
    %vm65 = vweird.f32 %v57
    %vm66 = vweird.f32 %v59
    %vm67 = vmor %vm65, %vm66
    %v68 = vsel %vm67, %v59, %v64
    %v69 = vrsqrt.pop %v58
    %v70 = vmul.f32 %v69, %v58
    %v71 = vmul.f32 %v70, %v69
    %v72 = vmul.f32 0.5, %v71
    %v73 = vsub.f32 1.5, %v72
    %v74 = vmul.f32 %v69, %v73
    %vm75 = vweird.f32 %v58
    %vm76 = vweird.f32 %v69
    %vm77 = vmor %vm75, %vm76
    %v78 = vsel %vm77, %v69, %v74
    %v79 = vmul.f32 %v45, %v68
    %v80 = vmul.f32 %v46, %v78
    %v81 = vld [vmem:[%s1] sm:$0x1]
    %v83 = vperm.slane %v81, 0
    %v85 = vmul.f32 %v79, %v83
    %v86 = vmul.f32 %v80, %v83
    %v87 = vld [vmem:[%s2] sm:$0x1]
    %v89 = vperm.slane %v87, 0
    %v91 = vadd.f32 %v85, %v89
    %v92 = vadd.f32 %v86, %v89
    %v93 = vpack.c.bf16 %v91, %v91
    %v94 = vpack.c.bf16 %v92, %v92
    %vm95 = vcmask 257024
    %96 = vst.msk [vmem:[#allocation2] sm:$0xf] %vm95, %v93
    %97 = vst.msk [vmem:[#allocation2 + $0x4] sm:$0xf] %vm95, %v94
  $region25: #{vit_forward.23} parent=0 // pred_fallthru
    _
  %v98 = vld [vmem:[#allocation2] sm:$0xf]
  %v99 = vld [vmem:[#allocation2 + $0x4] sm:$0xf]
  %v100 = vld [vmem:[%s3] sm:$0xf]
  %v101 = vld [vmem:[%s3 + $0x4] sm:$0xf]
  %v102 = vld [vmem:[%s3 + $0x8] sm:$0xf]
  %v103 = vld [vmem:[%s3 + $0xc] sm:$0xf]
  %v104 = vld [vmem:[%s4] sm:$0x1]
  %v106 = vperm.slane %v104, 0
  %v110 = vunpack.c.l.b16 %v98
  %v111 = vunpack.c.l.b16 %v99
  %v112 = vpack.c.b16 %v111, %v110
  %v117 = vunpack.c.l.b16 %v100
  %v118 = vunpack.c.l.b16 %v101
  %v119 = vunpack.c.l.b16 %v102
  %v120 = vunpack.c.l.b16 %v103
  %v121 = vpack.c.b16 %v118, %v117
  %v122 = vpack.c.b16 %v120, %v119
  %vm125 = vcmask 261120
  %v127 = vsel %vm125, %v112, 0
  %129 = vmatpush.bf16.msra.mxu0 0
  %130 = vmatpush.bf16.msra.mxu0 0
  %131 = vmatpush.bf16.msra.mxu0 0
  %132 = vmatpush.bf16.msra.mxu0 0
  %133 = vmatpush.bf16.msra.mxu0 0
  %134 = vmatpush.bf16.msra.mxu0 0
  %135 = vmatpush.bf16.msra.mxu0 %v122
  %136 = vmatpush.bf16.msra.mxu0 %v121
  %137 = vmatmul.bf16.gmra.mxu0 %v127
  %v138 = vpop.f32.mrf.mxu0
  %v139 = vadd.f32 %v106, %v138
  %v140 = vpop.f32.mrf.mxu0
  %v141 = vadd.f32 %v106, %v140
  %142 = vdwg.mxu0
  %vm143 = vcmask 80896
  %144 = vst.msk [vmem:[%s5] sm:$0xff] %vm143, %v139
  %145 = vst.msk [vmem:[%s5 + $0x8] sm:$0xff] %vm143, %v141
  // Predicated region
  $region26: #{vit_forward.23} parent=0 // pred_check
    _
  $region27: #{vit_forward.23} parent=0 // pred_check_branch
    %147 = sbr.rel (0) target = $region29
  $region28: #{vit_forward.23} parent=0 // pred_region
    _
  $region29: #{vit_forward.23} parent=0 // pred_fallthru
    _
  // Predicated region
  $region30: #{vit_forward.23} parent=0 // pred_check
    _
  $region31: #{vit_forward.23} parent=0 // pred_check_branch
    %149 = sbr.rel (0) target = $region33
  $region32: #{vit_forward.23} parent=0 // pred_region
    _
  $region33: #{vit_forward.23} parent=0 // pred_fallthru
    _

</llo_original>
